<compile_context>
chip_gen: v7x
topology: tpu7x:2x2x1
jax: 0.10.0
libtpu: 0.0.40
codegen_flags: <defaults>
</compile_context>

<pallas_src>
import functools
import math

import jax
import jax.numpy as jnp
from jax.experimental import pallas as pl
from jax.experimental.pallas import tpu as pltpu

BN_EPS = 1e-5
LANE = 128


def _round_up(x, m):
    return (x + m - 1) // m * m


def _vmem_config():
    """Generation-aware VMEM limit + working-set budget (v5e/v6e: 128 MiB, v7x: 64 MiB)."""
    cap = 64 * 1024 * 1024
    try:
        info = pltpu.get_tpu_info()
        cap = int(getattr(info, "vmem_capacity_bytes", cap)) or cap
    except Exception:
        pass
    limit = (cap * 3) // 4          # ~96 MiB on 128-MiB chips, ~48 MiB on v7x
    budget = limit // 2             # working-set target used for tile sizing
    return limit, budget


def _pick_t_oh(oh, ow, c_in, oc_pad, kh, kw, h_pp, w_p, budget):
    """Pick output rows per tile so pass-1/pass-2 working sets fit the VMEM budget."""
    # Resident blocks, counted double-buffered (incl. the constant-index weight block).
    resident = 2 * h_pp * w_p * c_in * 2 + 2 * kh * kw * c_in * oc_pad * 2
    # Per-output-row cost: bf16 conv tile (x2 buffers) + f32 accumulator + pass-2 f32
    # temporaries + tap slices.
    per_row = ow * (oc_pad * 12 + c_in * 4) + 2 * oc_pad * 4
    t = (budget - resident) // max(per_row, 1)
    if t >= oh:
        return oh
    # Tiled case: pass-2's lane-dense NCHW output block needs (t_oh * OW) % 128 == 0.
    g = LANE // math.gcd(ow, LANE)
    t = max(g, (t // g) * g)
    if t >= oh:
        return oh
    return int(t)


# ---------------------- pass 1: fused conv (im2col-free) + BN partial stats ----------------------
def _conv_stats_kernel(x_ref, w_ref, conv_ref, mean_ref, m2_ref, *,
                       kh, kw, stride, dilation, t_oh, oh, ow, c_in):
    t = pl.program_id(1)
    oy0 = pl.multiple_of(t * (t_oh * stride), t_oh * stride)
    r = t_oh * ow

    acc = jnp.zeros((r, w_ref.shape[-1]), dtype=jnp.float32)
    for i in range(kh):                      # static tap loop -> unrolled MXU dots
        for j in range(kw):
            row0 = oy0 + i * dilation
            col0 = j * dilation
            if stride == 1:
                tap = x_ref[0, pl.ds(row0, t_oh), pl.ds(col0, ow), :]
            else:
                tap = x_ref[0, pl.ds(row0, t_oh, stride), pl.ds(col0, ow, stride), :]
            acc += jax.lax.dot_general(
                tap.reshape(r, c_in), w_ref[i * kw + j],
                dimension_numbers=(((1,), (0,)), ((), ())),
                preferred_element_type=jnp.float32)

    # bf16 intermediate: halves the HBM round trip; BN stats below stay f32.
    conv_ref[0, 0] = acc.astype(conv_ref.dtype)

    # Per-tile two-pass stats (mean, M2) over valid rows only; padded rows excluded.
    rows_valid = jnp.minimum(oh - t * t_oh, t_oh)
    cnt = (rows_valid * ow).astype(jnp.float32)
    row_id = jax.lax.broadcasted_iota(jnp.int32, (r, 1), 0)
    valid = row_id < rows_valid * ow
    acc_v = jnp.where(valid, acc, 0.0)
    mean_t = jnp.sum(acc_v, axis=0, keepdims=True) / cnt
    dev = jnp.where(valid, acc - mean_t, 0.0)
    mean_ref[0, 0] = mean_t
    m2_ref[0, 0] = jnp.sum(dev * dev, axis=0, keepdims=True)


# ---------------------- pass 2: y = conv*scale + shift, fused NHWC->NCHW ----------------------
def _bn_apply_kernel(conv_ref, scale_ref, shift_ref, o_ref, *, oc):
    y = conv_ref[0, 0].astype(jnp.float32) * scale_ref[...] + shift_ref[...]
    # In-kernel XLU transpose to a lane-dense (OC, t_oh*OW) NCHW block; padded OC columns
    # are dropped before the store, so the final output carries no channel padding.
    o_ref[0] = jnp.transpose(y, (1, 0))[:oc, :]


@functools.partial(jax.jit, static_argnames=("stride", "padding", "dilation", "t_oh"))
def basic_conv2d(x, weight, gamma, beta, *, stride=1, padding=0, dilation=1, t_oh=None):
    """BasicConv2d.forward: BatchNorm2d(Conv2d(x, bias=False)) with batch statistics.

    x:      (N, C, H, W)    float32 (NCHW)
    weight: (OC, C, KH, KW) float32 (PyTorch OIHW)
    gamma, beta: (OC,)
    returns (N, OC, OH, OW) float32
    """
    n, c, h, w = x.shape
    oc, _, kh, kw = weight.shape
    oh = (h + 2 * padding - dilation * (kh - 1) - 1) // stride + 1
    ow = (w + 2 * padding - dilation * (kw - 1) - 1) // stride + 1
    oc_pad = _round_up(oc, LANE)
    w_p = w + 2 * padding

    vmem_limit, budget = _vmem_config()
    if t_oh is None:
        h_pp_est = (oh - 1) * stride + (kh - 1) * dilation + 1
        t_oh = _pick_t_oh(oh, ow, c, oc_pad, kh, kw, h_pp_est, w_p, budget)
    t_oh = max(1, min(t_oh, oh))
    num_t = pl.cdiv(oh, t_oh)
    oh_pad = num_t * t_oh
    r = t_oh * ow
    if num_t > 1 and r % LANE != 0:
        raise ValueError(f"t_oh*OW={r} must be a multiple of {LANE} when OH is tiled")

    # ---- one-shot glue (x-sized, cheap): NCHW -> padded NHWC bf16; weight -> (KH*KW, C, OC_pad)
    h_needed = (oh_pad - 1) * stride + (kh - 1) * dilation + 1
    pad_bot = max(padding, h_needed - h - padding)
    h_pp = h + padding + pad_bot
    x_nhwc = jnp.pad(jnp.transpose(x, (0, 2, 3, 1)).astype(jnp.bfloat16),
                     ((0, 0), (padding, pad_bot), (padding, padding), (0, 0)))
    w_taps = jnp.pad(jnp.transpose(weight, (2, 3, 1, 0)).reshape(kh * kw, c, oc),
                     ((0, 0), (0, 0), (0, oc_pad - oc))).astype(jnp.bfloat16)
    # TODO(synk): if 2*h_pp*w_p*c*2 exceeds the VMEM budget (very large images), switch the x
    # input to memory_space=pl.ANY with manual per-tile slab DMA instead of a resident block.
    # TODO(synk): for very large KH*KW*C (e.g. Inception 5b), split C over an extra grid axis
    # so the weight block stays within the VMEM budget.

    kernel1 = functools.partial(_conv_stats_kernel, kh=kh, kw=kw, stride=stride,
                                dilation=dilation, t_oh=t_oh, oh=oh, ow=ow, c_in=c)
    conv_bf16, tile_mean, tile_m2 = pl.pallas_call(
        kernel1,
        out_shape=[
            jax.ShapeDtypeStruct((n, num_t, r, oc_pad), jnp.bfloat16),
            jax.ShapeDtypeStruct((n, num_t, 1, oc_pad), jnp.float32),
            jax.ShapeDtypeStruct((n, num_t, 1, oc_pad), jnp.float32),
        ],
        grid_spec=pltpu.PrefetchScalarGridSpec(
            num_scalar_prefetch=0,
            grid=(n, num_t),
            in_specs=[
                pl.BlockSpec((1, h_pp, w_p, c), lambda b, t: (b, 0, 0, 0)),
                pl.BlockSpec((kh * kw, c, oc_pad), lambda b, t: (0, 0, 0)),
            ],
            out_specs=[
                pl.BlockSpec((1, 1, r, oc_pad), lambda b, t: (b, t, 0, 0)),
                pl.BlockSpec((1, 1, 1, oc_pad), lambda b, t: (b, t, 0, 0)),
                pl.BlockSpec((1, 1, 1, oc_pad), lambda b, t: (b, t, 0, 0)),
            ],
        ),
        compiler_params=pltpu.CompilerParams(
            dimension_semantics=("parallel", "parallel"),
            vmem_limit_bytes=vmem_limit,
        ),
        cost_estimate=pl.CostEstimate(
            flops=2 * n * oh_pad * ow * kh * kw * c * oc_pad,
            transcendentals=0,
            bytes_accessed=(n * h_pp * w_p * c * 2 + kh * kw * c * oc_pad * 2
                            + n * num_t * r * oc_pad * 2),
        ),
    )(x_nhwc, w_taps)

    # ---- BN finalize (tiny, XLA): Chan's parallel combine of per-tile (count, mean, M2) ----
    m_total = float(n * oh * ow)
    counts = (jnp.minimum(oh - jnp.arange(num_t) * t_oh, t_oh) * ow).astype(jnp.float32)
    counts = counts[None, :, None]                                    # (1, T, 1)
    means = tile_mean[:, :, 0, :]                                     # (N, T, OC_pad)
    m2s = tile_m2[:, :, 0, :]
    g_mean = jnp.sum(counts * means, axis=(0, 1)) / m_total           # (OC_pad,)
    g_m2 = jnp.sum(m2s, axis=(0, 1)) + jnp.sum(counts * (means - g_mean) ** 2, axis=(0, 1))
    var = g_m2 / m_total                                              # biased (BN training)
    gamma_p = jnp.pad(gamma.astype(jnp.float32), (0, oc_pad - oc))
    beta_p = jnp.pad(beta.astype(jnp.float32), (0, oc_pad - oc))
    scale = (gamma_p * jax.lax.rsqrt(var + BN_EPS)).reshape(1, oc_pad)
    shift = (beta_p - g_mean * scale[0]).reshape(1, oc_pad)

    kernel2 = functools.partial(_bn_apply_kernel, oc=oc)
    out_flat = pl.pallas_call(
        kernel2,
        out_shape=jax.ShapeDtypeStruct((n, oc, num_t * r), jnp.float32),
        grid_spec=pltpu.PrefetchScalarGridSpec(
            num_scalar_prefetch=0,
            grid=(n, num_t),
            in_specs=[
                pl.BlockSpec((1, 1, r, oc_pad), lambda b, t: (b, t, 0, 0)),
                pl.BlockSpec((1, oc_pad), lambda b, t: (0, 0)),
                pl.BlockSpec((1, oc_pad), lambda b, t: (0, 0)),
            ],
            out_specs=pl.BlockSpec((1, oc, r), lambda b, t: (b, 0, t)),
        ),
        compiler_params=pltpu.CompilerParams(
            dimension_semantics=("parallel", "parallel"),
            vmem_limit_bytes=vmem_limit,
        ),
        cost_estimate=pl.CostEstimate(
            flops=2 * n * num_t * r * oc_pad,
            transcendentals=0,
            bytes_accessed=n * num_t * r * (oc_pad * 2 + oc * 4),
        ),
    )(conv_bf16, scale, shift)

    out = out_flat.reshape(n, oc, oh_pad, ow)
    if oh_pad != oh:
        out = out[:, :, :oh, :]
    return out


def _reference(x, weight, gamma, beta, *, stride, padding, dilation):
    # Mirrors the kernel's numerics: bf16-rounded conv inputs, f32 accumulation,
    # bf16-rounded conv intermediate, f32 BN.
    xq = x.astype(jnp.bfloat16).astype(jnp.float32)
    wq = weight.astype(jnp.bfloat16).astype(jnp.float32)
    conv = jax.lax.conv_general_dilated(
        xq, wq,
        window_strides=(stride, stride),
        padding=((padding, padding), (padding, padding)),
        rhs_dilation=(dilation, dilation),
        dimension_numbers=("NCHW", "OIHW", "NCHW"),
    )
    conv = conv.astype(jnp.bfloat16).astype(jnp.float32)
    mean = jnp.mean(conv, axis=(0, 2, 3), keepdims=True)
    var = jnp.mean((conv - mean) ** 2, axis=(0, 2, 3), keepdims=True)
    g = gamma.reshape(1, -1, 1, 1)
    b = beta.reshape(1, -1, 1, 1)
    return (conv - mean) * jax.lax.rsqrt(var + BN_EPS) * g + b


if __name__ == "__main__":
    # BasicConv2d(in_planes=4, out_planes=8, kernel_size=3, stride=1, padding=1)
    N, C, H, W = 2, 4, 16, 16
    OC, KH, KW = 8, 3, 3
    stride, padding, dilation = 1, 1, 1

    key = jax.random.PRNGKey(0)
    kx, kw_, kg, kb = jax.random.split(key, 4)
    x = jax.random.normal(kx, (N, C, H, W), dtype=jnp.float32)
    weight = jax.random.normal(kw_, (OC, C, KH, KW), dtype=jnp.float32) * 0.1
    gamma = 1.0 + 0.1 * jax.random.normal(kg, (OC,), dtype=jnp.float32)
    beta = 0.1 * jax.random.normal(kb, (OC,), dtype=jnp.float32)

    # t_oh=8 at this toy size exercises the multi-tile path (2 OH tiles per image,
    # lane-dense 8*16=128-wide NCHW output blocks); leave t_oh=None in production
    # (it auto-budgets from pltpu.get_tpu_info()).
    out = basic_conv2d(x, weight, gamma, beta,
                       stride=stride, padding=padding, dilation=dilation, t_oh=8)
    out = jax.block_until_ready(out)

    ref = _reference(x, weight, gamma, beta,
                     stride=stride, padding=padding, dilation=dilation)
    assert out.shape == (N, OC, H, W), out.shape
    err = float(jnp.max(jnp.abs(out - ref)))
    assert jnp.allclose(out, ref, atol=2e-3, rtol=2e-3), err
    print("KERNEL_OK")
</pallas_src>

<mosaic_0001>
module attributes {stable_mosaic.version = 11 : i64} {
  func.func @_conv_stats_kernel(%arg0: i32, %arg1: i32, %arg2: memref<1x18x18x4xbf16, #tpu.memory_space<vmem>>, %arg3: memref<9x4x128xbf16, #tpu.memory_space<vmem>>, %arg4: memref<1x1x128x128xbf16, #tpu.memory_space<vmem>>, %arg5: memref<1x1x1x128xf32, #tpu.memory_space<vmem>>, %arg6: memref<1x1x1x128xf32, #tpu.memory_space<vmem>>) attributes {dimension_semantics = [#tpu.dimension_semantics<parallel>, #tpu.dimension_semantics<parallel>], iteration_bounds = array<i64: 2, 2>, scalar_prefetch = 0 : i64, scratch_operands = 0 : i64, tpu.core_type = #tpu.core_type<tc>, window_params = [{transform_indices = @transform_0, window_bounds = array<i64: 1, 18, 18, 4>}, {pipeline_mode = #tpu.pipeline_mode<synchronous>, transform_indices = @transform_1, window_bounds = array<i64: 9, 4, 128>}, {transform_indices = @transform_2, window_bounds = array<i64: 1, 1, 128, 128>}, {transform_indices = @transform_3, window_bounds = array<i64: 1, 1, 1, 128>}, {transform_indices = @transform_4, window_bounds = array<i64: 1, 1, 1, 128>}]} {
    %c8_i32 = arith.constant 8 : i32
    %0 = arith.muli %arg1, %c8_i32 : i32
    %1 = tpu.assume_multiple %0, 8 : i32
    %cst = arith.constant 0.000000e+00 : f32
    %2 = vector.broadcast %cst : f32 to vector<128x128xf32>
    %c0_i32 = arith.constant 0 : i32
    %3 = arith.addi %1, %c0_i32 : i32
    %c0 = arith.constant 0 : index
    %4 = arith.index_cast %3 : i32 to index
    %c0_0 = arith.constant 0 : index
    %c0_1 = arith.constant 0 : index
    %5 = vector.load %arg2[%c0, %4, %c0_0, %c0_1] : memref<1x18x18x4xbf16, #tpu.memory_space<vmem>>, vector<1x8x16x4xbf16>
    %6 = vector.shape_cast %5 : vector<1x8x16x4xbf16> to vector<8x16x4xbf16>
    %7 = vector.shape_cast %6 : vector<8x16x4xbf16> to vector<128x4xbf16>
    %c0_2 = arith.constant 0 : index
    %c0_3 = arith.constant 0 : index
    %c0_4 = arith.constant 0 : index
    %8 = vector.load %arg3[%c0_2, %c0_3, %c0_4] : memref<9x4x128xbf16, #tpu.memory_space<vmem>>, vector<1x4x128xbf16>
    %9 = vector.shape_cast %8 : vector<1x4x128xbf16> to vector<4x128xbf16>
    %cst_5 = arith.constant dense<0.000000e+00> : vector<128x128xf32>
    %10 = tpu.matmul %7, %9, %cst_5 {dimension_numbers = #tpu.dot_dimension_numbers<[1], [0], [0], [1], [0, 0, 1, 1], [], []>} : vector<128x4xbf16>, vector<4x128xbf16>, vector<128x128xf32> -> vector<128x128xf32>
    %11 = arith.addf %2, %10 : vector<128x128xf32>
    %c0_i32_6 = arith.constant 0 : i32
    %12 = arith.addi %1, %c0_i32_6 : i32
    %c0_7 = arith.constant 0 : index
    %13 = arith.index_cast %12 : i32 to index
    %c1 = arith.constant 1 : index
    %c0_8 = arith.constant 0 : index
    %14 = vector.load %arg2[%c0_7, %13, %c1, %c0_8] : memref<1x18x18x4xbf16, #tpu.memory_space<vmem>>, vector<1x8x16x4xbf16>
    %15 = vector.shape_cast %14 : vector<1x8x16x4xbf16> to vector<8x16x4xbf16>
    %16 = vector.shape_cast %15 : vector<8x16x4xbf16> to vector<128x4xbf16>
    %c1_9 = arith.constant 1 : index
    %c0_10 = arith.constant 0 : index
    %c0_11 = arith.constant 0 : index
    %17 = vector.load %arg3[%c1_9, %c0_10, %c0_11] : memref<9x4x128xbf16, #tpu.memory_space<vmem>>, vector<1x4x128xbf16>
    %18 = vector.shape_cast %17 : vector<1x4x128xbf16> to vector<4x128xbf16>
    %cst_12 = arith.constant dense<0.000000e+00> : vector<128x128xf32>
    %19 = tpu.matmul %16, %18, %cst_12 {dimension_numbers = #tpu.dot_dimension_numbers<[1], [0], [0], [1], [0, 0, 1, 1], [], []>} : vector<128x4xbf16>, vector<4x128xbf16>, vector<128x128xf32> -> vector<128x128xf32>
    %20 = arith.addf %11, %19 : vector<128x128xf32>
    %c0_i32_13 = arith.constant 0 : i32
    %21 = arith.addi %1, %c0_i32_13 : i32
    %c0_14 = arith.constant 0 : index
    %22 = arith.index_cast %21 : i32 to index
    %c2 = arith.constant 2 : index
    %c0_15 = arith.constant 0 : index
    %23 = vector.load %arg2[%c0_14, %22, %c2, %c0_15] : memref<1x18x18x4xbf16, #tpu.memory_space<vmem>>, vector<1x8x16x4xbf16>
    %24 = vector.shape_cast %23 : vector<1x8x16x4xbf16> to vector<8x16x4xbf16>
    %25 = vector.shape_cast %24 : vector<8x16x4xbf16> to vector<128x4xbf16>
    %c2_16 = arith.constant 2 : index
    %c0_17 = arith.constant 0 : index
    %c0_18 = arith.constant 0 : index
    %26 = vector.load %arg3[%c2_16, %c0_17, %c0_18] : memref<9x4x128xbf16, #tpu.memory_space<vmem>>, vector<1x4x128xbf16>
    %27 = vector.shape_cast %26 : vector<1x4x128xbf16> to vector<4x128xbf16>
    %cst_19 = arith.constant dense<0.000000e+00> : vector<128x128xf32>
    %28 = tpu.matmul %25, %27, %cst_19 {dimension_numbers = #tpu.dot_dimension_numbers<[1], [0], [0], [1], [0, 0, 1, 1], [], []>} : vector<128x4xbf16>, vector<4x128xbf16>, vector<128x128xf32> -> vector<128x128xf32>
    %29 = arith.addf %20, %28 : vector<128x128xf32>
    %c1_i32 = arith.constant 1 : i32
    %30 = arith.addi %1, %c1_i32 : i32
    %c0_20 = arith.constant 0 : index
    %31 = arith.index_cast %30 : i32 to index
    %c0_21 = arith.constant 0 : index
    %c0_22 = arith.constant 0 : index
    %32 = vector.load %arg2[%c0_20, %31, %c0_21, %c0_22] : memref<1x18x18x4xbf16, #tpu.memory_space<vmem>>, vector<1x8x16x4xbf16>
    %33 = vector.shape_cast %32 : vector<1x8x16x4xbf16> to vector<8x16x4xbf16>
    %34 = vector.shape_cast %33 : vector<8x16x4xbf16> to vector<128x4xbf16>
    %c3 = arith.constant 3 : index
    %c0_23 = arith.constant 0 : index
    %c0_24 = arith.constant 0 : index
    %35 = vector.load %arg3[%c3, %c0_23, %c0_24] : memref<9x4x128xbf16, #tpu.memory_space<vmem>>, vector<1x4x128xbf16>
    %36 = vector.shape_cast %35 : vector<1x4x128xbf16> to vector<4x128xbf16>
    %cst_25 = arith.constant dense<0.000000e+00> : vector<128x128xf32>
    %37 = tpu.matmul %34, %36, %cst_25 {dimension_numbers = #tpu.dot_dimension_numbers<[1], [0], [0], [1], [0, 0, 1, 1], [], []>} : vector<128x4xbf16>, vector<4x128xbf16>, vector<128x128xf32> -> vector<128x128xf32>
    %38 = arith.addf %29, %37 : vector<128x128xf32>
    %c1_i32_26 = arith.constant 1 : i32
    %39 = arith.addi %1, %c1_i32_26 : i32
    %c0_27 = arith.constant 0 : index
    %40 = arith.index_cast %39 : i32 to index
    %c1_28 = arith.constant 1 : index
    %c0_29 = arith.constant 0 : index
    %41 = vector.load %arg2[%c0_27, %40, %c1_28, %c0_29] : memref<1x18x18x4xbf16, #tpu.memory_space<vmem>>, vector<1x8x16x4xbf16>
    %42 = vector.shape_cast %41 : vector<1x8x16x4xbf16> to vector<8x16x4xbf16>
    %43 = vector.shape_cast %42 : vector<8x16x4xbf16> to vector<128x4xbf16>
    %c4 = arith.constant 4 : index
    %c0_30 = arith.constant 0 : index
    %c0_31 = arith.constant 0 : index
    %44 = vector.load %arg3[%c4, %c0_30, %c0_31] : memref<9x4x128xbf16, #tpu.memory_space<vmem>>, vector<1x4x128xbf16>
    %45 = vector.shape_cast %44 : vector<1x4x128xbf16> to vector<4x128xbf16>
    %cst_32 = arith.constant dense<0.000000e+00> : vector<128x128xf32>
    %46 = tpu.matmul %43, %45, %cst_32 {dimension_numbers = #tpu.dot_dimension_numbers<[1], [0], [0], [1], [0, 0, 1, 1], [], []>} : vector<128x4xbf16>, vector<4x128xbf16>, vector<128x128xf32> -> vector<128x128xf32>
    %47 = arith.addf %38, %46 : vector<128x128xf32>
    %c1_i32_33 = arith.constant 1 : i32
    %48 = arith.addi %1, %c1_i32_33 : i32
    %c0_34 = arith.constant 0 : index
    %49 = arith.index_cast %48 : i32 to index
    %c2_35 = arith.constant 2 : index
    %c0_36 = arith.constant 0 : index
    %50 = vector.load %arg2[%c0_34, %49, %c2_35, %c0_36] : memref<1x18x18x4xbf16, #tpu.memory_space<vmem>>, vector<1x8x16x4xbf16>
    %51 = vector.shape_cast %50 : vector<1x8x16x4xbf16> to vector<8x16x4xbf16>
    %52 = vector.shape_cast %51 : vector<8x16x4xbf16> to vector<128x4xbf16>
    %c5 = arith.constant 5 : index
    %c0_37 = arith.constant 0 : index
    %c0_38 = arith.constant 0 : index
    %53 = vector.load %arg3[%c5, %c0_37, %c0_38] : memref<9x4x128xbf16, #tpu.memory_space<vmem>>, vector<1x4x128xbf16>
    %54 = vector.shape_cast %53 : vector<1x4x128xbf16> to vector<4x128xbf16>
    %cst_39 = arith.constant dense<0.000000e+00> : vector<128x128xf32>
    %55 = tpu.matmul %52, %54, %cst_39 {dimension_numbers = #tpu.dot_dimension_numbers<[1], [0], [0], [1], [0, 0, 1, 1], [], []>} : vector<128x4xbf16>, vector<4x128xbf16>, vector<128x128xf32> -> vector<128x128xf32>
    %56 = arith.addf %47, %55 : vector<128x128xf32>
    %c2_i32 = arith.constant 2 : i32
    %57 = arith.addi %1, %c2_i32 : i32
    %c0_40 = arith.constant 0 : index
    %58 = arith.index_cast %57 : i32 to index
    %c0_41 = arith.constant 0 : index
    %c0_42 = arith.constant 0 : index
    %59 = vector.load %arg2[%c0_40, %58, %c0_41, %c0_42] : memref<1x18x18x4xbf16, #tpu.memory_space<vmem>>, vector<1x8x16x4xbf16>
    %60 = vector.shape_cast %59 : vector<1x8x16x4xbf16> to vector<8x16x4xbf16>
    %61 = vector.shape_cast %60 : vector<8x16x4xbf16> to vector<128x4xbf16>
    %c6 = arith.constant 6 : index
    %c0_43 = arith.constant 0 : index
    %c0_44 = arith.constant 0 : index
    %62 = vector.load %arg3[%c6, %c0_43, %c0_44] : memref<9x4x128xbf16, #tpu.memory_space<vmem>>, vector<1x4x128xbf16>
    %63 = vector.shape_cast %62 : vector<1x4x128xbf16> to vector<4x128xbf16>
    %cst_45 = arith.constant dense<0.000000e+00> : vector<128x128xf32>
    %64 = tpu.matmul %61, %63, %cst_45 {dimension_numbers = #tpu.dot_dimension_numbers<[1], [0], [0], [1], [0, 0, 1, 1], [], []>} : vector<128x4xbf16>, vector<4x128xbf16>, vector<128x128xf32> -> vector<128x128xf32>
    %65 = arith.addf %56, %64 : vector<128x128xf32>
    %c2_i32_46 = arith.constant 2 : i32
    %66 = arith.addi %1, %c2_i32_46 : i32
    %c0_47 = arith.constant 0 : index
    %67 = arith.index_cast %66 : i32 to index
    %c1_48 = arith.constant 1 : index
    %c0_49 = arith.constant 0 : index
    %68 = vector.load %arg2[%c0_47, %67, %c1_48, %c0_49] : memref<1x18x18x4xbf16, #tpu.memory_space<vmem>>, vector<1x8x16x4xbf16>
    %69 = vector.shape_cast %68 : vector<1x8x16x4xbf16> to vector<8x16x4xbf16>
    %70 = vector.shape_cast %69 : vector<8x16x4xbf16> to vector<128x4xbf16>
    %c7 = arith.constant 7 : index
    %c0_50 = arith.constant 0 : index
    %c0_51 = arith.constant 0 : index
    %71 = vector.load %arg3[%c7, %c0_50, %c0_51] : memref<9x4x128xbf16, #tpu.memory_space<vmem>>, vector<1x4x128xbf16>
    %72 = vector.shape_cast %71 : vector<1x4x128xbf16> to vector<4x128xbf16>
    %cst_52 = arith.constant dense<0.000000e+00> : vector<128x128xf32>
    %73 = tpu.matmul %70, %72, %cst_52 {dimension_numbers = #tpu.dot_dimension_numbers<[1], [0], [0], [1], [0, 0, 1, 1], [], []>} : vector<128x4xbf16>, vector<4x128xbf16>, vector<128x128xf32> -> vector<128x128xf32>
    %74 = arith.addf %65, %73 : vector<128x128xf32>
    %c2_i32_53 = arith.constant 2 : i32
    %75 = arith.addi %1, %c2_i32_53 : i32
    %c0_54 = arith.constant 0 : index
    %76 = arith.index_cast %75 : i32 to index
    %c2_55 = arith.constant 2 : index
    %c0_56 = arith.constant 0 : index
    %77 = vector.load %arg2[%c0_54, %76, %c2_55, %c0_56] : memref<1x18x18x4xbf16, #tpu.memory_space<vmem>>, vector<1x8x16x4xbf16>
    %78 = vector.shape_cast %77 : vector<1x8x16x4xbf16> to vector<8x16x4xbf16>
    %79 = vector.shape_cast %78 : vector<8x16x4xbf16> to vector<128x4xbf16>
    %c8 = arith.constant 8 : index
    %c0_57 = arith.constant 0 : index
    %c0_58 = arith.constant 0 : index
    %80 = vector.load %arg3[%c8, %c0_57, %c0_58] : memref<9x4x128xbf16, #tpu.memory_space<vmem>>, vector<1x4x128xbf16>
    %81 = vector.shape_cast %80 : vector<1x4x128xbf16> to vector<4x128xbf16>
    %cst_59 = arith.constant dense<0.000000e+00> : vector<128x128xf32>
    %82 = tpu.matmul %79, %81, %cst_59 {dimension_numbers = #tpu.dot_dimension_numbers<[1], [0], [0], [1], [0, 0, 1, 1], [], []>} : vector<128x4xbf16>, vector<4x128xbf16>, vector<128x128xf32> -> vector<128x128xf32>
    %83 = arith.addf %74, %82 : vector<128x128xf32>
    %84 = arith.truncf %83 : vector<128x128xf32> to vector<128x128xbf16>
    %c0_60 = arith.constant 0 : index
    %c0_61 = arith.constant 0 : index
    %c0_62 = arith.constant 0 : index
    %c0_63 = arith.constant 0 : index
    %85 = vector.load %arg4[%c0_60, %c0_61, %c0_62, %c0_63] : memref<1x1x128x128xbf16, #tpu.memory_space<vmem>>, vector<1x1x128x128xbf16>
    %86 = vector.shape_cast %85 : vector<1x1x128x128xbf16> to vector<128x128xbf16>
    %87 = vector.shape_cast %84 : vector<128x128xbf16> to vector<1x1x128x128xbf16>
    tpu.vector_store %arg4[%c0_60, %c0_61, %c0_62, %c0_63], %87 {strides = array<i32>} : memref<1x1x128x128xbf16, #tpu.memory_space<vmem>>, vector<1x1x128x128xbf16>,
    %c8_i32_64 = arith.constant 8 : i32
    %88 = arith.muli %arg1, %c8_i32_64 : i32
    %c16_i32 = arith.constant 16 : i32
    %89 = arith.subi %c16_i32, %88 : i32
    %c8_i32_65 = arith.constant 8 : i32
    %90 = arith.minsi %89, %c8_i32_65 : i32
    %c16_i32_66 = arith.constant 16 : i32
    %91 = arith.muli %90, %c16_i32_66 : i32
    %92 = arith.sitofp %91 : i32 to f32
    %93 = tpu.iota {dimensions = array<i32: 0>} : vector<128x1xi32>
    %c16_i32_67 = arith.constant 16 : i32
    %94 = arith.muli %90, %c16_i32_67 : i32
    %95 = vector.broadcast %94 : i32 to vector<128x1xi32>
    %96 = arith.cmpi slt, %93, %95 : vector<128x1xi32>
    %cst_68 = arith.constant 0.000000e+00 : f32
    %97 = vector.shape_cast %96 : vector<128x1xi1> to vector<128x1xi1>
    %98 = vector.broadcast %97 : vector<128x1xi1> to vector<128x128xi1>
    %99 = vector.broadcast %cst_68 : f32 to vector<128x128xf32>
    %100 = arith.select %98, %83, %99 : vector<128x128xi1>, vector<128x128xf32>
    %cst_69 = arith.constant dense<0.000000e+00> : vector<128xf32>
    %101 = vector.multi_reduction <add>, %100, %cst_69 [0] : vector<128x128xf32> to vector<128xf32>
    %102 = vector.shape_cast %101 : vector<128xf32> to vector<1x128xf32>
    %103 = vector.broadcast %92 : f32 to vector<1x128xf32>
    %104 = arith.divf %102, %103 : vector<1x128xf32>
    %105 = vector.broadcast %104 : vector<1x128xf32> to vector<128x128xf32>
    %106 = arith.subf %83, %105 : vector<128x128xf32>
    %cst_70 = arith.constant 0.000000e+00 : f32
    %107 = vector.shape_cast %96 : vector<128x1xi1> to vector<128x1xi1>
    %108 = vector.broadcast %107 : vector<128x1xi1> to vector<128x128xi1>
    %109 = vector.broadcast %cst_70 : f32 to vector<128x128xf32>
    %110 = arith.select %108, %106, %109 : vector<128x128xi1>, vector<128x128xf32>
    %c0_71 = arith.constant 0 : index
    %c0_72 = arith.constant 0 : index
    %c0_73 = arith.constant 0 : index
    %c0_74 = arith.constant 0 : index
    %111 = vector.load %arg5[%c0_71, %c0_72, %c0_73, %c0_74] : memref<1x1x1x128xf32, #tpu.memory_space<vmem>>, vector<1x1x1x128xf32>
    %112 = vector.shape_cast %111 : vector<1x1x1x128xf32> to vector<1x128xf32>
    %113 = vector.shape_cast %104 : vector<1x128xf32> to vector<1x1x1x128xf32>
    tpu.vector_store %arg5[%c0_71, %c0_72, %c0_73, %c0_74], %113 {strides = array<i32>} : memref<1x1x1x128xf32, #tpu.memory_space<vmem>>, vector<1x1x1x128xf32>,
    %114 = arith.mulf %110, %110 : vector<128x128xf32>
    %cst_75 = arith.constant dense<0.000000e+00> : vector<128xf32>
    %115 = vector.multi_reduction <add>, %114, %cst_75 [0] : vector<128x128xf32> to vector<128xf32>
    %116 = vector.shape_cast %115 : vector<128xf32> to vector<1x128xf32>
    %c0_76 = arith.constant 0 : index
    %c0_77 = arith.constant 0 : index
    %c0_78 = arith.constant 0 : index
    %c0_79 = arith.constant 0 : index
    %117 = vector.load %arg6[%c0_76, %c0_77, %c0_78, %c0_79] : memref<1x1x1x128xf32, #tpu.memory_space<vmem>>, vector<1x1x1x128xf32>
    %118 = vector.shape_cast %117 : vector<1x1x1x128xf32> to vector<1x128xf32>
    %119 = vector.shape_cast %116 : vector<1x128xf32> to vector<1x1x1x128xf32>
    tpu.vector_store %arg6[%c0_76, %c0_77, %c0_78, %c0_79], %119 {strides = array<i32>} : memref<1x1x1x128xf32, #tpu.memory_space<vmem>>, vector<1x1x1x128xf32>,
    return
  }
  func.func @transform_0(%arg0: i32, %arg1: i32) -> (i32, i32, i32, i32) {
    %c0_i32 = arith.constant 0 : i32
    %c0_i32_0 = arith.constant 0 : i32
    %c0_i32_1 = arith.constant 0 : i32
    %c0_i32_2 = arith.constant 0 : i32
    return %arg0, %c0_i32, %c0_i32_0, %c0_i32_1 : i32, i32, i32, i32
  }
  func.func @transform_1(%arg0: i32, %arg1: i32) -> (i32, i32, i32) {
    %c0_i32 = arith.constant 0 : i32
    %c0_i32_0 = arith.constant 0 : i32
    %c0_i32_1 = arith.constant 0 : i32
    %c0_i32_2 = arith.constant 0 : i32
    return %c0_i32, %c0_i32_0, %c0_i32_1 : i32, i32, i32
  }
  func.func @transform_2(%arg0: i32, %arg1: i32) -> (i32, i32, i32, i32) {
    %c0_i32 = arith.constant 0 : i32
    %c0_i32_0 = arith.constant 0 : i32
    %c0_i32_1 = arith.constant 0 : i32
    return %arg0, %arg1, %c0_i32, %c0_i32_0 : i32, i32, i32, i32
  }
  func.func @transform_3(%arg0: i32, %arg1: i32) -> (i32, i32, i32, i32) {
    %c0_i32 = arith.constant 0 : i32
    %c0_i32_0 = arith.constant 0 : i32
    %c0_i32_1 = arith.constant 0 : i32
    return %arg0, %arg1, %c0_i32, %c0_i32_0 : i32, i32, i32, i32
  }
  func.func @transform_4(%arg0: i32, %arg1: i32) -> (i32, i32, i32, i32) {
    %c0_i32 = arith.constant 0 : i32
    %c0_i32_0 = arith.constant 0 : i32
    %c0_i32_1 = arith.constant 0 : i32
    return %arg0, %arg1, %c0_i32, %c0_i32_0 : i32, i32, i32, i32
  }
}

module attributes {stable_mosaic.version = 11 : i64} {
  func.func @_bn_apply_kernel(%arg0: i32, %arg1: i32, %arg2: memref<1x1x128x128xbf16, #tpu.memory_space<vmem>>, %arg3: memref<1x128xf32, #tpu.memory_space<vmem>>, %arg4: memref<1x128xf32, #tpu.memory_space<vmem>>, %arg5: memref<1x8x128xf32, #tpu.memory_space<vmem>>) attributes {dimension_semantics = [#tpu.dimension_semantics<parallel>, #tpu.dimension_semantics<parallel>], iteration_bounds = array<i64: 2, 2>, scalar_prefetch = 0 : i64, scratch_operands = 0 : i64, tpu.core_type = #tpu.core_type<tc>, window_params = [{transform_indices = @transform_0, window_bounds = array<i64: 1, 1, 128, 128>}, {pipeline_mode = #tpu.pipeline_mode<synchronous>, transform_indices = @transform_1, window_bounds = array<i64: 1, 128>}, {pipeline_mode = #tpu.pipeline_mode<synchronous>, transform_indices = @transform_2, window_bounds = array<i64: 1, 128>}, {transform_indices = @transform_3, window_bounds = array<i64: 1, 8, 128>}]} {
    %c0 = arith.constant 0 : index
    %c0_0 = arith.constant 0 : index
    %c0_1 = arith.constant 0 : index
    %c0_2 = arith.constant 0 : index
    %0 = vector.load %arg2[%c0, %c0_0, %c0_1, %c0_2] : memref<1x1x128x128xbf16, #tpu.memory_space<vmem>>, vector<1x1x128x128xbf16>
    %1 = vector.shape_cast %0 : vector<1x1x128x128xbf16> to vector<128x128xbf16>
    %2 = arith.extf %1 : vector<128x128xbf16> to vector<128x128xf32>
    %c0_3 = arith.constant 0 : index
    %c0_4 = arith.constant 0 : index
    %3 = vector.load %arg3[%c0_3, %c0_4] : memref<1x128xf32, #tpu.memory_space<vmem>>, vector<1x128xf32>
    %4 = vector.broadcast %3 : vector<1x128xf32> to vector<128x128xf32>
    %5 = arith.mulf %2, %4 : vector<128x128xf32>
    %c0_5 = arith.constant 0 : index
    %c0_6 = arith.constant 0 : index
    %6 = vector.load %arg4[%c0_5, %c0_6] : memref<1x128xf32, #tpu.memory_space<vmem>>, vector<1x128xf32>
    %7 = vector.broadcast %6 : vector<1x128xf32> to vector<128x128xf32>
    %8 = arith.addf %5, %7 : vector<128x128xf32>
    %9 = tpu.transpose %8, [1, 0] : vector<128x128xf32> -> vector<128x128xf32>
    %10 = vector.extract_strided_slice %9 {offsets = [0, 0], sizes = [8, 128], strides = [1, 1]} : vector<128x128xf32> to vector<8x128xf32>
    %c0_7 = arith.constant 0 : index
    %c0_8 = arith.constant 0 : index
    %c0_9 = arith.constant 0 : index
    %11 = vector.load %arg5[%c0_7, %c0_8, %c0_9] : memref<1x8x128xf32, #tpu.memory_space<vmem>>, vector<1x8x128xf32>
    %12 = vector.shape_cast %11 : vector<1x8x128xf32> to vector<8x128xf32>
    %13 = vector.shape_cast %10 : vector<8x128xf32> to vector<1x8x128xf32>
    tpu.vector_store %arg5[%c0_7, %c0_8, %c0_9], %13 {strides = array<i32>} : memref<1x8x128xf32, #tpu.memory_space<vmem>>, vector<1x8x128xf32>,
    return
  }
  func.func @transform_0(%arg0: i32, %arg1: i32) -> (i32, i32, i32, i32) {
    %c0_i32 = arith.constant 0 : i32
    %c0_i32_0 = arith.constant 0 : i32
    %c0_i32_1 = arith.constant 0 : i32
    return %arg0, %arg1, %c0_i32, %c0_i32_0 : i32, i32, i32, i32
  }
  func.func @transform_1(%arg0: i32, %arg1: i32) -> (i32, i32) {
    %c0_i32 = arith.constant 0 : i32
    %c0_i32_0 = arith.constant 0 : i32
    %c0_i32_1 = arith.constant 0 : i32
    return %c0_i32, %c0_i32_0 : i32, i32
  }
  func.func @transform_2(%arg0: i32, %arg1: i32) -> (i32, i32) {
    %c0_i32 = arith.constant 0 : i32
    %c0_i32_0 = arith.constant 0 : i32
    %c0_i32_1 = arith.constant 0 : i32
    return %c0_i32, %c0_i32_0 : i32, i32
  }
  func.func @transform_3(%arg0: i32, %arg1: i32) -> (i32, i32, i32) {
    %c0_i32 = arith.constant 0 : i32
    %c0_i32_0 = arith.constant 0 : i32
    return %arg0, %c0_i32, %arg1 : i32, i32, i32
  }
}

</mosaic_0001>

<llo_original>
// kernel: basic_conv2d.3
$region0: #{basic_conv2d.3}
  #allocation0 [shape = 'u32[]', space=smem, size = 0x4, offset = 0x4, fixed_abs, tag = 'smem constant byte address 0x4 - core index']
  #allocation1 [shape = 'u32[144,128]{1,0:T(1,128)}', space=vmem, size = 0x12000, scoped, tag = 'internal scratch']
  %s0 = inlined_call_operand.vmem [shape: bf16[2,2,128,128], index: 0, kind: input, shape index: {}]
  %s1 = inlined_call_operand.vmem [shape: f32[1,128], index: 1, kind: input, shape index: {}]
  %s2 = inlined_call_operand.vmem [shape: f32[1,128], index: 2, kind: input, shape index: {}]
  %s3 = inlined_call_operand.vmem [shape: f32[2,8,256], index: 3, kind: output, shape index: {}]
  %s4 = sld [smem:[#allocation0]]
  $region45: #{basic_conv2d.3} parent=0
    _
  %s6 = ssub.s32 1, %s4
  %s7 = scalar_select 0, %s6, %s4
  loop: start=0, step=1, limit=6
  $region2: #{basic_conv2d.3} parent=0 // loop_pre_header
    _
  $region3: #{basic_conv2d.3} parent=0 // loop_header
    %s9 = sphi 0, %s13
    %p10 = scmp.ge.s32.totalorder %s9, 6
    %s16 = sphi 0, %s28
    %s17 = sphi 0, %s24
    %s18 = sphi 0, %s16
    %s19 = sphi 0, %s17
    %s20 = sphi 0, %s18
    %s21 = sphi 0, %s19
    %s33 = sphi 0, %s35
    %s36 = sphi 0, %s33
    %s37 = sphi 0, %s36
    %s53 = sphi 0, %s37
    %s57 = sphi 0, %s57
    %s59 = sphi 0, %s57
    %s60 = sphi 0, %s59
    %s74 = sphi 0, %s60
    %s78 = sphi 0, %s78
    %s80 = sphi 0, %s78
    %s81 = sphi 0, %s80
    %s95 = sphi 0, %s81
    %s103 = sphi 0, %s105
    %s106 = sphi 0, %s103
    %s107 = sphi 0, %s106
    %s123 = sphi 0, %s107
  $region4: #{basic_conv2d.3} parent=0 // loop_header_branch
    %12 = sbr.rel (%p10) target = $region8
  $region5: #{basic_conv2d.3} parent=0 // loop_body
    %s14 = ssub.s32 %s9, 1
    %s15 = ssub.s32 %s9, 2
    %s22 = sadd.s32 1, %s17
    %p23 = scmp.ge.s32.totalorder %s22, 2
    %s24 = scalar_select %p23, 0, %s22
    %s25 = sadd.s32 1, %s16
    %s26 = scalar_select %p23, %s25, %s16
    %p27 = scmp.ge.s32.totalorder %s26, 2
    %s28 = scalar_select %p27, 0, %s26
    %s29 = ssub.s32 %s16, %s28
    %s30 = ssub.s32 %s17, %s24
    %s31 = sor.u32 %s29, %s30
    %p32 = scmp.eq.s32.totalorder %s31, 0
    %s34 = sadd.s32 %s33, 1
    %s35 = scalar_select %p32, %s33, %s34
    %p38 = pneg %p32
    %p39 = scmp.eq.s32.totalorder %s9, 3
    %p40 = por %p38, %p39
    %p41 = scmp.ne.s32.totalorder %s33, %s36
    %p42 = scmp.eq.s32.totalorder %s9, 0
    %p43 = por %p41, %p42
    %p44 = scmp.ne.s32.totalorder %s33, %s36
    %p45 = scmp.eq.s32.totalorder %s14, 3
    %p46 = por %p44, %p45
    %p47 = scmp.ne.s32.totalorder %s36, %s37
    %p48 = scmp.eq.s32.totalorder %s14, 0
    %p49 = por %p47, %p48
    %p50 = scmp.ne.s32.totalorder %s36, %s37
    %p51 = scmp.eq.s32.totalorder %s15, 3
    %p52 = por %p50, %p51
    %p54 = scmp.ne.s32.totalorder %s37, %s53
    %p55 = scmp.eq.s32.totalorder %s15, 0
    %p56 = por %p54, %p55
    %s58 = sadd.s32 %s57, 1
    %p61 = scmp.eq.s32.totalorder %s9, 3
    %p62 = scmp.ne.s32.totalorder %s57, %s59
    %p63 = scmp.eq.s32.totalorder %s9, 0
    %p64 = por %p62, %p63
    %p65 = scmp.ne.s32.totalorder %s57, %s59
    %p66 = scmp.eq.s32.totalorder %s14, 3
    %p67 = por %p65, %p66
    %p68 = scmp.ne.s32.totalorder %s59, %s60
    %p69 = scmp.eq.s32.totalorder %s14, 0
    %p70 = por %p68, %p69
    %p71 = scmp.ne.s32.totalorder %s59, %s60
    %p72 = scmp.eq.s32.totalorder %s15, 3
    %p73 = por %p71, %p72
    %p75 = scmp.ne.s32.totalorder %s60, %s74
    %p76 = scmp.eq.s32.totalorder %s15, 0
    %p77 = por %p75, %p76
    %s79 = sadd.s32 %s78, 1
    %p82 = scmp.eq.s32.totalorder %s9, 3
    %p83 = scmp.ne.s32.totalorder %s78, %s80
    %p84 = scmp.eq.s32.totalorder %s9, 0
    %p85 = por %p83, %p84
    %p86 = scmp.ne.s32.totalorder %s78, %s80
    %p87 = scmp.eq.s32.totalorder %s14, 3
    %p88 = por %p86, %p87
    %p89 = scmp.ne.s32.totalorder %s80, %s81
    %p90 = scmp.eq.s32.totalorder %s14, 0
    %p91 = por %p89, %p90
    %p92 = scmp.ne.s32.totalorder %s80, %s81
    %p93 = scmp.eq.s32.totalorder %s15, 3
    %p94 = por %p92, %p93
    %p96 = scmp.ne.s32.totalorder %s81, %s95
    %p97 = scmp.eq.s32.totalorder %s15, 0
    %p98 = por %p96, %p97
    %s99 = ssub.s32 %s16, %s28
    %s100 = ssub.s32 %s17, %s24
    %s101 = sor.u32 %s99, %s100
    %p102 = scmp.eq.s32.totalorder %s101, 0
    %s104 = sadd.s32 %s103, 1
    %s105 = scalar_select %p102, %s103, %s104
    %p108 = pneg %p102
    %p109 = scmp.eq.s32.totalorder %s9, 3
    %p110 = por %p108, %p109
    %p111 = scmp.ne.s32.totalorder %s103, %s106
    %p112 = scmp.eq.s32.totalorder %s9, 0
    %p113 = por %p111, %p112
    %p114 = scmp.ne.s32.totalorder %s103, %s106
    %p115 = scmp.eq.s32.totalorder %s14, 3
    %p116 = por %p114, %p115
    %p117 = scmp.ne.s32.totalorder %s106, %s107
    %p118 = scmp.eq.s32.totalorder %s14, 0
    %p119 = por %p117, %p118
    %p120 = scmp.ne.s32.totalorder %s106, %s107
    %p121 = scmp.eq.s32.totalorder %s15, 3
    %p122 = por %p120, %p121
    %p124 = scmp.ne.s32.totalorder %s107, %s123
    %p125 = scmp.eq.s32.totalorder %s15, 0
    %p126 = por %p124, %p125
    %p127 = scmp.le.s32.totalorder 1, %s9
    %p128 = scmp.lt.s32.totalorder %s9, 5
    %p129 = pnand %p127, %p128
    %p130 = pneg %p129
    // Predicated region
    $region9: #{basic_conv2d.3} parent=5 // pred_check
      _
    $region10: #{basic_conv2d.3} parent=5 // pred_check_branch
      %132 = sbr.rel (%p129) target = $region12
    $region11: #{basic_conv2d.3} parent=5 // pred_region
      %s133 = ssub.s32 %s9, 1
      // Predicated region
      $region13: #{basic_conv2d.3} parent=11 // pred_check
        %p134 = pneg %p70
      $region14: #{basic_conv2d.3} parent=11 // pred_check_branch
        %136 = sbr.rel (%p134) target = $region16
      $region15: #{basic_conv2d.3} parent=11 // pred_region
        _
      $region16: #{basic_conv2d.3} parent=11 // pred_fallthru
        _
      // Predicated region
      $region17: #{basic_conv2d.3} parent=11 // pred_check
        %p137 = pneg %p91
      $region18: #{basic_conv2d.3} parent=11 // pred_check_branch
        %139 = sbr.rel (%p137) target = $region20
      $region19: #{basic_conv2d.3} parent=11 // pred_region
        _
      $region20: #{basic_conv2d.3} parent=11 // pred_fallthru
        _
    $region12: #{basic_conv2d.3} parent=5 // pred_fallthru
      _
    %p140 = scmp.lt.s32.totalorder %s9, 4
    // Predicated region
    $region21: #{basic_conv2d.3} parent=5 // pred_check
      %p141 = pneg %p140
    $region22: #{basic_conv2d.3} parent=5 // pred_check_branch
      %143 = sbr.rel (%p141) target = $region24
    $region23: #{basic_conv2d.3} parent=5 // pred_region
      // Predicated region
      $region25: #{basic_conv2d.3} parent=23 // pred_check
        %p144 = pneg %p43
      $region26: #{basic_conv2d.3} parent=23 // pred_check_branch
        %146 = sbr.rel (%p144) target = $region28
      $region27: #{basic_conv2d.3} parent=23 // pred_region
        %p147 = scmp.lt.s32.totalorder %s16, 1
        %s148 = scalar_select %p147, %s16, 1
        %p149 = scmp.lt.s32.totalorder %s17, 1
        %s150 = scalar_select %p149, %s17, 1
        %s151 = smul.addr %s150, 16
        %s152 = smul.addr %s148, 32
        %s153 = sadd.s32 %s151, %s152
        %s154 = smul.addr %s153, 4
        %s155 = scalar_lea.vmem %s0, %s154
      $region28: #{basic_conv2d.3} parent=23 // pred_fallthru
        _
    $region24: #{basic_conv2d.3} parent=5 // pred_fallthru
      _
    %p156 = scmp.le.s32.totalorder 1, %s9
    %p157 = scmp.lt.s32.totalorder %s9, 5
    %p158 = pnand %p156, %p157
    %p159 = pneg %p158
    // Predicated region
    $region29: #{basic_conv2d.3} parent=5 // pred_check
      _
    $region30: #{basic_conv2d.3} parent=5 // pred_check_branch
      %161 = sbr.rel (%p158) target = $region32
    $region31: #{basic_conv2d.3} parent=5 // pred_region
      %s162 = ssub.s32 %s9, 1
      %p163 = scmp.lt.s32.totalorder %s18, 1
      %s164 = scalar_select %p163, %s18, 1
      %p165 = scmp.lt.s32.totalorder %s19, 1
      %s166 = scalar_select %p165, %s19, 1
      %s167 = smul.addr %s166, 16
      %s168 = smul.addr %s164, 32
      %s169 = sadd.s32 %s167, %s168
      %s170 = smul.addr %s169, 4
      %s171 = scalar_lea.vmem %s0, %s170
      %p172 = pneg %p49
      %p173 = pneg %p46
      %p174 = pneg %p70
      %p175 = pneg %p67
      %p176 = pneg %p91
      %p177 = pneg %p88
      %p178 = pneg %p119
      %p179 = pneg %p116
      %p180 = scmp.lt.s32.totalorder %s18, 1
      %s181 = scalar_select %p180, %s18, 1
      %p182 = scmp.lt.s32.totalorder %s19, 1
      %s183 = scalar_select %p182, %s19, 1
      %s184 = smul.addr %s181, 2
      %s185 = sadd.s32 %s183, %s184
      %s186 = smul.addr %s185, 8
      %s187 = scalar_lea.vmem %s3, %s186
      %p188 = scmp.lt.s32.totalorder %s18, 1
      %s189 = scalar_select %p188, %s18, 1
      %p190 = scmp.lt.s32.totalorder %s19, 1
      %s191 = scalar_select %p190, %s19, 1
      %s192 = smul.addr %s191, 16
      %s193 = smul.addr %s189, 32
      %s194 = sadd.s32 %s192, %s193
      %s195 = smul.addr %s194, 4
      %s196 = scalar_lea.vmem %s0, %s195
      %p197 = scmp.lt.s32.totalorder %s18, 1
      %s198 = scalar_select %p197, %s18, 1
      %p199 = scmp.lt.s32.totalorder %s19, 1
      %s200 = scalar_select %p199, %s19, 1
      %s201 = smul.addr %s198, 2
      %s202 = sadd.s32 %s200, %s201
      %s203 = smul.addr %s202, 8
      %s204 = scalar_lea.vmem %s3, %s203
      %v205 = vld [vmem:[%s196] sm:$0xf]
      %v206 = vld [vmem:[%s196 + $0x4] sm:$0xf]
      %v207 = vld [vmem:[%s196 + $0x8] sm:$0xf]
      %v208 = vld [vmem:[%s196 + $0xc] sm:$0xf]
      %v209 = vld [vmem:[%s196 + $0x10] sm:$0xf]
      %v210 = vld [vmem:[%s196 + $0x14] sm:$0xf]
      %v211 = vld [vmem:[%s196 + $0x18] sm:$0xf]
      %v212 = vld [vmem:[%s196 + $0x1c] sm:$0xf]
      %v213 = vld [vmem:[%s196 + $0x20] sm:$0xf]
      %v214 = vld [vmem:[%s196 + $0x24] sm:$0xf]
      %v215 = vld [vmem:[%s196 + $0x28] sm:$0xf]
      %v216 = vld [vmem:[%s196 + $0x2c] sm:$0xf]
      %v217 = vld [vmem:[%s196 + $0x30] sm:$0xf]
      %v218 = vld [vmem:[%s196 + $0x34] sm:$0xf]
      %v219 = vld [vmem:[%s196 + $0x38] sm:$0xf]
      %v220 = vld [vmem:[%s196 + $0x3c] sm:$0xf]
      %v221 = vunpack.c.l.bf16 %v205
      %v222 = vunpack.c.l.bf16 %v206
      %v223 = vunpack.c.l.bf16 %v207
      %v224 = vunpack.c.l.bf16 %v208
      %v225 = vunpack.c.l.bf16 %v209
      %v226 = vunpack.c.l.bf16 %v210
      %v227 = vunpack.c.l.bf16 %v211
      %v228 = vunpack.c.l.bf16 %v212
      %v229 = vunpack.c.l.bf16 %v213
      %v230 = vunpack.c.l.bf16 %v214
      %v231 = vunpack.c.l.bf16 %v215
      %v232 = vunpack.c.l.bf16 %v216
      %v233 = vunpack.c.l.bf16 %v217
      %v234 = vunpack.c.l.bf16 %v218
      %v235 = vunpack.c.l.bf16 %v219
      %v236 = vunpack.c.l.bf16 %v220
      %v237 = vld [vmem:[%s1] sm:$0x1]
      %v239 = vlaneseq
      %v240 = vshrl.u32 %v239, 7
      %v241 = vsub.s32 0, %v240
      %v242 = vrot.slane %v237, %v241
      %v244 = vmul.f32 %v221, %v242
      %v245 = vmul.f32 %v222, %v242
      %v246 = vmul.f32 %v223, %v242
      %v247 = vmul.f32 %v224, %v242
      %v248 = vmul.f32 %v225, %v242
      %v249 = vmul.f32 %v226, %v242
      %v250 = vmul.f32 %v227, %v242
      %v251 = vmul.f32 %v228, %v242
      %v252 = vmul.f32 %v229, %v242
      %v253 = vmul.f32 %v230, %v242
      %v254 = vmul.f32 %v231, %v242
      %v255 = vmul.f32 %v232, %v242
      %v256 = vmul.f32 %v233, %v242
      %v257 = vmul.f32 %v234, %v242
      %v258 = vmul.f32 %v235, %v242
      %v259 = vmul.f32 %v236, %v242
      %v260 = vld [vmem:[%s2] sm:$0x1]
      %v262 = vlaneseq
      %v263 = vshrl.u32 %v262, 7
      %v264 = vsub.s32 0, %v263
      %v265 = vrot.slane %v260, %v264
      %v267 = vadd.f32 %v244, %v265
      %v268 = vadd.f32 %v245, %v265
      %v269 = vadd.f32 %v246, %v265
      %v270 = vadd.f32 %v247, %v265
      %v271 = vadd.f32 %v248, %v265
      %v272 = vadd.f32 %v249, %v265
      %v273 = vadd.f32 %v250, %v265
      %v274 = vadd.f32 %v251, %v265
      %v275 = vadd.f32 %v252, %v265
      %v276 = vadd.f32 %v253, %v265
      %v277 = vadd.f32 %v254, %v265
      %v278 = vadd.f32 %v255, %v265
      %v279 = vadd.f32 %v256, %v265
      %v280 = vadd.f32 %v257, %v265
      %v281 = vadd.f32 %v258, %v265
      %v282 = vadd.f32 %v259, %v265
      %283 = vxpose.xlu0.b32.start [1/16] %v267, 128
      %284 = vxpose.xlu0.b32.cont [2/16] %v268, 128
      %285 = vxpose.xlu0.b32.cont [3/16] %v269, 128
      %286 = vxpose.xlu0.b32.cont [4/16] %v270, 128
      %287 = vxpose.xlu0.b32.cont [5/16] %v271, 128
      %288 = vxpose.xlu0.b32.cont [6/16] %v272, 128
      %289 = vxpose.xlu0.b32.cont [7/16] %v273, 128
      %290 = vxpose.xlu0.b32.cont [8/16] %v274, 128
      %291 = vxpose.xlu0.b32.cont [9/16] %v275, 128
      %292 = vxpose.xlu0.b32.cont [10/16] %v276, 128
      %293 = vxpose.xlu0.b32.cont [11/16] %v277, 128
      %294 = vxpose.xlu0.b32.cont [12/16] %v278, 128
      %295 = vxpose.xlu0.b32.cont [13/16] %v279, 128
      %296 = vxpose.xlu0.b32.cont [14/16] %v280, 128
      %297 = vxpose.xlu0.b32.cont [15/16] %v281, 128
      %298 = vxpose.xlu0.b32.end [16/16] %v282, 128
      %v299 = vpop.trf.xlu0
      %v300 = vpop.trf.xlu0
      %v301 = vpop.trf.xlu0
      %v302 = vpop.trf.xlu0
      %v303 = vpop.trf.xlu0
      %v304 = vpop.trf.xlu0
      %v305 = vpop.trf.xlu0
      %v306 = vpop.trf.xlu0
      %v307 = vpop.trf.xlu0
      %v308 = vpop.trf.xlu0
      %v309 = vpop.trf.xlu0
      %v310 = vpop.trf.xlu0
      %v311 = vpop.trf.xlu0
      %v312 = vpop.trf.xlu0
      %v313 = vpop.trf.xlu0
      %v314 = vpop.trf.xlu0
      %315 = vst [vmem:[%s204] sm:$0xff] %v299
      %p316 = scmp.lt.s32.totalorder %s18, 1
      %s317 = scalar_select %p316, %s18, 1
      %p318 = scmp.lt.s32.totalorder %s19, 1
      %s319 = scalar_select %p318, %s19, 1
      %s320 = smul.addr %s317, 2
      %s321 = sadd.s32 %s319, %s320
      %s322 = smul.addr %s321, 8
      %s323 = scalar_lea.vmem %s3, %s322
      // Predicated region
      $region33: #{basic_conv2d.3} parent=31 // pred_check
        %p324 = pneg %p116
      $region34: #{basic_conv2d.3} parent=31 // pred_check_branch
        %326 = sbr.rel (%p324) target = $region36
      $region35: #{basic_conv2d.3} parent=31 // pred_region
        _
      $region36: #{basic_conv2d.3} parent=31 // pred_fallthru
        _
    $region32: #{basic_conv2d.3} parent=5 // pred_fallthru
      _
    %p327 = scmp.le.s32.totalorder 2, %s9
    // Predicated region
    $region37: #{basic_conv2d.3} parent=5 // pred_check
      %p328 = pneg %p327
    $region38: #{basic_conv2d.3} parent=5 // pred_check_branch
      %330 = sbr.rel (%p328) target = $region40
    $region39: #{basic_conv2d.3} parent=5 // pred_region
      %s331 = ssub.s32 %s9, 2
      // Predicated region
      $region41: #{basic_conv2d.3} parent=39 // pred_check
        %p332 = pneg %p122
      $region42: #{basic_conv2d.3} parent=39 // pred_check_branch
        %334 = sbr.rel (%p332) target = $region44
      $region43: #{basic_conv2d.3} parent=39 // pred_region
        %p335 = scmp.lt.s32.totalorder %s20, 1
        %s336 = scalar_select %p335, %s20, 1
        %p337 = scmp.lt.s32.totalorder %s21, 1
        %s338 = scalar_select %p337, %s21, 1
        %s339 = smul.addr %s336, 2
        %s340 = sadd.s32 %s338, %s339
        %s341 = smul.addr %s340, 8
        %s342 = scalar_lea.vmem %s3, %s341
      $region44: #{basic_conv2d.3} parent=39 // pred_fallthru
        _
    $region40: #{basic_conv2d.3} parent=5 // pred_fallthru
      _
  $region6: #{basic_conv2d.3} parent=0 // loop_footer
    %s13 = sadd.s32 1, %s9
  $region7: #{basic_conv2d.3} parent=0 // loop_footer_branch
    %8 = sbr.rel target = $region3
  $region8: #{basic_conv2d.3} parent=0 // loop_exit
    _

// kernel: basic_conv2d.2
$region0: #{basic_conv2d.2}
  #allocation0 [shape = 'u32[]', space=smem, size = 0x4, offset = 0x4, fixed_abs, tag = 'smem constant byte address 0x4 - core index']
  #allocation1 [shape = 'u32[144,128]{1,0:T(1,128)}', space=vmem, size = 0x12000, scoped, tag = 'internal scratch']
  %s0 = inlined_call_operand.vmem [shape: bf16[2,18,18,4], index: 0, kind: input, shape index: {}]
  %s1 = inlined_call_operand.vmem [shape: bf16[9,4,128], index: 1, kind: input, shape index: {}]
  %s2 = inlined_call_operand.vmem [shape: bf16[2,2,128,128], index: 2, kind: output, shape index: {0}]
  %s3 = inlined_call_operand.vmem [shape: f32[2,2,1,128], index: 3, kind: output, shape index: {1}]
  %s4 = inlined_call_operand.vmem [shape: f32[2,2,1,128], index: 4, kind: output, shape index: {2}]
  %5 = xla_tuple %s2, %s3, %s4
  %s6 = sld [smem:[#allocation0]]
  $region57: #{basic_conv2d.2} parent=0
    _
  %s8 = ssub.s32 1, %s6
  %s9 = scalar_select 0, %s8, %s6
  loop: start=0, step=1, limit=6
  $region2: #{basic_conv2d.2} parent=0 // loop_pre_header
    _
  $region3: #{basic_conv2d.2} parent=0 // loop_header
    %s11 = sphi 0, %s15
    %p12 = scmp.ge.s32.totalorder %s11, 6
    %s18 = sphi 0, %s30
    %s19 = sphi 0, %s26
    %s20 = sphi 0, %s18
    %s21 = sphi 0, %s19
    %s22 = sphi 0, %s20
    %s23 = sphi 0, %s21
    %s33 = sphi 0, %s35
    %s36 = sphi 0, %s33
    %s37 = sphi 0, %s36
    %s53 = sphi 0, %s37
    %s57 = sphi 0, %s57
    %s59 = sphi 0, %s57
    %s60 = sphi 0, %s59
    %s74 = sphi 0, %s60
    %s82 = sphi 0, %s84
    %s85 = sphi 0, %s82
    %s86 = sphi 0, %s85
    %s102 = sphi 0, %s86
    %s110 = sphi 0, %s112
    %s113 = sphi 0, %s110
    %s114 = sphi 0, %s113
    %s130 = sphi 0, %s114
    %s138 = sphi 0, %s140
    %s141 = sphi 0, %s138
    %s142 = sphi 0, %s141
    %s158 = sphi 0, %s142
  $region4: #{basic_conv2d.2} parent=0 // loop_header_branch
    %14 = sbr.rel (%p12) target = $region8
  $region5: #{basic_conv2d.2} parent=0 // loop_body
    %s16 = ssub.s32 %s11, 1
    %s17 = ssub.s32 %s11, 2
    %s24 = sadd.s32 1, %s19
    %p25 = scmp.ge.s32.totalorder %s24, 2
    %s26 = scalar_select %p25, 0, %s24
    %s27 = sadd.s32 1, %s18
    %s28 = scalar_select %p25, %s27, %s18
    %p29 = scmp.ge.s32.totalorder %s28, 2
    %s30 = scalar_select %p29, 0, %s28
    %s31 = ssub.s32 %s18, %s30
    %p32 = scmp.eq.s32.totalorder %s31, 0
    %s34 = sadd.s32 %s33, 1
    %s35 = scalar_select %p32, %s33, %s34
    %p38 = pneg %p32
    %p39 = scmp.eq.s32.totalorder %s11, 3
    %p40 = por %p38, %p39
    %p41 = scmp.ne.s32.totalorder %s33, %s36
    %p42 = scmp.eq.s32.totalorder %s11, 0
    %p43 = por %p41, %p42
    %p44 = scmp.ne.s32.totalorder %s33, %s36
    %p45 = scmp.eq.s32.totalorder %s16, 3
    %p46 = por %p44, %p45
    %p47 = scmp.ne.s32.totalorder %s36, %s37
    %p48 = scmp.eq.s32.totalorder %s16, 0
    %p49 = por %p47, %p48
    %p50 = scmp.ne.s32.totalorder %s36, %s37
    %p51 = scmp.eq.s32.totalorder %s17, 3
    %p52 = por %p50, %p51
    %p54 = scmp.ne.s32.totalorder %s37, %s53
    %p55 = scmp.eq.s32.totalorder %s17, 0
    %p56 = por %p54, %p55
    %s58 = sadd.s32 %s57, 1
    %p61 = scmp.eq.s32.totalorder %s11, 3
    %p62 = scmp.ne.s32.totalorder %s57, %s59
    %p63 = scmp.eq.s32.totalorder %s11, 0
    %p64 = por %p62, %p63
    %p65 = scmp.ne.s32.totalorder %s57, %s59
    %p66 = scmp.eq.s32.totalorder %s16, 3
    %p67 = por %p65, %p66
    %p68 = scmp.ne.s32.totalorder %s59, %s60
    %p69 = scmp.eq.s32.totalorder %s16, 0
    %p70 = por %p68, %p69
    %p71 = scmp.ne.s32.totalorder %s59, %s60
    %p72 = scmp.eq.s32.totalorder %s17, 3
    %p73 = por %p71, %p72
    %p75 = scmp.ne.s32.totalorder %s60, %s74
    %p76 = scmp.eq.s32.totalorder %s17, 0
    %p77 = por %p75, %p76
    %s78 = ssub.s32 %s18, %s30
    %s79 = ssub.s32 %s19, %s26
    %s80 = sor.u32 %s78, %s79
    %p81 = scmp.eq.s32.totalorder %s80, 0
    %s83 = sadd.s32 %s82, 1
    %s84 = scalar_select %p81, %s82, %s83
    %p87 = pneg %p81
    %p88 = scmp.eq.s32.totalorder %s11, 3
    %p89 = por %p87, %p88
    %p90 = scmp.ne.s32.totalorder %s82, %s85
    %p91 = scmp.eq.s32.totalorder %s11, 0
    %p92 = por %p90, %p91
    %p93 = scmp.ne.s32.totalorder %s82, %s85
    %p94 = scmp.eq.s32.totalorder %s16, 3
    %p95 = por %p93, %p94
    %p96 = scmp.ne.s32.totalorder %s85, %s86
    %p97 = scmp.eq.s32.totalorder %s16, 0
    %p98 = por %p96, %p97
    %p99 = scmp.ne.s32.totalorder %s85, %s86
    %p100 = scmp.eq.s32.totalorder %s17, 3
    %p101 = por %p99, %p100
    %p103 = scmp.ne.s32.totalorder %s86, %s102
    %p104 = scmp.eq.s32.totalorder %s17, 0
    %p105 = por %p103, %p104
    %s106 = ssub.s32 %s18, %s30
    %s107 = ssub.s32 %s19, %s26
    %s108 = sor.u32 %s106, %s107
    %p109 = scmp.eq.s32.totalorder %s108, 0
    %s111 = sadd.s32 %s110, 1
    %s112 = scalar_select %p109, %s110, %s111
    %p115 = pneg %p109
    %p116 = scmp.eq.s32.totalorder %s11, 3
    %p117 = por %p115, %p116
    %p118 = scmp.ne.s32.totalorder %s110, %s113
    %p119 = scmp.eq.s32.totalorder %s11, 0
    %p120 = por %p118, %p119
    %p121 = scmp.ne.s32.totalorder %s110, %s113
    %p122 = scmp.eq.s32.totalorder %s16, 3
    %p123 = por %p121, %p122
    %p124 = scmp.ne.s32.totalorder %s113, %s114
    %p125 = scmp.eq.s32.totalorder %s16, 0
    %p126 = por %p124, %p125
    %p127 = scmp.ne.s32.totalorder %s113, %s114
    %p128 = scmp.eq.s32.totalorder %s17, 3
    %p129 = por %p127, %p128
    %p131 = scmp.ne.s32.totalorder %s114, %s130
    %p132 = scmp.eq.s32.totalorder %s17, 0
    %p133 = por %p131, %p132
    %s134 = ssub.s32 %s18, %s30
    %s135 = ssub.s32 %s19, %s26
    %s136 = sor.u32 %s134, %s135
    %p137 = scmp.eq.s32.totalorder %s136, 0
    %s139 = sadd.s32 %s138, 1
    %s140 = scalar_select %p137, %s138, %s139
    %p143 = pneg %p137
    %p144 = scmp.eq.s32.totalorder %s11, 3
    %p145 = por %p143, %p144
    %p146 = scmp.ne.s32.totalorder %s138, %s141
    %p147 = scmp.eq.s32.totalorder %s11, 0
    %p148 = por %p146, %p147
    %p149 = scmp.ne.s32.totalorder %s138, %s141
    %p150 = scmp.eq.s32.totalorder %s16, 3
    %p151 = por %p149, %p150
    %p152 = scmp.ne.s32.totalorder %s141, %s142
    %p153 = scmp.eq.s32.totalorder %s16, 0
    %p154 = por %p152, %p153
    %p155 = scmp.ne.s32.totalorder %s141, %s142
    %p156 = scmp.eq.s32.totalorder %s17, 3
    %p157 = por %p155, %p156
    %p159 = scmp.ne.s32.totalorder %s142, %s158
    %p160 = scmp.eq.s32.totalorder %s17, 0
    %p161 = por %p159, %p160
    %p162 = scmp.le.s32.totalorder 1, %s11
    %p163 = scmp.lt.s32.totalorder %s11, 5
    %p164 = pnand %p162, %p163
    %p165 = pneg %p164
    // Predicated region
    $region9: #{basic_conv2d.2} parent=5 // pred_check
      _
    $region10: #{basic_conv2d.2} parent=5 // pred_check_branch
      %167 = sbr.rel (%p164) target = $region12
    $region11: #{basic_conv2d.2} parent=5 // pred_region
      %s168 = ssub.s32 %s11, 1
      // Predicated region
      $region13: #{basic_conv2d.2} parent=11 // pred_check
        %p169 = pneg %p70
      $region14: #{basic_conv2d.2} parent=11 // pred_check_branch
        %171 = sbr.rel (%p169) target = $region16
      $region15: #{basic_conv2d.2} parent=11 // pred_region
        _
      $region16: #{basic_conv2d.2} parent=11 // pred_fallthru
        _
    $region12: #{basic_conv2d.2} parent=5 // pred_fallthru
      _
    %p172 = scmp.lt.s32.totalorder %s11, 4
    // Predicated region
    $region17: #{basic_conv2d.2} parent=5 // pred_check
      %p173 = pneg %p172
    $region18: #{basic_conv2d.2} parent=5 // pred_check_branch
      %175 = sbr.rel (%p173) target = $region20
    $region19: #{basic_conv2d.2} parent=5 // pred_region
      // Predicated region
      $region21: #{basic_conv2d.2} parent=19 // pred_check
        %p176 = pneg %p43
      $region22: #{basic_conv2d.2} parent=19 // pred_check_branch
        %178 = sbr.rel (%p176) target = $region24
      $region23: #{basic_conv2d.2} parent=19 // pred_region
        %p179 = scmp.lt.s32.totalorder %s18, 1
        %s180 = scalar_select %p179, %s18, 1
        %s181 = smul.addr %s180, 54
        %s182 = smul.addr %s181, 4
        %s183 = scalar_lea.vmem %s0, %s182
      $region24: #{basic_conv2d.2} parent=19 // pred_fallthru
        _
    $region20: #{basic_conv2d.2} parent=5 // pred_fallthru
      _
    %p184 = scmp.le.s32.totalorder 1, %s11
    %p185 = scmp.lt.s32.totalorder %s11, 5
    %p186 = pnand %p184, %p185
    %p187 = pneg %p186
    // Predicated region
    $region25: #{basic_conv2d.2} parent=5 // pred_check
      _
    $region26: #{basic_conv2d.2} parent=5 // pred_check_branch
      %189 = sbr.rel (%p186) target = $region28
    $region27: #{basic_conv2d.2} parent=5 // pred_region
      %s190 = ssub.s32 %s11, 1
      %p191 = scmp.lt.s32.totalorder %s20, 1
      %s192 = scalar_select %p191, %s20, 1
      %s193 = smul.addr %s192, 54
      %s194 = smul.addr %s193, 4
      %s195 = scalar_lea.vmem %s0, %s194
      %p196 = pneg %p49
      %p197 = pneg %p46
      %p198 = pneg %p70
      %p199 = pneg %p67
      %p200 = pneg %p98
      %p201 = pneg %p95
      %p202 = scmp.lt.s32.totalorder %s20, 1
      %s203 = scalar_select %p202, %s20, 1
      %p204 = scmp.lt.s32.totalorder %s21, 1
      %s205 = scalar_select %p204, %s21, 1
      %s206 = smul.addr %s205, 16
      %s207 = smul.addr %s203, 32
      %s208 = sadd.s32 %s206, %s207
      %s209 = smul.addr %s208, 4
      %s210 = scalar_lea.vmem %s2, %s209
      %p211 = pneg %p126
      %p212 = pneg %p123
      %p213 = scmp.lt.s32.totalorder %s20, 1
      %s214 = scalar_select %p213, %s20, 1
      %p215 = scmp.lt.s32.totalorder %s21, 1
      %s216 = scalar_select %p215, %s21, 1
      %s217 = smul.addr %s214, 2
      %s218 = sadd.s32 %s216, %s217
      %s219 = scalar_lea.vmem %s3, %s218
      %p220 = pneg %p154
      %p221 = pneg %p151
      %p222 = scmp.lt.s32.totalorder %s20, 1
      %s223 = scalar_select %p222, %s20, 1
      %p224 = scmp.lt.s32.totalorder %s21, 1
      %s225 = scalar_select %p224, %s21, 1
      %s226 = smul.addr %s223, 2
      %s227 = sadd.s32 %s225, %s226
      %s228 = scalar_lea.vmem %s4, %s227
      %p229 = scmp.lt.s32.totalorder %s20, 1
      %s230 = scalar_select %p229, %s20, 1
      %s231 = smul.addr %s230, 54
      %s232 = smul.addr %s231, 4
      %s233 = scalar_lea.vmem %s0, %s232
      %p234 = scmp.lt.s32.totalorder %s20, 1
      %s235 = scalar_select %p234, %s20, 1
      %p236 = scmp.lt.s32.totalorder %s21, 1
      %s237 = scalar_select %p236, %s21, 1
      %s238 = smul.addr %s237, 16
      %s239 = smul.addr %s235, 32
      %s240 = sadd.s32 %s238, %s239
      %s241 = smul.addr %s240, 4
      %s242 = scalar_lea.vmem %s2, %s241
      %p243 = scmp.lt.s32.totalorder %s20, 1
      %s244 = scalar_select %p243, %s20, 1
      %p245 = scmp.lt.s32.totalorder %s21, 1
      %s246 = scalar_select %p245, %s21, 1
      %s247 = smul.addr %s244, 2
      %s248 = sadd.s32 %s246, %s247
      %s249 = scalar_lea.vmem %s3, %s248
      %p250 = scmp.lt.s32.totalorder %s20, 1
      %s251 = scalar_select %p250, %s20, 1
      %p252 = scmp.lt.s32.totalorder %s21, 1
      %s253 = scalar_select %p252, %s21, 1
      %s254 = smul.addr %s251, 2
      %s255 = sadd.s32 %s253, %s254
      %s256 = scalar_lea.vmem %s4, %s255
      %s258 = smul.u32 %s21, 8
      %s259 = smul.u32 %s258, 3
      %s260 = smul.addr %s259, 4
      %s261 = scalar_lea.vmem %s233, %s260
      %v262 = vld [vmem:[%s261] sm:$0xf]
      %v263 = vld [vmem:[%s261 + $0x4] sm:$0xf]
      %v264 = vld [vmem:[%s261 + $0xc] sm:$0xf]
      %v265 = vld [vmem:[%s261 + $0x10] sm:$0xf]
      %v266 = vld [vmem:[%s261 + $0x18] sm:$0xf]
      %v267 = vld [vmem:[%s261 + $0x1c] sm:$0xf]
      %v268 = vld [vmem:[%s261 + $0x24] sm:$0xf]
      %v269 = vld [vmem:[%s261 + $0x28] sm:$0xf]
      %v270 = vld [vmem:[%s261 + $0x30] sm:$0xf]
      %v271 = vld [vmem:[%s261 + $0x34] sm:$0xf]
      %v272 = vld [vmem:[%s261 + $0x3c] sm:$0xf]
      %v273 = vld [vmem:[%s261 + $0x40] sm:$0xf]
      %v274 = vld [vmem:[%s261 + $0x48] sm:$0xf]
      %v275 = vld [vmem:[%s261 + $0x4c] sm:$0xf]
      %v276 = vld [vmem:[%s261 + $0x54] sm:$0xf]
      %v277 = vld [vmem:[%s261 + $0x58] sm:$0xf]
      %v278 = vld [vmem:[%s1] sm:$0x3]
      %v279 = vld [vmem:[%s261 + $0x8] sm:$0x1]
      %v280 = vld [vmem:[%s261 + $0x14] sm:$0x1]
      %v281 = vld [vmem:[%s261 + $0x20] sm:$0x1]
      %v282 = vld [vmem:[%s261 + $0x2c] sm:$0x1]
      %v283 = vld [vmem:[%s261 + $0x38] sm:$0x1]
      %v284 = vld [vmem:[%s261 + $0x44] sm:$0x1]
      %v285 = vld [vmem:[%s261 + $0x50] sm:$0x1]
      %v286 = vld [vmem:[%s261 + $0x5c] sm:$0x1]
      %vm287 = vsmask.f32 3328
      %vm288 = vsmask.f32 7440
      %vm289 = vmor %vm287, %vm288
      %v291 = vshrl.u32 %v262, 16
      %v293 = vrot.slane %v291, 4
      %v294 = vshll.u32 %v262, 16
      %v296 = vrot.slane %v294, 5
      %v297 = vor.u32 %v293, %v296
      %v298 = vrot.slane %v297, 4
      %v300 = vshll.u32 %v263, 16
      %v302 = vrot.slane %v300, 5
      %v303 = vsel %vm289, %v298, %v302
      %v304 = vshrl.u32 %v263, 16
      %v306 = vrot.slane %v304, 4
      %v307 = vor.u32 %v306, %v302
      %v308 = vrot.slane %v307, 4
      %v310 = vshll.u32 %v279, 16
      %v312 = vrot.slane %v310, 5
      %v313 = vsel %vm289, %v308, %v312
      %v315 = vshrl.u32 %v264, 16
      %v317 = vrot.slane %v315, 4
      %v318 = vshll.u32 %v264, 16
      %v320 = vrot.slane %v318, 5
      %v321 = vor.u32 %v317, %v320
      %v322 = vrot.slane %v321, 4
      %v324 = vshll.u32 %v265, 16
      %v326 = vrot.slane %v324, 5
      %v327 = vsel %vm289, %v322, %v326
      %v328 = vshrl.u32 %v265, 16
      %v330 = vrot.slane %v328, 4
      %v331 = vor.u32 %v330, %v326
      %v332 = vrot.slane %v331, 4
      %v334 = vshll.u32 %v280, 16
      %v336 = vrot.slane %v334, 5
      %v337 = vsel %vm289, %v332, %v336
      %v339 = vshrl.u32 %v266, 16
      %v341 = vrot.slane %v339, 4
      %v342 = vshll.u32 %v266, 16
      %v344 = vrot.slane %v342, 5
      %v345 = vor.u32 %v341, %v344
      %v346 = vrot.slane %v345, 4
      %v348 = vshll.u32 %v267, 16
      %v350 = vrot.slane %v348, 5
      %v351 = vsel %vm289, %v346, %v350
      %v352 = vshrl.u32 %v267, 16
      %v354 = vrot.slane %v352, 4
      %v355 = vor.u32 %v354, %v350
      %v356 = vrot.slane %v355, 4
      %v358 = vshll.u32 %v281, 16
      %v360 = vrot.slane %v358, 5
      %v361 = vsel %vm289, %v356, %v360
      %v363 = vshrl.u32 %v268, 16
      %v365 = vrot.slane %v363, 4
      %v366 = vshll.u32 %v268, 16
      %v368 = vrot.slane %v366, 5
      %v369 = vor.u32 %v365, %v368
      %v370 = vrot.slane %v369, 4
      %v372 = vshll.u32 %v269, 16
      %v374 = vrot.slane %v372, 5
      %v375 = vsel %vm289, %v370, %v374
      %v376 = vshrl.u32 %v269, 16
      %v378 = vrot.slane %v376, 4
      %v379 = vor.u32 %v378, %v374
      %v380 = vrot.slane %v379, 4
      %v382 = vshll.u32 %v282, 16
      %v384 = vrot.slane %v382, 5
      %v385 = vsel %vm289, %v380, %v384
      %v387 = vshrl.u32 %v270, 16
      %v389 = vrot.slane %v387, 4
      %v390 = vshll.u32 %v270, 16
      %v392 = vrot.slane %v390, 5
      %v393 = vor.u32 %v389, %v392
      %v394 = vrot.slane %v393, 4
      %v396 = vshll.u32 %v271, 16
      %v398 = vrot.slane %v396, 5
      %v399 = vsel %vm289, %v394, %v398
      %v400 = vshrl.u32 %v271, 16
      %v402 = vrot.slane %v400, 4
      %v403 = vor.u32 %v402, %v398
      %v404 = vrot.slane %v403, 4
      %v406 = vshll.u32 %v283, 16
      %v408 = vrot.slane %v406, 5
      %v409 = vsel %vm289, %v404, %v408
      %v411 = vshrl.u32 %v272, 16
      %v413 = vrot.slane %v411, 4
      %v414 = vshll.u32 %v272, 16
      %v416 = vrot.slane %v414, 5
      %v417 = vor.u32 %v413, %v416
      %v418 = vrot.slane %v417, 4
      %v420 = vshll.u32 %v273, 16
      %v422 = vrot.slane %v420, 5
      %v423 = vsel %vm289, %v418, %v422
      %v424 = vshrl.u32 %v273, 16
      %v426 = vrot.slane %v424, 4
      %v427 = vor.u32 %v426, %v422
      %v428 = vrot.slane %v427, 4
      %v430 = vshll.u32 %v284, 16
      %v432 = vrot.slane %v430, 5
      %v433 = vsel %vm289, %v428, %v432
      %v435 = vshrl.u32 %v274, 16
      %v437 = vrot.slane %v435, 4
      %v438 = vshll.u32 %v274, 16
      %v440 = vrot.slane %v438, 5
      %v441 = vor.u32 %v437, %v440
      %v442 = vrot.slane %v441, 4
      %v444 = vshll.u32 %v275, 16
      %v446 = vrot.slane %v444, 5
      %v447 = vsel %vm289, %v442, %v446
      %v448 = vshrl.u32 %v275, 16
      %v450 = vrot.slane %v448, 4
      %v451 = vor.u32 %v450, %v446
      %v452 = vrot.slane %v451, 4
      %v454 = vshll.u32 %v285, 16
      %v456 = vrot.slane %v454, 5
      %v457 = vsel %vm289, %v452, %v456
      %v459 = vshrl.u32 %v276, 16
      %v461 = vrot.slane %v459, 4
      %v462 = vshll.u32 %v276, 16
      %v464 = vrot.slane %v462, 5
      %v465 = vor.u32 %v461, %v464
      %v466 = vrot.slane %v465, 4
      %v468 = vshll.u32 %v277, 16
      %v470 = vrot.slane %v468, 5
      %v471 = vsel %vm289, %v466, %v470
      %v472 = vshrl.u32 %v277, 16
      %v474 = vrot.slane %v472, 4
      %v475 = vor.u32 %v474, %v470
      %v476 = vrot.slane %v475, 4
      %v478 = vshll.u32 %v286, 16
      %v480 = vrot.slane %v478, 5
      %v481 = vsel %vm289, %v476, %v480
      %s482 = scalar_lea.vmem %s1, 2
      %v483 = vld [vmem:[%s482] sm:$0x3]
      %v484 = vunpack.c.l.b16 %v303
      %v485 = vunpack.c.l.b16 %v313
      %v486 = vunpack.c.l.b16 %v327
      %v487 = vunpack.c.l.b16 %v337
      %v488 = vunpack.c.l.b16 %v351
      %v489 = vunpack.c.l.b16 %v361
      %v490 = vunpack.c.l.b16 %v375
      %v491 = vunpack.c.l.b16 %v385
      %v492 = vunpack.c.l.b16 %v399
      %v493 = vunpack.c.l.b16 %v409
      %v494 = vunpack.c.l.b16 %v423
      %v495 = vunpack.c.l.b16 %v433
      %v496 = vunpack.c.l.b16 %v447
      %v497 = vunpack.c.l.b16 %v457
      %v498 = vunpack.c.l.b16 %v471
      %v499 = vunpack.c.l.b16 %v481
      %v500 = vpack.c.b16 %v485, %v484
      %v501 = vpack.c.b16 %v487, %v486
      %v502 = vpack.c.b16 %v489, %v488
      %v503 = vpack.c.b16 %v491, %v490
      %v504 = vpack.c.b16 %v493, %v492
      %v505 = vpack.c.b16 %v495, %v494
      %v506 = vpack.c.b16 %v497, %v496
      %v507 = vpack.c.b16 %v499, %v498
      %vm508 = vcmask 31744
      %v510 = vsel %vm508, %v500, 0
      %v513 = vsel %vm508, %v501, 0
      %v516 = vsel %vm508, %v502, 0
      %v519 = vsel %vm508, %v503, 0
      %v522 = vsel %vm508, %v504, 0
      %v525 = vsel %vm508, %v505, 0
      %v528 = vsel %vm508, %v506, 0
      %v531 = vsel %vm508, %v507, 0
      %vm533 = vcmask 1041408
      %v535 = vsel %vm533, %v483, 0
      %537 = vmatprep.subr.bf16.mxu0 0
      %538 = vmatpush1.bf16.msra.mxu0 %v535
      %539 = vmatprep.subr.bf16.mxu0 0
      %540 = vmatpush1.bf16.msra.mxu0 0
      %541 = vmatprep.subr.bf16.mxu0 0
      %542 = vmatpush1.bf16.msra.mxu0 0
      %543 = vmatprep.subr.bf16.mxu0 0
      %544 = vmatpush1.bf16.msra.mxu0 0
      %545 = vmatprep.subr.bf16.mxu0 0
      %546 = vmatpush1.bf16.msra.mxu0 0
      %547 = vmatprep.subr.bf16.mxu0 0
      %548 = vmatpush1.bf16.msra.mxu0 0
      %549 = vmatprep.subr.bf16.mxu0 0
      %550 = vmatpush1.bf16.msra.mxu0 0
      %551 = vmatprep.subr.bf16.mxu0 0
      %552 = vmatpush1.bf16.msra.mxu0 0
      %553 = vmatprep.subr.bf16.mxu0 0
      %554 = vmatpush1.bf16.msra.mxu0 0
      %555 = vmatprep.subr.bf16.mxu0 0
      %556 = vmatpush1.bf16.msra.mxu0 0
      %557 = vmatprep.subr.bf16.mxu0 0
      %558 = vmatpush1.bf16.msra.mxu0 0
      %559 = vmatprep.subr.bf16.mxu0 0
      %560 = vmatpush1.bf16.msra.mxu0 0
      %561 = vmatprep.subr.bf16.mxu0 0
      %562 = vmatpush1.bf16.msra.mxu0 0
      %563 = vmatprep.subr.bf16.mxu0 0
      %564 = vmatpush1.bf16.msra.mxu0 0
      %565 = vmatprep.subr.bf16.mxu0 0
      %566 = vmatpush1.bf16.msra.mxu0 0
      %567 = vmatprep.subr.bf16.mxu0 0
      %568 = vmatpush1.bf16.msra.mxu0 0
      %569 = vmatprep.mubr.bf16.mxu0 0
      %570 = vmatmul.mubr.bf16.gmra.mrb[0].mxu0 %v510
      %v571 = vpop.f32.mrb[0].mxu0
      %v572 = vadd.f32 0.0, %v571
      %v573 = vpop.f32.mrb[0].mxu0
      %v574 = vpop.f32.mrb[0].mxu0
      %v575 = vadd.f32 0.0, %v574
      %v576 = vpop.f32.mrb[0].mxu0
      %577 = vmatprep.mubr.bf16.mxu0 0
      %578 = vmatmul.mubr.bf16.gmra.mrb[0].mxu0 %v513
      %v579 = vpop.f32.mrb[0].mxu0
      %v580 = vadd.f32 0.0, %v579
      %v581 = vpop.f32.mrb[0].mxu0
      %v582 = vpop.f32.mrb[0].mxu0
      %v583 = vadd.f32 0.0, %v582
      %v584 = vpop.f32.mrb[0].mxu0
      %585 = vmatprep.mubr.bf16.mxu0 0
      %586 = vmatmul.mubr.bf16.gmra.mrb[0].mxu0 %v516
      %v587 = vpop.f32.mrb[0].mxu0
      %v588 = vadd.f32 0.0, %v587
      %v589 = vpop.f32.mrb[0].mxu0
      %v590 = vpop.f32.mrb[0].mxu0
      %v591 = vadd.f32 0.0, %v590
      %v592 = vpop.f32.mrb[0].mxu0
      %593 = vmatprep.mubr.bf16.mxu0 0
      %594 = vmatmul.mubr.bf16.gmra.mrb[0].mxu0 %v519
      %v595 = vpop.f32.mrb[0].mxu0
      %v596 = vadd.f32 0.0, %v595
      %v597 = vpop.f32.mrb[0].mxu0
      %v598 = vpop.f32.mrb[0].mxu0
      %v599 = vadd.f32 0.0, %v598
      %v600 = vpop.f32.mrb[0].mxu0
      %601 = vmatprep.mubr.bf16.mxu0 0
      %602 = vmatmul.mubr.bf16.gmra.mrb[0].mxu0 %v522
      %v603 = vpop.f32.mrb[0].mxu0
      %v604 = vadd.f32 0.0, %v603
      %v605 = vpop.f32.mrb[0].mxu0
      %v606 = vpop.f32.mrb[0].mxu0
      %v607 = vadd.f32 0.0, %v606
      %v608 = vpop.f32.mrb[0].mxu0
      %609 = vmatprep.mubr.bf16.mxu0 0
      %610 = vmatmul.mubr.bf16.gmra.mrb[0].mxu0 %v525
      %v611 = vpop.f32.mrb[0].mxu0
      %v612 = vadd.f32 0.0, %v611
      %v613 = vpop.f32.mrb[0].mxu0
      %v614 = vpop.f32.mrb[0].mxu0
      %v615 = vadd.f32 0.0, %v614
      %v616 = vpop.f32.mrb[0].mxu0
      %617 = vmatprep.mubr.bf16.mxu0 0
      %618 = vmatmul.mubr.bf16.gmra.mrb[0].mxu0 %v528
      %v619 = vpop.f32.mrb[0].mxu0
      %v620 = vadd.f32 0.0, %v619
      %v621 = vpop.f32.mrb[0].mxu0
      %v622 = vpop.f32.mrb[0].mxu0
      %v623 = vadd.f32 0.0, %v622
      %v624 = vpop.f32.mrb[0].mxu0
      %625 = vmatprep.mubr.bf16.mxu0 0
      %626 = vmatmul.mubr.bf16.gmra.mrb[0].mxu0 %v531
      %v627 = vpop.f32.mrb[0].mxu0
      %v628 = vadd.f32 0.0, %v627
      %v629 = vpop.f32.mrb[0].mxu0
      %v630 = vpop.f32.mrb[0].mxu0
      %v631 = vadd.f32 0.0, %v630
      %v632 = vpop.f32.mrb[0].mxu0
      %633 = vdwg.mxu0
      %v650 = vunpack.c.l.b16 %v262
      %v651 = vunpack.c.l.b16 %v263
      %v652 = vunpack.c.l.b16 %v264
      %v653 = vunpack.c.l.b16 %v265
      %v654 = vunpack.c.l.b16 %v266
      %v655 = vunpack.c.l.b16 %v267
      %v656 = vunpack.c.l.b16 %v268
      %v657 = vunpack.c.l.b16 %v269
      %v658 = vunpack.c.l.b16 %v270
      %v659 = vunpack.c.l.b16 %v271
      %v660 = vunpack.c.l.b16 %v272
      %v661 = vunpack.c.l.b16 %v273
      %v662 = vunpack.c.l.b16 %v274
      %v663 = vunpack.c.l.b16 %v275
      %v664 = vunpack.c.l.b16 %v276
      %v665 = vunpack.c.l.b16 %v277
      %v666 = vpack.c.b16 %v651, %v650
      %v667 = vpack.c.b16 %v653, %v652
      %v668 = vpack.c.b16 %v655, %v654
      %v669 = vpack.c.b16 %v657, %v656
      %v670 = vpack.c.b16 %v659, %v658
      %v671 = vpack.c.b16 %v661, %v660
      %v672 = vpack.c.b16 %v663, %v662
      %v673 = vpack.c.b16 %v665, %v664
      %v675 = vsel %vm508, %v666, 0
      %v678 = vsel %vm508, %v667, 0
      %v681 = vsel %vm508, %v668, 0
      %v684 = vsel %vm508, %v669, 0
      %v687 = vsel %vm508, %v670, 0
      %v690 = vsel %vm508, %v671, 0
      %v693 = vsel %vm508, %v672, 0
      %v696 = vsel %vm508, %v673, 0
      %v699 = vsel %vm533, %v278, 0
      %701 = vmatprep.subr.bf16.mxu0 0
      %702 = vmatpush1.bf16.msra.mxu0 %v699
      %703 = vmatprep.subr.bf16.mxu0 0
      %704 = vmatpush1.bf16.msra.mxu0 0
      %705 = vmatprep.subr.bf16.mxu0 0
      %706 = vmatpush1.bf16.msra.mxu0 0
      %707 = vmatprep.subr.bf16.mxu0 0
      %708 = vmatpush1.bf16.msra.mxu0 0
      %709 = vmatprep.subr.bf16.mxu0 0
      %710 = vmatpush1.bf16.msra.mxu0 0
      %711 = vmatprep.subr.bf16.mxu0 0
      %712 = vmatpush1.bf16.msra.mxu0 0
      %713 = vmatprep.subr.bf16.mxu0 0
      %714 = vmatpush1.bf16.msra.mxu0 0
      %715 = vmatprep.subr.bf16.mxu0 0
      %716 = vmatpush1.bf16.msra.mxu0 0
      %717 = vmatprep.subr.bf16.mxu0 0
      %718 = vmatpush1.bf16.msra.mxu0 0
      %719 = vmatprep.subr.bf16.mxu0 0
      %720 = vmatpush1.bf16.msra.mxu0 0
      %721 = vmatprep.subr.bf16.mxu0 0
      %722 = vmatpush1.bf16.msra.mxu0 0
      %723 = vmatprep.subr.bf16.mxu0 0
      %724 = vmatpush1.bf16.msra.mxu0 0
      %725 = vmatprep.subr.bf16.mxu0 0
      %726 = vmatpush1.bf16.msra.mxu0 0
      %727 = vmatprep.subr.bf16.mxu0 0
      %728 = vmatpush1.bf16.msra.mxu0 0
      %729 = vmatprep.subr.bf16.mxu0 0
      %730 = vmatpush1.bf16.msra.mxu0 0
      %731 = vmatprep.subr.bf16.mxu0 0
      %732 = vmatpush1.bf16.msra.mxu0 0
      %733 = vmatprep.mubr.bf16.mxu0 0
      %734 = vmatmul.mubr.bf16.gmra.mrb[0].mxu0 %v675
      %v735 = vpop.f32.mrb[0].mxu0
      %v736 = vadd.f32 %v572, %v735
      %v737 = vpop.f32.mrb[0].mxu0
      %v738 = vpop.f32.mrb[0].mxu0
      %v739 = vadd.f32 %v575, %v738
      %v740 = vpop.f32.mrb[0].mxu0
      %741 = vmatprep.mubr.bf16.mxu0 0
      %742 = vmatmul.mubr.bf16.gmra.mrb[0].mxu0 %v678
      %v743 = vpop.f32.mrb[0].mxu0
      %v744 = vadd.f32 %v580, %v743
      %v745 = vpop.f32.mrb[0].mxu0
      %v746 = vpop.f32.mrb[0].mxu0
      %v747 = vadd.f32 %v583, %v746
      %v748 = vpop.f32.mrb[0].mxu0
      %749 = vmatprep.mubr.bf16.mxu0 0
      %750 = vmatmul.mubr.bf16.gmra.mrb[0].mxu0 %v681
      %v751 = vpop.f32.mrb[0].mxu0
      %v752 = vadd.f32 %v588, %v751
      %v753 = vpop.f32.mrb[0].mxu0
      %v754 = vpop.f32.mrb[0].mxu0
      %v755 = vadd.f32 %v591, %v754
      %v756 = vpop.f32.mrb[0].mxu0
      %757 = vmatprep.mubr.bf16.mxu0 0
      %758 = vmatmul.mubr.bf16.gmra.mrb[0].mxu0 %v684
      %v759 = vpop.f32.mrb[0].mxu0
      %v760 = vadd.f32 %v596, %v759
      %v761 = vpop.f32.mrb[0].mxu0
      %v762 = vpop.f32.mrb[0].mxu0
      %v763 = vadd.f32 %v599, %v762
      %v764 = vpop.f32.mrb[0].mxu0
      %765 = vmatprep.mubr.bf16.mxu0 0
      %766 = vmatmul.mubr.bf16.gmra.mrb[0].mxu0 %v687
      %v767 = vpop.f32.mrb[0].mxu0
      %v768 = vadd.f32 %v604, %v767
      %v769 = vpop.f32.mrb[0].mxu0
      %v770 = vpop.f32.mrb[0].mxu0
      %v771 = vadd.f32 %v607, %v770
      %v772 = vpop.f32.mrb[0].mxu0
      %773 = vmatprep.mubr.bf16.mxu0 0
      %774 = vmatmul.mubr.bf16.gmra.mrb[0].mxu0 %v690
      %v775 = vpop.f32.mrb[0].mxu0
      %v776 = vadd.f32 %v612, %v775
      %v777 = vpop.f32.mrb[0].mxu0
      %v778 = vpop.f32.mrb[0].mxu0
      %v779 = vadd.f32 %v615, %v778
      %v780 = vpop.f32.mrb[0].mxu0
      %781 = vmatprep.mubr.bf16.mxu0 0
      %782 = vmatmul.mubr.bf16.gmra.mrb[0].mxu0 %v693
      %v783 = vpop.f32.mrb[0].mxu0
      %v784 = vadd.f32 %v620, %v783
      %v785 = vpop.f32.mrb[0].mxu0
      %v786 = vpop.f32.mrb[0].mxu0
      %v787 = vadd.f32 %v623, %v786
      %v788 = vpop.f32.mrb[0].mxu0
      %789 = vmatprep.mubr.bf16.mxu0 0
      %790 = vmatmul.mubr.bf16.gmra.mrb[0].mxu0 %v696
      %v791 = vpop.f32.mrb[0].mxu0
      %v792 = vadd.f32 %v628, %v791
      %v793 = vpop.f32.mrb[0].mxu0
      %v794 = vpop.f32.mrb[0].mxu0
      %v795 = vadd.f32 %v631, %v794
      %v796 = vpop.f32.mrb[0].mxu0
      %797 = vdwg.mxu0
      %v798 = vld [vmem:[%s261] sm:$0xe]
      %v799 = vld [vmem:[%s261 + $0xc] sm:$0xe]
      %v800 = vld [vmem:[%s261 + $0x18] sm:$0xe]
      %v801 = vld [vmem:[%s261 + $0x24] sm:$0xe]
      %v802 = vld [vmem:[%s261 + $0x30] sm:$0xe]
      %v803 = vld [vmem:[%s261 + $0x3c] sm:$0xe]
      %v804 = vld [vmem:[%s261 + $0x48] sm:$0xe]
      %v805 = vld [vmem:[%s261 + $0x54] sm:$0xe]
      %vm822 = vcmask 1042432
      %vm823 = vcmask 1046532
      %vm824 = vmor %vm822, %vm823
      %v825 = vrot.slane %v798, 5
      %v826 = vrot.slane %v825, 4
      %v827 = vrot.slane %v263, 5
      %v828 = vsel %vm824, %v826, %v827
      %v829 = vrot.slane %v827, 4
      %v830 = vrot.slane %v279, 5
      %v831 = vsel %vm824, %v829, %v830
      %v832 = vrot.slane %v799, 5
      %v833 = vrot.slane %v832, 4
      %v834 = vrot.slane %v265, 5
      %v835 = vsel %vm824, %v833, %v834
      %v836 = vrot.slane %v834, 4
      %v837 = vrot.slane %v280, 5
      %v838 = vsel %vm824, %v836, %v837
      %v839 = vrot.slane %v800, 5
      %v840 = vrot.slane %v839, 4
      %v841 = vrot.slane %v267, 5
      %v842 = vsel %vm824, %v840, %v841
      %v843 = vrot.slane %v841, 4
      %v844 = vrot.slane %v281, 5
      %v845 = vsel %vm824, %v843, %v844
      %v846 = vrot.slane %v801, 5
      %v847 = vrot.slane %v846, 4
      %v848 = vrot.slane %v269, 5
      %v849 = vsel %vm824, %v847, %v848
      %v850 = vrot.slane %v848, 4
      %v851 = vrot.slane %v282, 5
      %v852 = vsel %vm824, %v850, %v851
      %v853 = vrot.slane %v802, 5
      %v854 = vrot.slane %v853, 4
      %v855 = vrot.slane %v271, 5
      %v856 = vsel %vm824, %v854, %v855
      %v857 = vrot.slane %v855, 4
      %v858 = vrot.slane %v283, 5
      %v859 = vsel %vm824, %v857, %v858
      %v860 = vrot.slane %v803, 5
      %v861 = vrot.slane %v860, 4
      %v862 = vrot.slane %v273, 5
      %v863 = vsel %vm824, %v861, %v862
      %v864 = vrot.slane %v862, 4
      %v865 = vrot.slane %v284, 5
      %v866 = vsel %vm824, %v864, %v865
      %v867 = vrot.slane %v804, 5
      %v868 = vrot.slane %v867, 4
      %v869 = vrot.slane %v275, 5
      %v870 = vsel %vm824, %v868, %v869
      %v871 = vrot.slane %v869, 4
      %v872 = vrot.slane %v285, 5
      %v873 = vsel %vm824, %v871, %v872
      %v874 = vrot.slane %v805, 5
      %v875 = vrot.slane %v874, 4
      %v876 = vrot.slane %v277, 5
      %v877 = vsel %vm824, %v875, %v876
      %v878 = vrot.slane %v876, 4
      %v879 = vrot.slane %v286, 5
      %v880 = vsel %vm824, %v878, %v879
      %s881 = scalar_lea.vmem %s1, 4
      %v882 = vld [vmem:[%s881] sm:$0x3]
      %v883 = vunpack.c.l.b16 %v828
      %v884 = vunpack.c.l.b16 %v831
      %v885 = vunpack.c.l.b16 %v835
      %v886 = vunpack.c.l.b16 %v838
      %v887 = vunpack.c.l.b16 %v842
      %v888 = vunpack.c.l.b16 %v845
      %v889 = vunpack.c.l.b16 %v849
      %v890 = vunpack.c.l.b16 %v852
      %v891 = vunpack.c.l.b16 %v856
      %v892 = vunpack.c.l.b16 %v859
      %v893 = vunpack.c.l.b16 %v863
      %v894 = vunpack.c.l.b16 %v866
      %v895 = vunpack.c.l.b16 %v870
      %v896 = vunpack.c.l.b16 %v873
      %v897 = vunpack.c.l.b16 %v877
      %v898 = vunpack.c.l.b16 %v880
      %v899 = vpack.c.b16 %v884, %v883
      %v900 = vpack.c.b16 %v886, %v885
      %v901 = vpack.c.b16 %v888, %v887
      %v902 = vpack.c.b16 %v890, %v889
      %v903 = vpack.c.b16 %v892, %v891
      %v904 = vpack.c.b16 %v894, %v893
      %v905 = vpack.c.b16 %v896, %v895
      %v906 = vpack.c.b16 %v898, %v897
      %v908 = vsel %vm508, %v899, 0
      %v911 = vsel %vm508, %v900, 0
      %v914 = vsel %vm508, %v901, 0
      %v917 = vsel %vm508, %v902, 0
      %v920 = vsel %vm508, %v903, 0
      %v923 = vsel %vm508, %v904, 0
      %v926 = vsel %vm508, %v905, 0
      %v929 = vsel %vm508, %v906, 0
      %v932 = vsel %vm533, %v882, 0
      %934 = vmatprep.subr.bf16.mxu0 0
      %935 = vmatpush1.bf16.msra.mxu0 %v932
      %936 = vmatprep.subr.bf16.mxu0 0
      %937 = vmatpush1.bf16.msra.mxu0 0
      %938 = vmatprep.subr.bf16.mxu0 0
      %939 = vmatpush1.bf16.msra.mxu0 0
      %940 = vmatprep.subr.bf16.mxu0 0
      %941 = vmatpush1.bf16.msra.mxu0 0
      %942 = vmatprep.subr.bf16.mxu0 0
      %943 = vmatpush1.bf16.msra.mxu0 0
      %944 = vmatprep.subr.bf16.mxu0 0
      %945 = vmatpush1.bf16.msra.mxu0 0
      %946 = vmatprep.subr.bf16.mxu0 0
      %947 = vmatpush1.bf16.msra.mxu0 0
      %948 = vmatprep.subr.bf16.mxu0 0
      %949 = vmatpush1.bf16.msra.mxu0 0
      %950 = vmatprep.subr.bf16.mxu0 0
      %951 = vmatpush1.bf16.msra.mxu0 0
      %952 = vmatprep.subr.bf16.mxu0 0
      %953 = vmatpush1.bf16.msra.mxu0 0
      %954 = vmatprep.subr.bf16.mxu0 0
      %955 = vmatpush1.bf16.msra.mxu0 0
      %956 = vmatprep.subr.bf16.mxu0 0
      %957 = vmatpush1.bf16.msra.mxu0 0
      %958 = vmatprep.subr.bf16.mxu0 0
      %959 = vmatpush1.bf16.msra.mxu0 0
      %960 = vmatprep.subr.bf16.mxu0 0
      %961 = vmatpush1.bf16.msra.mxu0 0
      %962 = vmatprep.subr.bf16.mxu0 0
      %963 = vmatpush1.bf16.msra.mxu0 0
      %964 = vmatprep.subr.bf16.mxu0 0
      %965 = vmatpush1.bf16.msra.mxu0 0
      %966 = vmatprep.mubr.bf16.mxu0 0
      %967 = vmatmul.mubr.bf16.gmra.mrb[0].mxu0 %v908
      %v968 = vpop.f32.mrb[0].mxu0
      %v969 = vadd.f32 0.0, %v968
      %v970 = vpop.f32.mrb[0].mxu0
      %v971 = vpop.f32.mrb[0].mxu0
      %v972 = vadd.f32 0.0, %v971
      %v973 = vpop.f32.mrb[0].mxu0
      %974 = vmatprep.mubr.bf16.mxu0 0
      %975 = vmatmul.mubr.bf16.gmra.mrb[0].mxu0 %v911
      %v976 = vpop.f32.mrb[0].mxu0
      %v977 = vadd.f32 0.0, %v976
      %v978 = vpop.f32.mrb[0].mxu0
      %v979 = vpop.f32.mrb[0].mxu0
      %v980 = vadd.f32 0.0, %v979
      %v981 = vpop.f32.mrb[0].mxu0
      %982 = vmatprep.mubr.bf16.mxu0 0
      %983 = vmatmul.mubr.bf16.gmra.mrb[0].mxu0 %v914
      %v984 = vpop.f32.mrb[0].mxu0
      %v985 = vadd.f32 0.0, %v984
      %v986 = vpop.f32.mrb[0].mxu0
      %v987 = vpop.f32.mrb[0].mxu0
      %v988 = vadd.f32 0.0, %v987
      %v989 = vpop.f32.mrb[0].mxu0
      %990 = vmatprep.mubr.bf16.mxu0 0
      %991 = vmatmul.mubr.bf16.gmra.mrb[0].mxu0 %v917
      %v992 = vpop.f32.mrb[0].mxu0
      %v993 = vadd.f32 0.0, %v992
      %v994 = vpop.f32.mrb[0].mxu0
      %v995 = vpop.f32.mrb[0].mxu0
      %v996 = vadd.f32 0.0, %v995
      %v997 = vpop.f32.mrb[0].mxu0
      %998 = vmatprep.mubr.bf16.mxu0 0
      %999 = vmatmul.mubr.bf16.gmra.mrb[0].mxu0 %v920
      %v1000 = vpop.f32.mrb[0].mxu0
      %v1001 = vadd.f32 0.0, %v1000
      %v1002 = vpop.f32.mrb[0].mxu0
      %v1003 = vpop.f32.mrb[0].mxu0
      %v1004 = vadd.f32 0.0, %v1003
      %v1005 = vpop.f32.mrb[0].mxu0
      %1006 = vmatprep.mubr.bf16.mxu0 0
      %1007 = vmatmul.mubr.bf16.gmra.mrb[0].mxu0 %v923
      %v1008 = vpop.f32.mrb[0].mxu0
      %v1009 = vadd.f32 0.0, %v1008
      %v1010 = vpop.f32.mrb[0].mxu0
      %v1011 = vpop.f32.mrb[0].mxu0
      %v1012 = vadd.f32 0.0, %v1011
      %v1013 = vpop.f32.mrb[0].mxu0
      %1014 = vmatprep.mubr.bf16.mxu0 0
      %1015 = vmatmul.mubr.bf16.gmra.mrb[0].mxu0 %v926
      %v1016 = vpop.f32.mrb[0].mxu0
      %v1017 = vadd.f32 0.0, %v1016
      %v1018 = vpop.f32.mrb[0].mxu0
      %v1019 = vpop.f32.mrb[0].mxu0
      %v1020 = vadd.f32 0.0, %v1019
      %v1021 = vpop.f32.mrb[0].mxu0
      %1022 = vmatprep.mubr.bf16.mxu0 0
      %1023 = vmatmul.mubr.bf16.gmra.mrb[0].mxu0 %v929
      %v1024 = vpop.f32.mrb[0].mxu0
      %v1025 = vadd.f32 0.0, %v1024
      %v1026 = vpop.f32.mrb[0].mxu0
      %v1027 = vpop.f32.mrb[0].mxu0
      %v1028 = vadd.f32 0.0, %v1027
      %v1029 = vpop.f32.mrb[0].mxu0
      %1030 = vdwg.mxu0
      %v1031 = vadd.f32 %v736, %v969
      %v1032 = vadd.f32 %v739, %v972
      %v1033 = vadd.f32 %v744, %v977
      %v1034 = vadd.f32 %v747, %v980
      %v1035 = vadd.f32 %v752, %v985
      %v1036 = vadd.f32 %v755, %v988
      %v1037 = vadd.f32 %v760, %v993
      %v1038 = vadd.f32 %v763, %v996
      %v1039 = vadd.f32 %v768, %v1001
      %v1040 = vadd.f32 %v771, %v1004
      %v1041 = vadd.f32 %v776, %v1009
      %v1042 = vadd.f32 %v779, %v1012
      %v1043 = vadd.f32 %v784, %v1017
      %v1044 = vadd.f32 %v787, %v1020
      %v1045 = vadd.f32 %v792, %v1025
      %v1046 = vadd.f32 %v795, %v1028
      %s1047 = sadd.s32 %s258, 1
      %s1048 = smul.u32 %s1047, 3
      %s1049 = smul.addr %s1048, 4
      %s1050 = scalar_lea.vmem %s233, %s1049
      %v1051 = vld [vmem:[%s1050] sm:$0xf]
      %v1052 = vld [vmem:[%s1050 + $0x4] sm:$0xf]
      %v1053 = vld [vmem:[%s1050 + $0xc] sm:$0xf]
      %v1054 = vld [vmem:[%s1050 + $0x10] sm:$0xf]
      %v1055 = vld [vmem:[%s1050 + $0x18] sm:$0xf]
      %v1056 = vld [vmem:[%s1050 + $0x1c] sm:$0xf]
      %v1057 = vld [vmem:[%s1050 + $0x24] sm:$0xf]
      %v1058 = vld [vmem:[%s1050 + $0x28] sm:$0xf]
      %v1059 = vld [vmem:[%s1050 + $0x30] sm:$0xf]
      %v1060 = vld [vmem:[%s1050 + $0x34] sm:$0xf]
      %v1061 = vld [vmem:[%s1050 + $0x3c] sm:$0xf]
      %v1062 = vld [vmem:[%s1050 + $0x40] sm:$0xf]
      %v1063 = vld [vmem:[%s1050 + $0x48] sm:$0xf]
      %v1064 = vld [vmem:[%s1050 + $0x4c] sm:$0xf]
      %v1065 = vld [vmem:[%s1050 + $0x54] sm:$0xf]
      %v1066 = vld [vmem:[%s1050 + $0x58] sm:$0xf]
      %s1067 = scalar_lea.vmem %s1, 6
      %v1068 = vld [vmem:[%s1067] sm:$0x3]
      %v1085 = vunpack.c.l.b16 %v1051
      %v1086 = vunpack.c.l.b16 %v1052
      %v1087 = vunpack.c.l.b16 %v1053
      %v1088 = vunpack.c.l.b16 %v1054
      %v1089 = vunpack.c.l.b16 %v1055
      %v1090 = vunpack.c.l.b16 %v1056
      %v1091 = vunpack.c.l.b16 %v1057
      %v1092 = vunpack.c.l.b16 %v1058
      %v1093 = vunpack.c.l.b16 %v1059
      %v1094 = vunpack.c.l.b16 %v1060
      %v1095 = vunpack.c.l.b16 %v1061
      %v1096 = vunpack.c.l.b16 %v1062
      %v1097 = vunpack.c.l.b16 %v1063
      %v1098 = vunpack.c.l.b16 %v1064
      %v1099 = vunpack.c.l.b16 %v1065
      %v1100 = vunpack.c.l.b16 %v1066
      %v1101 = vpack.c.b16 %v1086, %v1085
      %v1102 = vpack.c.b16 %v1088, %v1087
      %v1103 = vpack.c.b16 %v1090, %v1089
      %v1104 = vpack.c.b16 %v1092, %v1091
      %v1105 = vpack.c.b16 %v1094, %v1093
      %v1106 = vpack.c.b16 %v1096, %v1095
      %v1107 = vpack.c.b16 %v1098, %v1097
      %v1108 = vpack.c.b16 %v1100, %v1099
      %v1110 = vsel %vm508, %v1101, 0
      %v1113 = vsel %vm508, %v1102, 0
      %v1116 = vsel %vm508, %v1103, 0
      %v1119 = vsel %vm508, %v1104, 0
      %v1122 = vsel %vm508, %v1105, 0
      %v1125 = vsel %vm508, %v1106, 0
      %v1128 = vsel %vm508, %v1107, 0
      %v1131 = vsel %vm508, %v1108, 0
      %v1134 = vsel %vm533, %v1068, 0
      %1136 = vmatprep.subr.bf16.mxu0 0
      %1137 = vmatpush1.bf16.msra.mxu0 %v1134
      %1138 = vmatprep.subr.bf16.mxu0 0
      %1139 = vmatpush1.bf16.msra.mxu0 0
      %1140 = vmatprep.subr.bf16.mxu0 0
      %1141 = vmatpush1.bf16.msra.mxu0 0
      %1142 = vmatprep.subr.bf16.mxu0 0
      %1143 = vmatpush1.bf16.msra.mxu0 0
      %1144 = vmatprep.subr.bf16.mxu0 0
      %1145 = vmatpush1.bf16.msra.mxu0 0
      %1146 = vmatprep.subr.bf16.mxu0 0
      %1147 = vmatpush1.bf16.msra.mxu0 0
      %1148 = vmatprep.subr.bf16.mxu0 0
      %1149 = vmatpush1.bf16.msra.mxu0 0
      %1150 = vmatprep.subr.bf16.mxu0 0
      %1151 = vmatpush1.bf16.msra.mxu0 0
      %1152 = vmatprep.subr.bf16.mxu0 0
      %1153 = vmatpush1.bf16.msra.mxu0 0
      %1154 = vmatprep.subr.bf16.mxu0 0
      %1155 = vmatpush1.bf16.msra.mxu0 0
      %1156 = vmatprep.subr.bf16.mxu0 0
      %1157 = vmatpush1.bf16.msra.mxu0 0
      %1158 = vmatprep.subr.bf16.mxu0 0
      %1159 = vmatpush1.bf16.msra.mxu0 0
      %1160 = vmatprep.subr.bf16.mxu0 0
      %1161 = vmatpush1.bf16.msra.mxu0 0
      %1162 = vmatprep.subr.bf16.mxu0 0
      %1163 = vmatpush1.bf16.msra.mxu0 0
      %1164 = vmatprep.subr.bf16.mxu0 0
      %1165 = vmatpush1.bf16.msra.mxu0 0
      %1166 = vmatprep.subr.bf16.mxu0 0
      %1167 = vmatpush1.bf16.msra.mxu0 0
      %1168 = vmatprep.mubr.bf16.mxu0 0
      %1169 = vmatmul.mubr.bf16.gmra.mrb[0].mxu0 %v1110
      %v1170 = vpop.f32.mrb[0].mxu0
      %v1171 = vadd.f32 0.0, %v1170
      %v1172 = vpop.f32.mrb[0].mxu0
      %v1173 = vpop.f32.mrb[0].mxu0
      %v1174 = vadd.f32 0.0, %v1173
      %v1175 = vpop.f32.mrb[0].mxu0
      %1176 = vmatprep.mubr.bf16.mxu0 0
      %1177 = vmatmul.mubr.bf16.gmra.mrb[0].mxu0 %v1113
      %v1178 = vpop.f32.mrb[0].mxu0
      %v1179 = vadd.f32 0.0, %v1178
      %v1180 = vpop.f32.mrb[0].mxu0
      %v1181 = vpop.f32.mrb[0].mxu0
      %v1182 = vadd.f32 0.0, %v1181
      %v1183 = vpop.f32.mrb[0].mxu0
      %1184 = vmatprep.mubr.bf16.mxu0 0
      %1185 = vmatmul.mubr.bf16.gmra.mrb[0].mxu0 %v1116
      %v1186 = vpop.f32.mrb[0].mxu0
      %v1187 = vadd.f32 0.0, %v1186
      %v1188 = vpop.f32.mrb[0].mxu0
      %v1189 = vpop.f32.mrb[0].mxu0
      %v1190 = vadd.f32 0.0, %v1189
      %v1191 = vpop.f32.mrb[0].mxu0
      %1192 = vmatprep.mubr.bf16.mxu0 0
      %1193 = vmatmul.mubr.bf16.gmra.mrb[0].mxu0 %v1119
      %v1194 = vpop.f32.mrb[0].mxu0
      %v1195 = vadd.f32 0.0, %v1194
      %v1196 = vpop.f32.mrb[0].mxu0
      %v1197 = vpop.f32.mrb[0].mxu0
      %v1198 = vadd.f32 0.0, %v1197
      %v1199 = vpop.f32.mrb[0].mxu0
      %1200 = vmatprep.mubr.bf16.mxu0 0
      %1201 = vmatmul.mubr.bf16.gmra.mrb[0].mxu0 %v1122
      %v1202 = vpop.f32.mrb[0].mxu0
      %v1203 = vadd.f32 0.0, %v1202
      %v1204 = vpop.f32.mrb[0].mxu0
      %v1205 = vpop.f32.mrb[0].mxu0
      %v1206 = vadd.f32 0.0, %v1205
      %v1207 = vpop.f32.mrb[0].mxu0
      %1208 = vmatprep.mubr.bf16.mxu0 0
      %1209 = vmatmul.mubr.bf16.gmra.mrb[0].mxu0 %v1125
      %v1210 = vpop.f32.mrb[0].mxu0
      %v1211 = vadd.f32 0.0, %v1210
      %v1212 = vpop.f32.mrb[0].mxu0
      %v1213 = vpop.f32.mrb[0].mxu0
      %v1214 = vadd.f32 0.0, %v1213
      %v1215 = vpop.f32.mrb[0].mxu0
      %1216 = vmatprep.mubr.bf16.mxu0 0
      %1217 = vmatmul.mubr.bf16.gmra.mrb[0].mxu0 %v1128
      %v1218 = vpop.f32.mrb[0].mxu0
      %v1219 = vadd.f32 0.0, %v1218
      %v1220 = vpop.f32.mrb[0].mxu0
      %v1221 = vpop.f32.mrb[0].mxu0
      %v1222 = vadd.f32 0.0, %v1221
      %v1223 = vpop.f32.mrb[0].mxu0
      %1224 = vmatprep.mubr.bf16.mxu0 0
      %1225 = vmatmul.mubr.bf16.gmra.mrb[0].mxu0 %v1131
      %v1226 = vpop.f32.mrb[0].mxu0
      %v1227 = vadd.f32 0.0, %v1226
      %v1228 = vpop.f32.mrb[0].mxu0
      %v1229 = vpop.f32.mrb[0].mxu0
      %v1230 = vadd.f32 0.0, %v1229
      %v1231 = vpop.f32.mrb[0].mxu0
      %1232 = vdwg.mxu0
      %v1233 = vadd.f32 %v1031, %v1171
      %v1234 = vadd.f32 %v1032, %v1174
      %v1235 = vadd.f32 %v1033, %v1179
      %v1236 = vadd.f32 %v1034, %v1182
      %v1237 = vadd.f32 %v1035, %v1187
      %v1238 = vadd.f32 %v1036, %v1190
      %v1239 = vadd.f32 %v1037, %v1195
      %v1240 = vadd.f32 %v1038, %v1198
      %v1241 = vadd.f32 %v1039, %v1203
      %v1242 = vadd.f32 %v1040, %v1206
      %v1243 = vadd.f32 %v1041, %v1211
      %v1244 = vadd.f32 %v1042, %v1214
      %v1245 = vadd.f32 %v1043, %v1219
      %v1246 = vadd.f32 %v1044, %v1222
      %v1247 = vadd.f32 %v1045, %v1227
      %v1248 = vadd.f32 %v1046, %v1230
      %v1249 = vld [vmem:[%s1050] sm:$0xf]
      %v1250 = vld [vmem:[%s1050 + $0x4] sm:$0xf]
      %v1251 = vld [vmem:[%s1050 + $0x8] sm:$0x1]
      %v1252 = vld [vmem:[%s1050 + $0xc] sm:$0xf]
      %v1253 = vld [vmem:[%s1050 + $0x10] sm:$0xf]
      %v1254 = vld [vmem:[%s1050 + $0x14] sm:$0x1]
      %v1255 = vld [vmem:[%s1050 + $0x18] sm:$0xf]
      %v1256 = vld [vmem:[%s1050 + $0x1c] sm:$0xf]
      %v1257 = vld [vmem:[%s1050 + $0x20] sm:$0x1]
      %v1258 = vld [vmem:[%s1050 + $0x24] sm:$0xf]
      %v1259 = vld [vmem:[%s1050 + $0x28] sm:$0xf]
      %v1260 = vld [vmem:[%s1050 + $0x2c] sm:$0x1]
      %v1261 = vld [vmem:[%s1050 + $0x30] sm:$0xf]
      %v1262 = vld [vmem:[%s1050 + $0x34] sm:$0xf]
      %v1263 = vld [vmem:[%s1050 + $0x38] sm:$0x1]
      %v1264 = vld [vmem:[%s1050 + $0x3c] sm:$0xf]
      %v1265 = vld [vmem:[%s1050 + $0x40] sm:$0xf]
      %v1266 = vld [vmem:[%s1050 + $0x44] sm:$0x1]
      %v1267 = vld [vmem:[%s1050 + $0x48] sm:$0xf]
      %v1268 = vld [vmem:[%s1050 + $0x4c] sm:$0xf]
      %v1269 = vld [vmem:[%s1050 + $0x50] sm:$0x1]
      %v1270 = vld [vmem:[%s1050 + $0x54] sm:$0xf]
      %v1271 = vld [vmem:[%s1050 + $0x58] sm:$0xf]
      %v1272 = vld [vmem:[%s1050 + $0x5c] sm:$0x1]
      %v1274 = vshrl.u32 %v1249, 16
      %v1276 = vrot.slane %v1274, 4
      %v1277 = vshll.u32 %v1249, 16
      %v1279 = vrot.slane %v1277, 5
      %v1280 = vor.u32 %v1276, %v1279
      %v1281 = vrot.slane %v1280, 4
      %v1283 = vshll.u32 %v1250, 16
      %v1285 = vrot.slane %v1283, 5
      %v1286 = vsel %vm289, %v1281, %v1285
      %v1287 = vshrl.u32 %v1250, 16
      %v1289 = vrot.slane %v1287, 4
      %v1290 = vor.u32 %v1289, %v1285
      %v1291 = vrot.slane %v1290, 4
      %v1293 = vshll.u32 %v1251, 16
      %v1295 = vrot.slane %v1293, 5
      %v1296 = vsel %vm289, %v1291, %v1295
      %v1298 = vshrl.u32 %v1252, 16
      %v1300 = vrot.slane %v1298, 4
      %v1301 = vshll.u32 %v1252, 16
      %v1303 = vrot.slane %v1301, 5
      %v1304 = vor.u32 %v1300, %v1303
      %v1305 = vrot.slane %v1304, 4
      %v1307 = vshll.u32 %v1253, 16
      %v1309 = vrot.slane %v1307, 5
      %v1310 = vsel %vm289, %v1305, %v1309
      %v1311 = vshrl.u32 %v1253, 16
      %v1313 = vrot.slane %v1311, 4
      %v1314 = vor.u32 %v1313, %v1309
      %v1315 = vrot.slane %v1314, 4
      %v1317 = vshll.u32 %v1254, 16
      %v1319 = vrot.slane %v1317, 5
      %v1320 = vsel %vm289, %v1315, %v1319
      %v1322 = vshrl.u32 %v1255, 16
      %v1324 = vrot.slane %v1322, 4
      %v1325 = vshll.u32 %v1255, 16
      %v1327 = vrot.slane %v1325, 5
      %v1328 = vor.u32 %v1324, %v1327
      %v1329 = vrot.slane %v1328, 4
      %v1331 = vshll.u32 %v1256, 16
      %v1333 = vrot.slane %v1331, 5
      %v1334 = vsel %vm289, %v1329, %v1333
      %v1335 = vshrl.u32 %v1256, 16
      %v1337 = vrot.slane %v1335, 4
      %v1338 = vor.u32 %v1337, %v1333
      %v1339 = vrot.slane %v1338, 4
      %v1341 = vshll.u32 %v1257, 16
      %v1343 = vrot.slane %v1341, 5
      %v1344 = vsel %vm289, %v1339, %v1343
      %v1346 = vshrl.u32 %v1258, 16
      %v1348 = vrot.slane %v1346, 4
      %v1349 = vshll.u32 %v1258, 16
      %v1351 = vrot.slane %v1349, 5
      %v1352 = vor.u32 %v1348, %v1351
      %v1353 = vrot.slane %v1352, 4
      %v1355 = vshll.u32 %v1259, 16
      %v1357 = vrot.slane %v1355, 5
      %v1358 = vsel %vm289, %v1353, %v1357
      %v1359 = vshrl.u32 %v1259, 16
      %v1361 = vrot.slane %v1359, 4
      %v1362 = vor.u32 %v1361, %v1357
      %v1363 = vrot.slane %v1362, 4
      %v1365 = vshll.u32 %v1260, 16
      %v1367 = vrot.slane %v1365, 5
      %v1368 = vsel %vm289, %v1363, %v1367
      %v1370 = vshrl.u32 %v1261, 16
      %v1372 = vrot.slane %v1370, 4
      %v1373 = vshll.u32 %v1261, 16
      %v1375 = vrot.slane %v1373, 5
      %v1376 = vor.u32 %v1372, %v1375
      %v1377 = vrot.slane %v1376, 4
      %v1379 = vshll.u32 %v1262, 16
      %v1381 = vrot.slane %v1379, 5
      %v1382 = vsel %vm289, %v1377, %v1381
      %v1383 = vshrl.u32 %v1262, 16
      %v1385 = vrot.slane %v1383, 4
      %v1386 = vor.u32 %v1385, %v1381
      %v1387 = vrot.slane %v1386, 4
      %v1389 = vshll.u32 %v1263, 16
      %v1391 = vrot.slane %v1389, 5
      %v1392 = vsel %vm289, %v1387, %v1391
      %v1394 = vshrl.u32 %v1264, 16
      %v1396 = vrot.slane %v1394, 4
      %v1397 = vshll.u32 %v1264, 16
      %v1399 = vrot.slane %v1397, 5
      %v1400 = vor.u32 %v1396, %v1399
      %v1401 = vrot.slane %v1400, 4
      %v1403 = vshll.u32 %v1265, 16
      %v1405 = vrot.slane %v1403, 5
      %v1406 = vsel %vm289, %v1401, %v1405
      %v1407 = vshrl.u32 %v1265, 16
      %v1409 = vrot.slane %v1407, 4
      %v1410 = vor.u32 %v1409, %v1405
      %v1411 = vrot.slane %v1410, 4
      %v1413 = vshll.u32 %v1266, 16
      %v1415 = vrot.slane %v1413, 5
      %v1416 = vsel %vm289, %v1411, %v1415
      %v1418 = vshrl.u32 %v1267, 16
      %v1420 = vrot.slane %v1418, 4
      %v1421 = vshll.u32 %v1267, 16
      %v1423 = vrot.slane %v1421, 5
      %v1424 = vor.u32 %v1420, %v1423
      %v1425 = vrot.slane %v1424, 4
      %v1427 = vshll.u32 %v1268, 16
      %v1429 = vrot.slane %v1427, 5
      %v1430 = vsel %vm289, %v1425, %v1429
      %v1431 = vshrl.u32 %v1268, 16
      %v1433 = vrot.slane %v1431, 4
      %v1434 = vor.u32 %v1433, %v1429
      %v1435 = vrot.slane %v1434, 4
      %v1437 = vshll.u32 %v1269, 16
      %v1439 = vrot.slane %v1437, 5
      %v1440 = vsel %vm289, %v1435, %v1439
      %v1442 = vshrl.u32 %v1270, 16
      %v1444 = vrot.slane %v1442, 4
      %v1445 = vshll.u32 %v1270, 16
      %v1447 = vrot.slane %v1445, 5
      %v1448 = vor.u32 %v1444, %v1447
      %v1449 = vrot.slane %v1448, 4
      %v1451 = vshll.u32 %v1271, 16
      %v1453 = vrot.slane %v1451, 5
      %v1454 = vsel %vm289, %v1449, %v1453
      %v1455 = vshrl.u32 %v1271, 16
      %v1457 = vrot.slane %v1455, 4
      %v1458 = vor.u32 %v1457, %v1453
      %v1459 = vrot.slane %v1458, 4
      %v1461 = vshll.u32 %v1272, 16
      %v1463 = vrot.slane %v1461, 5
      %v1464 = vsel %vm289, %v1459, %v1463
      %s1465 = scalar_lea.vmem %s1, 8
      %v1466 = vld [vmem:[%s1465] sm:$0x3]
      %v1467 = vunpack.c.l.b16 %v1286
      %v1468 = vunpack.c.l.b16 %v1296
      %v1469 = vunpack.c.l.b16 %v1310
      %v1470 = vunpack.c.l.b16 %v1320
      %v1471 = vunpack.c.l.b16 %v1334
      %v1472 = vunpack.c.l.b16 %v1344
      %v1473 = vunpack.c.l.b16 %v1358
      %v1474 = vunpack.c.l.b16 %v1368
      %v1475 = vunpack.c.l.b16 %v1382
      %v1476 = vunpack.c.l.b16 %v1392
      %v1477 = vunpack.c.l.b16 %v1406
      %v1478 = vunpack.c.l.b16 %v1416
      %v1479 = vunpack.c.l.b16 %v1430
      %v1480 = vunpack.c.l.b16 %v1440
      %v1481 = vunpack.c.l.b16 %v1454
      %v1482 = vunpack.c.l.b16 %v1464
      %v1483 = vpack.c.b16 %v1468, %v1467
      %v1484 = vpack.c.b16 %v1470, %v1469
      %v1485 = vpack.c.b16 %v1472, %v1471
      %v1486 = vpack.c.b16 %v1474, %v1473
      %v1487 = vpack.c.b16 %v1476, %v1475
      %v1488 = vpack.c.b16 %v1478, %v1477
      %v1489 = vpack.c.b16 %v1480, %v1479
      %v1490 = vpack.c.b16 %v1482, %v1481
      %v1492 = vsel %vm508, %v1483, 0
      %v1495 = vsel %vm508, %v1484, 0
      %v1498 = vsel %vm508, %v1485, 0
      %v1501 = vsel %vm508, %v1486, 0
      %v1504 = vsel %vm508, %v1487, 0
      %v1507 = vsel %vm508, %v1488, 0
      %v1510 = vsel %vm508, %v1489, 0
      %v1513 = vsel %vm508, %v1490, 0
      %v1516 = vsel %vm533, %v1466, 0
      %1518 = vmatprep.subr.bf16.mxu0 0
      %1519 = vmatpush1.bf16.msra.mxu0 %v1516
      %1520 = vmatprep.subr.bf16.mxu0 0
      %1521 = vmatpush1.bf16.msra.mxu0 0
      %1522 = vmatprep.subr.bf16.mxu0 0
      %1523 = vmatpush1.bf16.msra.mxu0 0
      %1524 = vmatprep.subr.bf16.mxu0 0
      %1525 = vmatpush1.bf16.msra.mxu0 0
      %1526 = vmatprep.subr.bf16.mxu0 0
      %1527 = vmatpush1.bf16.msra.mxu0 0
      %1528 = vmatprep.subr.bf16.mxu0 0
      %1529 = vmatpush1.bf16.msra.mxu0 0
      %1530 = vmatprep.subr.bf16.mxu0 0
      %1531 = vmatpush1.bf16.msra.mxu0 0
      %1532 = vmatprep.subr.bf16.mxu0 0
      %1533 = vmatpush1.bf16.msra.mxu0 0
      %1534 = vmatprep.subr.bf16.mxu0 0
      %1535 = vmatpush1.bf16.msra.mxu0 0
      %1536 = vmatprep.subr.bf16.mxu0 0
      %1537 = vmatpush1.bf16.msra.mxu0 0
      %1538 = vmatprep.subr.bf16.mxu0 0
      %1539 = vmatpush1.bf16.msra.mxu0 0
      %1540 = vmatprep.subr.bf16.mxu0 0
      %1541 = vmatpush1.bf16.msra.mxu0 0
      %1542 = vmatprep.subr.bf16.mxu0 0
      %1543 = vmatpush1.bf16.msra.mxu0 0
      %1544 = vmatprep.subr.bf16.mxu0 0
      %1545 = vmatpush1.bf16.msra.mxu0 0
      %1546 = vmatprep.subr.bf16.mxu0 0
      %1547 = vmatpush1.bf16.msra.mxu0 0
      %1548 = vmatprep.subr.bf16.mxu0 0
      %1549 = vmatpush1.bf16.msra.mxu0 0
      %1550 = vmatprep.mubr.bf16.mxu0 0
      %1551 = vmatmul.mubr.bf16.gmra.mrb[0].mxu0 %v1492
      %v1552 = vpop.f32.mrb[0].mxu0
      %v1553 = vadd.f32 0.0, %v1552
      %v1554 = vpop.f32.mrb[0].mxu0
      %v1555 = vpop.f32.mrb[0].mxu0
      %v1556 = vadd.f32 0.0, %v1555
      %v1557 = vpop.f32.mrb[0].mxu0
      %1558 = vmatprep.mubr.bf16.mxu0 0
      %1559 = vmatmul.mubr.bf16.gmra.mrb[0].mxu0 %v1495
      %v1560 = vpop.f32.mrb[0].mxu0
      %v1561 = vadd.f32 0.0, %v1560
      %v1562 = vpop.f32.mrb[0].mxu0
      %v1563 = vpop.f32.mrb[0].mxu0
      %v1564 = vadd.f32 0.0, %v1563
      %v1565 = vpop.f32.mrb[0].mxu0
      %1566 = vmatprep.mubr.bf16.mxu0 0
      %1567 = vmatmul.mubr.bf16.gmra.mrb[0].mxu0 %v1498
      %v1568 = vpop.f32.mrb[0].mxu0
      %v1569 = vadd.f32 0.0, %v1568
      %v1570 = vpop.f32.mrb[0].mxu0
      %v1571 = vpop.f32.mrb[0].mxu0
      %v1572 = vadd.f32 0.0, %v1571
      %v1573 = vpop.f32.mrb[0].mxu0
      %1574 = vmatprep.mubr.bf16.mxu0 0
      %1575 = vmatmul.mubr.bf16.gmra.mrb[0].mxu0 %v1501
      %v1576 = vpop.f32.mrb[0].mxu0
      %v1577 = vadd.f32 0.0, %v1576
      %v1578 = vpop.f32.mrb[0].mxu0
      %v1579 = vpop.f32.mrb[0].mxu0
      %v1580 = vadd.f32 0.0, %v1579
      %v1581 = vpop.f32.mrb[0].mxu0
      %1582 = vmatprep.mubr.bf16.mxu0 0
      %1583 = vmatmul.mubr.bf16.gmra.mrb[0].mxu0 %v1504
      %v1584 = vpop.f32.mrb[0].mxu0
      %v1585 = vadd.f32 0.0, %v1584
      %v1586 = vpop.f32.mrb[0].mxu0
      %v1587 = vpop.f32.mrb[0].mxu0
      %v1588 = vadd.f32 0.0, %v1587
      %v1589 = vpop.f32.mrb[0].mxu0
      %1590 = vmatprep.mubr.bf16.mxu0 0
      %1591 = vmatmul.mubr.bf16.gmra.mrb[0].mxu0 %v1507
      %v1592 = vpop.f32.mrb[0].mxu0
      %v1593 = vadd.f32 0.0, %v1592
      %v1594 = vpop.f32.mrb[0].mxu0
      %v1595 = vpop.f32.mrb[0].mxu0
      %v1596 = vadd.f32 0.0, %v1595
      %v1597 = vpop.f32.mrb[0].mxu0
      %1598 = vmatprep.mubr.bf16.mxu0 0
      %1599 = vmatmul.mubr.bf16.gmra.mrb[0].mxu0 %v1510
      %v1600 = vpop.f32.mrb[0].mxu0
      %v1601 = vadd.f32 0.0, %v1600
      %v1602 = vpop.f32.mrb[0].mxu0
      %v1603 = vpop.f32.mrb[0].mxu0
      %v1604 = vadd.f32 0.0, %v1603
      %v1605 = vpop.f32.mrb[0].mxu0
      %1606 = vmatprep.mubr.bf16.mxu0 0
      %1607 = vmatmul.mubr.bf16.gmra.mrb[0].mxu0 %v1513
      %v1608 = vpop.f32.mrb[0].mxu0
      %v1609 = vadd.f32 0.0, %v1608
      %v1610 = vpop.f32.mrb[0].mxu0
      %v1611 = vpop.f32.mrb[0].mxu0
      %v1612 = vadd.f32 0.0, %v1611
      %v1613 = vpop.f32.mrb[0].mxu0
      %1614 = vdwg.mxu0
      %v1615 = vadd.f32 %v1233, %v1553
      %v1616 = vadd.f32 %v1234, %v1556
      %v1617 = vadd.f32 %v1235, %v1561
      %v1618 = vadd.f32 %v1236, %v1564
      %v1619 = vadd.f32 %v1237, %v1569
      %v1620 = vadd.f32 %v1238, %v1572
      %v1621 = vadd.f32 %v1239, %v1577
      %v1622 = vadd.f32 %v1240, %v1580
      %v1623 = vadd.f32 %v1241, %v1585
      %v1624 = vadd.f32 %v1242, %v1588
      %v1625 = vadd.f32 %v1243, %v1593
      %v1626 = vadd.f32 %v1244, %v1596
      %v1627 = vadd.f32 %v1245, %v1601
      %v1628 = vadd.f32 %v1246, %v1604
      %v1629 = vadd.f32 %v1247, %v1609
      %v1630 = vadd.f32 %v1248, %v1612
      %v1631 = vld [vmem:[%s1050] sm:$0xe]
      %v1632 = vld [vmem:[%s1050 + $0xc] sm:$0xe]
      %v1633 = vld [vmem:[%s1050 + $0x18] sm:$0xe]
      %v1634 = vld [vmem:[%s1050 + $0x24] sm:$0xe]
      %v1635 = vld [vmem:[%s1050 + $0x30] sm:$0xe]
      %v1636 = vld [vmem:[%s1050 + $0x3c] sm:$0xe]
      %v1637 = vld [vmem:[%s1050 + $0x48] sm:$0xe]
      %v1638 = vld [vmem:[%s1050 + $0x54] sm:$0xe]
      %v1663 = vrot.slane %v1631, 5
      %v1664 = vrot.slane %v1663, 4
      %v1665 = vrot.slane %v1250, 5
      %v1666 = vsel %vm824, %v1664, %v1665
      %v1667 = vrot.slane %v1665, 4
      %v1668 = vrot.slane %v1251, 5
      %v1669 = vsel %vm824, %v1667, %v1668
      %v1670 = vrot.slane %v1632, 5
      %v1671 = vrot.slane %v1670, 4
      %v1672 = vrot.slane %v1253, 5
      %v1673 = vsel %vm824, %v1671, %v1672
      %v1674 = vrot.slane %v1672, 4
      %v1675 = vrot.slane %v1254, 5
      %v1676 = vsel %vm824, %v1674, %v1675
      %v1677 = vrot.slane %v1633, 5
      %v1678 = vrot.slane %v1677, 4
      %v1679 = vrot.slane %v1256, 5
      %v1680 = vsel %vm824, %v1678, %v1679
      %v1681 = vrot.slane %v1679, 4
      %v1682 = vrot.slane %v1257, 5
      %v1683 = vsel %vm824, %v1681, %v1682
      %v1684 = vrot.slane %v1634, 5
      %v1685 = vrot.slane %v1684, 4
      %v1686 = vrot.slane %v1259, 5
      %v1687 = vsel %vm824, %v1685, %v1686
      %v1688 = vrot.slane %v1686, 4
      %v1689 = vrot.slane %v1260, 5
      %v1690 = vsel %vm824, %v1688, %v1689
      %v1691 = vrot.slane %v1635, 5
      %v1692 = vrot.slane %v1691, 4
      %v1693 = vrot.slane %v1262, 5
      %v1694 = vsel %vm824, %v1692, %v1693
      %v1695 = vrot.slane %v1693, 4
      %v1696 = vrot.slane %v1263, 5
      %v1697 = vsel %vm824, %v1695, %v1696
      %v1698 = vrot.slane %v1636, 5
      %v1699 = vrot.slane %v1698, 4
      %v1700 = vrot.slane %v1265, 5
      %v1701 = vsel %vm824, %v1699, %v1700
      %v1702 = vrot.slane %v1700, 4
      %v1703 = vrot.slane %v1266, 5
      %v1704 = vsel %vm824, %v1702, %v1703
      %v1705 = vrot.slane %v1637, 5
      %v1706 = vrot.slane %v1705, 4
      %v1707 = vrot.slane %v1268, 5
      %v1708 = vsel %vm824, %v1706, %v1707
      %v1709 = vrot.slane %v1707, 4
      %v1710 = vrot.slane %v1269, 5
      %v1711 = vsel %vm824, %v1709, %v1710
      %v1712 = vrot.slane %v1638, 5
      %v1713 = vrot.slane %v1712, 4
      %v1714 = vrot.slane %v1271, 5
      %v1715 = vsel %vm824, %v1713, %v1714
      %v1716 = vrot.slane %v1714, 4
      %v1717 = vrot.slane %v1272, 5
      %v1718 = vsel %vm824, %v1716, %v1717
      %s1719 = scalar_lea.vmem %s1, 10
      %v1720 = vld [vmem:[%s1719] sm:$0x3]
      %v1721 = vunpack.c.l.b16 %v1666
      %v1722 = vunpack.c.l.b16 %v1669
      %v1723 = vunpack.c.l.b16 %v1673
      %v1724 = vunpack.c.l.b16 %v1676
      %v1725 = vunpack.c.l.b16 %v1680
      %v1726 = vunpack.c.l.b16 %v1683
      %v1727 = vunpack.c.l.b16 %v1687
      %v1728 = vunpack.c.l.b16 %v1690
      %v1729 = vunpack.c.l.b16 %v1694
      %v1730 = vunpack.c.l.b16 %v1697
      %v1731 = vunpack.c.l.b16 %v1701
      %v1732 = vunpack.c.l.b16 %v1704
      %v1733 = vunpack.c.l.b16 %v1708
      %v1734 = vunpack.c.l.b16 %v1711
      %v1735 = vunpack.c.l.b16 %v1715
      %v1736 = vunpack.c.l.b16 %v1718
      %v1737 = vpack.c.b16 %v1722, %v1721
      %v1738 = vpack.c.b16 %v1724, %v1723
      %v1739 = vpack.c.b16 %v1726, %v1725
      %v1740 = vpack.c.b16 %v1728, %v1727
      %v1741 = vpack.c.b16 %v1730, %v1729
      %v1742 = vpack.c.b16 %v1732, %v1731
      %v1743 = vpack.c.b16 %v1734, %v1733
      %v1744 = vpack.c.b16 %v1736, %v1735
      %v1746 = vsel %vm508, %v1737, 0
      %v1749 = vsel %vm508, %v1738, 0
      %v1752 = vsel %vm508, %v1739, 0
      %v1755 = vsel %vm508, %v1740, 0
      %v1758 = vsel %vm508, %v1741, 0
      %v1761 = vsel %vm508, %v1742, 0
      %v1764 = vsel %vm508, %v1743, 0
      %v1767 = vsel %vm508, %v1744, 0
      %v1770 = vsel %vm533, %v1720, 0
      %1772 = vmatprep.subr.bf16.mxu0 0
      %1773 = vmatpush1.bf16.msra.mxu0 %v1770
      %1774 = vmatprep.subr.bf16.mxu0 0
      %1775 = vmatpush1.bf16.msra.mxu0 0
      %1776 = vmatprep.subr.bf16.mxu0 0
      %1777 = vmatpush1.bf16.msra.mxu0 0
      %1778 = vmatprep.subr.bf16.mxu0 0
      %1779 = vmatpush1.bf16.msra.mxu0 0
      %1780 = vmatprep.subr.bf16.mxu0 0
      %1781 = vmatpush1.bf16.msra.mxu0 0
      %1782 = vmatprep.subr.bf16.mxu0 0
      %1783 = vmatpush1.bf16.msra.mxu0 0
      %1784 = vmatprep.subr.bf16.mxu0 0
      %1785 = vmatpush1.bf16.msra.mxu0 0
      %1786 = vmatprep.subr.bf16.mxu0 0
      %1787 = vmatpush1.bf16.msra.mxu0 0
      %1788 = vmatprep.subr.bf16.mxu0 0
      %1789 = vmatpush1.bf16.msra.mxu0 0
      %1790 = vmatprep.subr.bf16.mxu0 0
      %1791 = vmatpush1.bf16.msra.mxu0 0
      %1792 = vmatprep.subr.bf16.mxu0 0
      %1793 = vmatpush1.bf16.msra.mxu0 0
      %1794 = vmatprep.subr.bf16.mxu0 0
      %1795 = vmatpush1.bf16.msra.mxu0 0
      %1796 = vmatprep.subr.bf16.mxu0 0
      %1797 = vmatpush1.bf16.msra.mxu0 0
      %1798 = vmatprep.subr.bf16.mxu0 0
      %1799 = vmatpush1.bf16.msra.mxu0 0
      %1800 = vmatprep.subr.bf16.mxu0 0
      %1801 = vmatpush1.bf16.msra.mxu0 0
      %1802 = vmatprep.subr.bf16.mxu0 0
      %1803 = vmatpush1.bf16.msra.mxu0 0
      %1804 = vmatprep.mubr.bf16.mxu0 0
      %1805 = vmatmul.mubr.bf16.gmra.mrb[0].mxu0 %v1746
      %v1806 = vpop.f32.mrb[0].mxu0
      %v1807 = vadd.f32 0.0, %v1806
      %v1808 = vpop.f32.mrb[0].mxu0
      %v1809 = vpop.f32.mrb[0].mxu0
      %v1810 = vadd.f32 0.0, %v1809
      %v1811 = vpop.f32.mrb[0].mxu0
      %1812 = vmatprep.mubr.bf16.mxu0 0
      %1813 = vmatmul.mubr.bf16.gmra.mrb[0].mxu0 %v1749
      %v1814 = vpop.f32.mrb[0].mxu0
      %v1815 = vadd.f32 0.0, %v1814
      %v1816 = vpop.f32.mrb[0].mxu0
      %v1817 = vpop.f32.mrb[0].mxu0
      %v1818 = vadd.f32 0.0, %v1817
      %v1819 = vpop.f32.mrb[0].mxu0
      %1820 = vmatprep.mubr.bf16.mxu0 0
      %1821 = vmatmul.mubr.bf16.gmra.mrb[0].mxu0 %v1752
      %v1822 = vpop.f32.mrb[0].mxu0
      %v1823 = vadd.f32 0.0, %v1822
      %v1824 = vpop.f32.mrb[0].mxu0
      %v1825 = vpop.f32.mrb[0].mxu0
      %v1826 = vadd.f32 0.0, %v1825
      %v1827 = vpop.f32.mrb[0].mxu0
      %1828 = vmatprep.mubr.bf16.mxu0 0
      %1829 = vmatmul.mubr.bf16.gmra.mrb[0].mxu0 %v1755
      %v1830 = vpop.f32.mrb[0].mxu0
      %v1831 = vadd.f32 0.0, %v1830
      %v1832 = vpop.f32.mrb[0].mxu0
      %v1833 = vpop.f32.mrb[0].mxu0
      %v1834 = vadd.f32 0.0, %v1833
      %v1835 = vpop.f32.mrb[0].mxu0
      %1836 = vmatprep.mubr.bf16.mxu0 0
      %1837 = vmatmul.mubr.bf16.gmra.mrb[0].mxu0 %v1758
      %v1838 = vpop.f32.mrb[0].mxu0
      %v1839 = vadd.f32 0.0, %v1838
      %v1840 = vpop.f32.mrb[0].mxu0
      %v1841 = vpop.f32.mrb[0].mxu0
      %v1842 = vadd.f32 0.0, %v1841
      %v1843 = vpop.f32.mrb[0].mxu0
      %1844 = vmatprep.mubr.bf16.mxu0 0
      %1845 = vmatmul.mubr.bf16.gmra.mrb[0].mxu0 %v1761
      %v1846 = vpop.f32.mrb[0].mxu0
      %v1847 = vadd.f32 0.0, %v1846
      %v1848 = vpop.f32.mrb[0].mxu0
      %v1849 = vpop.f32.mrb[0].mxu0
      %v1850 = vadd.f32 0.0, %v1849
      %v1851 = vpop.f32.mrb[0].mxu0
      %1852 = vmatprep.mubr.bf16.mxu0 0
      %1853 = vmatmul.mubr.bf16.gmra.mrb[0].mxu0 %v1764
      %v1854 = vpop.f32.mrb[0].mxu0
      %v1855 = vadd.f32 0.0, %v1854
      %v1856 = vpop.f32.mrb[0].mxu0
      %v1857 = vpop.f32.mrb[0].mxu0
      %v1858 = vadd.f32 0.0, %v1857
      %v1859 = vpop.f32.mrb[0].mxu0
      %1860 = vmatprep.mubr.bf16.mxu0 0
      %1861 = vmatmul.mubr.bf16.gmra.mrb[0].mxu0 %v1767
      %v1862 = vpop.f32.mrb[0].mxu0
      %v1863 = vadd.f32 0.0, %v1862
      %v1864 = vpop.f32.mrb[0].mxu0
      %v1865 = vpop.f32.mrb[0].mxu0
      %v1866 = vadd.f32 0.0, %v1865
      %v1867 = vpop.f32.mrb[0].mxu0
      %1868 = vdwg.mxu0
      %v1869 = vadd.f32 %v1615, %v1807
      %v1870 = vadd.f32 %v1616, %v1810
      %v1871 = vadd.f32 %v1617, %v1815
      %v1872 = vadd.f32 %v1618, %v1818
      %v1873 = vadd.f32 %v1619, %v1823
      %v1874 = vadd.f32 %v1620, %v1826
      %v1875 = vadd.f32 %v1621, %v1831
      %v1876 = vadd.f32 %v1622, %v1834
      %v1877 = vadd.f32 %v1623, %v1839
      %v1878 = vadd.f32 %v1624, %v1842
      %v1879 = vadd.f32 %v1625, %v1847
      %v1880 = vadd.f32 %v1626, %v1850
      %v1881 = vadd.f32 %v1627, %v1855
      %v1882 = vadd.f32 %v1628, %v1858
      %v1883 = vadd.f32 %v1629, %v1863
      %v1884 = vadd.f32 %v1630, %v1866
      %s1885 = sadd.s32 %s258, 2
      %s1886 = smul.u32 %s1885, 3
      %s1887 = smul.addr %s1886, 4
      %s1888 = scalar_lea.vmem %s233, %s1887
      %v1889 = vld [vmem:[%s1888] sm:$0xf]
      %v1890 = vld [vmem:[%s1888 + $0x4] sm:$0xf]
      %v1891 = vld [vmem:[%s1888 + $0xc] sm:$0xf]
      %v1892 = vld [vmem:[%s1888 + $0x10] sm:$0xf]
      %v1893 = vld [vmem:[%s1888 + $0x18] sm:$0xf]
      %v1894 = vld [vmem:[%s1888 + $0x1c] sm:$0xf]
      %v1895 = vld [vmem:[%s1888 + $0x24] sm:$0xf]
      %v1896 = vld [vmem:[%s1888 + $0x28] sm:$0xf]
      %v1897 = vld [vmem:[%s1888 + $0x30] sm:$0xf]
      %v1898 = vld [vmem:[%s1888 + $0x34] sm:$0xf]
      %v1899 = vld [vmem:[%s1888 + $0x3c] sm:$0xf]
      %v1900 = vld [vmem:[%s1888 + $0x40] sm:$0xf]
      %v1901 = vld [vmem:[%s1888 + $0x48] sm:$0xf]
      %v1902 = vld [vmem:[%s1888 + $0x4c] sm:$0xf]
      %v1903 = vld [vmem:[%s1888 + $0x54] sm:$0xf]
      %v1904 = vld [vmem:[%s1888 + $0x58] sm:$0xf]
      %s1905 = scalar_lea.vmem %s1, 12
      %v1906 = vld [vmem:[%s1905] sm:$0x3]
      %v1923 = vunpack.c.l.b16 %v1889
      %v1924 = vunpack.c.l.b16 %v1890
      %v1925 = vunpack.c.l.b16 %v1891
      %v1926 = vunpack.c.l.b16 %v1892
      %v1927 = vunpack.c.l.b16 %v1893
      %v1928 = vunpack.c.l.b16 %v1894
      %v1929 = vunpack.c.l.b16 %v1895
      %v1930 = vunpack.c.l.b16 %v1896
      %v1931 = vunpack.c.l.b16 %v1897
      %v1932 = vunpack.c.l.b16 %v1898
      %v1933 = vunpack.c.l.b16 %v1899
      %v1934 = vunpack.c.l.b16 %v1900
      %v1935 = vunpack.c.l.b16 %v1901
      %v1936 = vunpack.c.l.b16 %v1902
      %v1937 = vunpack.c.l.b16 %v1903
      %v1938 = vunpack.c.l.b16 %v1904
      %v1939 = vpack.c.b16 %v1924, %v1923
      %v1940 = vpack.c.b16 %v1926, %v1925
      %v1941 = vpack.c.b16 %v1928, %v1927
      %v1942 = vpack.c.b16 %v1930, %v1929
      %v1943 = vpack.c.b16 %v1932, %v1931
      %v1944 = vpack.c.b16 %v1934, %v1933
      %v1945 = vpack.c.b16 %v1936, %v1935
      %v1946 = vpack.c.b16 %v1938, %v1937
      %v1948 = vsel %vm508, %v1939, 0
      %v1951 = vsel %vm508, %v1940, 0
      %v1954 = vsel %vm508, %v1941, 0
      %v1957 = vsel %vm508, %v1942, 0
      %v1960 = vsel %vm508, %v1943, 0
      %v1963 = vsel %vm508, %v1944, 0
      %v1966 = vsel %vm508, %v1945, 0
      %v1969 = vsel %vm508, %v1946, 0
      %v1972 = vsel %vm533, %v1906, 0
      %1974 = vmatprep.subr.bf16.mxu0 0
      %1975 = vmatpush1.bf16.msra.mxu0 %v1972
      %1976 = vmatprep.subr.bf16.mxu0 0
      %1977 = vmatpush1.bf16.msra.mxu0 0
      %1978 = vmatprep.subr.bf16.mxu0 0
      %1979 = vmatpush1.bf16.msra.mxu0 0
      %1980 = vmatprep.subr.bf16.mxu0 0
      %1981 = vmatpush1.bf16.msra.mxu0 0
      %1982 = vmatprep.subr.bf16.mxu0 0
      %1983 = vmatpush1.bf16.msra.mxu0 0
      %1984 = vmatprep.subr.bf16.mxu0 0
      %1985 = vmatpush1.bf16.msra.mxu0 0
      %1986 = vmatprep.subr.bf16.mxu0 0
      %1987 = vmatpush1.bf16.msra.mxu0 0
      %1988 = vmatprep.subr.bf16.mxu0 0
      %1989 = vmatpush1.bf16.msra.mxu0 0
      %1990 = vmatprep.subr.bf16.mxu0 0
      %1991 = vmatpush1.bf16.msra.mxu0 0
      %1992 = vmatprep.subr.bf16.mxu0 0
      %1993 = vmatpush1.bf16.msra.mxu0 0
      %1994 = vmatprep.subr.bf16.mxu0 0
      %1995 = vmatpush1.bf16.msra.mxu0 0
      %1996 = vmatprep.subr.bf16.mxu0 0
      %1997 = vmatpush1.bf16.msra.mxu0 0
      %1998 = vmatprep.subr.bf16.mxu0 0
      %1999 = vmatpush1.bf16.msra.mxu0 0
      %2000 = vmatprep.subr.bf16.mxu0 0
      %2001 = vmatpush1.bf16.msra.mxu0 0
      %2002 = vmatprep.subr.bf16.mxu0 0
      %2003 = vmatpush1.bf16.msra.mxu0 0
      %2004 = vmatprep.subr.bf16.mxu0 0
      %2005 = vmatpush1.bf16.msra.mxu0 0
      %2006 = vmatprep.mubr.bf16.mxu0 0
      %2007 = vmatmul.mubr.bf16.gmra.mrb[0].mxu0 %v1948
      %v2008 = vpop.f32.mrb[0].mxu0
      %v2009 = vadd.f32 0.0, %v2008
      %v2010 = vpop.f32.mrb[0].mxu0
      %v2011 = vpop.f32.mrb[0].mxu0
      %v2012 = vadd.f32 0.0, %v2011
      %v2013 = vpop.f32.mrb[0].mxu0
      %2014 = vmatprep.mubr.bf16.mxu0 0
      %2015 = vmatmul.mubr.bf16.gmra.mrb[0].mxu0 %v1951
      %v2016 = vpop.f32.mrb[0].mxu0
      %v2017 = vadd.f32 0.0, %v2016
      %v2018 = vpop.f32.mrb[0].mxu0
      %v2019 = vpop.f32.mrb[0].mxu0
      %v2020 = vadd.f32 0.0, %v2019
      %v2021 = vpop.f32.mrb[0].mxu0
      %2022 = vmatprep.mubr.bf16.mxu0 0
      %2023 = vmatmul.mubr.bf16.gmra.mrb[0].mxu0 %v1954
      %v2024 = vpop.f32.mrb[0].mxu0
      %v2025 = vadd.f32 0.0, %v2024
      %v2026 = vpop.f32.mrb[0].mxu0
      %v2027 = vpop.f32.mrb[0].mxu0
      %v2028 = vadd.f32 0.0, %v2027
      %v2029 = vpop.f32.mrb[0].mxu0
      %2030 = vmatprep.mubr.bf16.mxu0 0
      %2031 = vmatmul.mubr.bf16.gmra.mrb[0].mxu0 %v1957
      %v2032 = vpop.f32.mrb[0].mxu0
      %v2033 = vadd.f32 0.0, %v2032
      %v2034 = vpop.f32.mrb[0].mxu0
      %v2035 = vpop.f32.mrb[0].mxu0
      %v2036 = vadd.f32 0.0, %v2035
      %v2037 = vpop.f32.mrb[0].mxu0
      %2038 = vmatprep.mubr.bf16.mxu0 0
      %2039 = vmatmul.mubr.bf16.gmra.mrb[0].mxu0 %v1960
      %v2040 = vpop.f32.mrb[0].mxu0
      %v2041 = vadd.f32 0.0, %v2040
      %v2042 = vpop.f32.mrb[0].mxu0
      %v2043 = vpop.f32.mrb[0].mxu0
      %v2044 = vadd.f32 0.0, %v2043
      %v2045 = vpop.f32.mrb[0].mxu0
      %2046 = vmatprep.mubr.bf16.mxu0 0
      %2047 = vmatmul.mubr.bf16.gmra.mrb[0].mxu0 %v1963
      %v2048 = vpop.f32.mrb[0].mxu0
      %v2049 = vadd.f32 0.0, %v2048
      %v2050 = vpop.f32.mrb[0].mxu0
      %v2051 = vpop.f32.mrb[0].mxu0
      %v2052 = vadd.f32 0.0, %v2051
      %v2053 = vpop.f32.mrb[0].mxu0
      %2054 = vmatprep.mubr.bf16.mxu0 0
      %2055 = vmatmul.mubr.bf16.gmra.mrb[0].mxu0 %v1966
      %v2056 = vpop.f32.mrb[0].mxu0
      %v2057 = vadd.f32 0.0, %v2056
      %v2058 = vpop.f32.mrb[0].mxu0
      %v2059 = vpop.f32.mrb[0].mxu0
      %v2060 = vadd.f32 0.0, %v2059
      %v2061 = vpop.f32.mrb[0].mxu0
      %2062 = vmatprep.mubr.bf16.mxu0 0
      %2063 = vmatmul.mubr.bf16.gmra.mrb[0].mxu0 %v1969
      %v2064 = vpop.f32.mrb[0].mxu0
      %v2065 = vadd.f32 0.0, %v2064
      %v2066 = vpop.f32.mrb[0].mxu0
      %v2067 = vpop.f32.mrb[0].mxu0
      %v2068 = vadd.f32 0.0, %v2067
      %v2069 = vpop.f32.mrb[0].mxu0
      %2070 = vdwg.mxu0
      %v2071 = vadd.f32 %v1869, %v2009
      %v2072 = vadd.f32 %v1870, %v2012
      %v2073 = vadd.f32 %v1871, %v2017
      %v2074 = vadd.f32 %v1872, %v2020
      %v2075 = vadd.f32 %v1873, %v2025
      %v2076 = vadd.f32 %v1874, %v2028
      %v2077 = vadd.f32 %v1875, %v2033
      %v2078 = vadd.f32 %v1876, %v2036
      %v2079 = vadd.f32 %v1877, %v2041
      %v2080 = vadd.f32 %v1878, %v2044
      %v2081 = vadd.f32 %v1879, %v2049
      %v2082 = vadd.f32 %v1880, %v2052
      %v2083 = vadd.f32 %v1881, %v2057
      %v2084 = vadd.f32 %v1882, %v2060
      %v2085 = vadd.f32 %v1883, %v2065
      %v2086 = vadd.f32 %v1884, %v2068
      %v2087 = vld [vmem:[%s1888] sm:$0xf]
      %v2088 = vld [vmem:[%s1888 + $0x4] sm:$0xf]
      %v2089 = vld [vmem:[%s1888 + $0x8] sm:$0x1]
      %v2090 = vld [vmem:[%s1888 + $0xc] sm:$0xf]
      %v2091 = vld [vmem:[%s1888 + $0x10] sm:$0xf]
      %v2092 = vld [vmem:[%s1888 + $0x14] sm:$0x1]
      %v2093 = vld [vmem:[%s1888 + $0x18] sm:$0xf]
      %v2094 = vld [vmem:[%s1888 + $0x1c] sm:$0xf]
      %v2095 = vld [vmem:[%s1888 + $0x20] sm:$0x1]
      %v2096 = vld [vmem:[%s1888 + $0x24] sm:$0xf]
      %v2097 = vld [vmem:[%s1888 + $0x28] sm:$0xf]
      %v2098 = vld [vmem:[%s1888 + $0x2c] sm:$0x1]
      %v2099 = vld [vmem:[%s1888 + $0x30] sm:$0xf]
      %v2100 = vld [vmem:[%s1888 + $0x34] sm:$0xf]
      %v2101 = vld [vmem:[%s1888 + $0x38] sm:$0x1]
      %v2102 = vld [vmem:[%s1888 + $0x3c] sm:$0xf]
      %v2103 = vld [vmem:[%s1888 + $0x40] sm:$0xf]
      %v2104 = vld [vmem:[%s1888 + $0x44] sm:$0x1]
      %v2105 = vld [vmem:[%s1888 + $0x48] sm:$0xf]
      %v2106 = vld [vmem:[%s1888 + $0x4c] sm:$0xf]
      %v2107 = vld [vmem:[%s1888 + $0x50] sm:$0x1]
      %v2108 = vld [vmem:[%s1888 + $0x54] sm:$0xf]
      %v2109 = vld [vmem:[%s1888 + $0x58] sm:$0xf]
      %v2110 = vld [vmem:[%s1888 + $0x5c] sm:$0x1]
      %v2112 = vshrl.u32 %v2087, 16
      %v2114 = vrot.slane %v2112, 4
      %v2115 = vshll.u32 %v2087, 16
      %v2117 = vrot.slane %v2115, 5
      %v2118 = vor.u32 %v2114, %v2117
      %v2119 = vrot.slane %v2118, 4
      %v2121 = vshll.u32 %v2088, 16
      %v2123 = vrot.slane %v2121, 5
      %v2124 = vsel %vm289, %v2119, %v2123
      %v2125 = vshrl.u32 %v2088, 16
      %v2127 = vrot.slane %v2125, 4
      %v2128 = vor.u32 %v2127, %v2123
      %v2129 = vrot.slane %v2128, 4
      %v2131 = vshll.u32 %v2089, 16
      %v2133 = vrot.slane %v2131, 5
      %v2134 = vsel %vm289, %v2129, %v2133
      %v2136 = vshrl.u32 %v2090, 16
      %v2138 = vrot.slane %v2136, 4
      %v2139 = vshll.u32 %v2090, 16
      %v2141 = vrot.slane %v2139, 5
      %v2142 = vor.u32 %v2138, %v2141
      %v2143 = vrot.slane %v2142, 4
      %v2145 = vshll.u32 %v2091, 16
      %v2147 = vrot.slane %v2145, 5
      %v2148 = vsel %vm289, %v2143, %v2147
      %v2149 = vshrl.u32 %v2091, 16
      %v2151 = vrot.slane %v2149, 4
      %v2152 = vor.u32 %v2151, %v2147
      %v2153 = vrot.slane %v2152, 4
      %v2155 = vshll.u32 %v2092, 16
      %v2157 = vrot.slane %v2155, 5
      %v2158 = vsel %vm289, %v2153, %v2157
      %v2160 = vshrl.u32 %v2093, 16
      %v2162 = vrot.slane %v2160, 4
      %v2163 = vshll.u32 %v2093, 16
      %v2165 = vrot.slane %v2163, 5
      %v2166 = vor.u32 %v2162, %v2165
      %v2167 = vrot.slane %v2166, 4
      %v2169 = vshll.u32 %v2094, 16
      %v2171 = vrot.slane %v2169, 5
      %v2172 = vsel %vm289, %v2167, %v2171
      %v2173 = vshrl.u32 %v2094, 16
      %v2175 = vrot.slane %v2173, 4
      %v2176 = vor.u32 %v2175, %v2171
      %v2177 = vrot.slane %v2176, 4
      %v2179 = vshll.u32 %v2095, 16
      %v2181 = vrot.slane %v2179, 5
      %v2182 = vsel %vm289, %v2177, %v2181
      %v2184 = vshrl.u32 %v2096, 16
      %v2186 = vrot.slane %v2184, 4
      %v2187 = vshll.u32 %v2096, 16
      %v2189 = vrot.slane %v2187, 5
      %v2190 = vor.u32 %v2186, %v2189
      %v2191 = vrot.slane %v2190, 4
      %v2193 = vshll.u32 %v2097, 16
      %v2195 = vrot.slane %v2193, 5
      %v2196 = vsel %vm289, %v2191, %v2195
      %v2197 = vshrl.u32 %v2097, 16
      %v2199 = vrot.slane %v2197, 4
      %v2200 = vor.u32 %v2199, %v2195
      %v2201 = vrot.slane %v2200, 4
      %v2203 = vshll.u32 %v2098, 16
      %v2205 = vrot.slane %v2203, 5
      %v2206 = vsel %vm289, %v2201, %v2205
      %v2208 = vshrl.u32 %v2099, 16
      %v2210 = vrot.slane %v2208, 4
      %v2211 = vshll.u32 %v2099, 16
      %v2213 = vrot.slane %v2211, 5
      %v2214 = vor.u32 %v2210, %v2213
      %v2215 = vrot.slane %v2214, 4
      %v2217 = vshll.u32 %v2100, 16
      %v2219 = vrot.slane %v2217, 5
      %v2220 = vsel %vm289, %v2215, %v2219
      %v2221 = vshrl.u32 %v2100, 16
      %v2223 = vrot.slane %v2221, 4
      %v2224 = vor.u32 %v2223, %v2219
      %v2225 = vrot.slane %v2224, 4
      %v2227 = vshll.u32 %v2101, 16
      %v2229 = vrot.slane %v2227, 5
      %v2230 = vsel %vm289, %v2225, %v2229
      %v2232 = vshrl.u32 %v2102, 16
      %v2234 = vrot.slane %v2232, 4
      %v2235 = vshll.u32 %v2102, 16
      %v2237 = vrot.slane %v2235, 5
      %v2238 = vor.u32 %v2234, %v2237
      %v2239 = vrot.slane %v2238, 4
      %v2241 = vshll.u32 %v2103, 16
      %v2243 = vrot.slane %v2241, 5
      %v2244 = vsel %vm289, %v2239, %v2243
      %v2245 = vshrl.u32 %v2103, 16
      %v2247 = vrot.slane %v2245, 4
      %v2248 = vor.u32 %v2247, %v2243
      %v2249 = vrot.slane %v2248, 4
      %v2251 = vshll.u32 %v2104, 16
      %v2253 = vrot.slane %v2251, 5
      %v2254 = vsel %vm289, %v2249, %v2253
      %v2256 = vshrl.u32 %v2105, 16
      %v2258 = vrot.slane %v2256, 4
      %v2259 = vshll.u32 %v2105, 16
      %v2261 = vrot.slane %v2259, 5
      %v2262 = vor.u32 %v2258, %v2261
      %v2263 = vrot.slane %v2262, 4
      %v2265 = vshll.u32 %v2106, 16
      %v2267 = vrot.slane %v2265, 5
      %v2268 = vsel %vm289, %v2263, %v2267
      %v2269 = vshrl.u32 %v2106, 16
      %v2271 = vrot.slane %v2269, 4
      %v2272 = vor.u32 %v2271, %v2267
      %v2273 = vrot.slane %v2272, 4
      %v2275 = vshll.u32 %v2107, 16
      %v2277 = vrot.slane %v2275, 5
      %v2278 = vsel %vm289, %v2273, %v2277
      %v2280 = vshrl.u32 %v2108, 16
      %v2282 = vrot.slane %v2280, 4
      %v2283 = vshll.u32 %v2108, 16
      %v2285 = vrot.slane %v2283, 5
      %v2286 = vor.u32 %v2282, %v2285
      %v2287 = vrot.slane %v2286, 4
      %v2289 = vshll.u32 %v2109, 16
      %v2291 = vrot.slane %v2289, 5
      %v2292 = vsel %vm289, %v2287, %v2291
      %v2293 = vshrl.u32 %v2109, 16
      %v2295 = vrot.slane %v2293, 4
      %v2296 = vor.u32 %v2295, %v2291
      %v2297 = vrot.slane %v2296, 4
      %v2299 = vshll.u32 %v2110, 16
      %v2301 = vrot.slane %v2299, 5
      %v2302 = vsel %vm289, %v2297, %v2301
      %s2303 = scalar_lea.vmem %s1, 14
      %v2304 = vld [vmem:[%s2303] sm:$0x3]
      %v2305 = vunpack.c.l.b16 %v2124
      %v2306 = vunpack.c.l.b16 %v2134
      %v2307 = vunpack.c.l.b16 %v2148
      %v2308 = vunpack.c.l.b16 %v2158
      %v2309 = vunpack.c.l.b16 %v2172
      %v2310 = vunpack.c.l.b16 %v2182
      %v2311 = vunpack.c.l.b16 %v2196
      %v2312 = vunpack.c.l.b16 %v2206
      %v2313 = vunpack.c.l.b16 %v2220
      %v2314 = vunpack.c.l.b16 %v2230
      %v2315 = vunpack.c.l.b16 %v2244
      %v2316 = vunpack.c.l.b16 %v2254
      %v2317 = vunpack.c.l.b16 %v2268
      %v2318 = vunpack.c.l.b16 %v2278
      %v2319 = vunpack.c.l.b16 %v2292
      %v2320 = vunpack.c.l.b16 %v2302
      %v2321 = vpack.c.b16 %v2306, %v2305
      %v2322 = vpack.c.b16 %v2308, %v2307
      %v2323 = vpack.c.b16 %v2310, %v2309
      %v2324 = vpack.c.b16 %v2312, %v2311
      %v2325 = vpack.c.b16 %v2314, %v2313
      %v2326 = vpack.c.b16 %v2316, %v2315
      %v2327 = vpack.c.b16 %v2318, %v2317
      %v2328 = vpack.c.b16 %v2320, %v2319
      %v2330 = vsel %vm508, %v2321, 0
      %v2333 = vsel %vm508, %v2322, 0
      %v2336 = vsel %vm508, %v2323, 0
      %v2339 = vsel %vm508, %v2324, 0
      %v2342 = vsel %vm508, %v2325, 0
      %v2345 = vsel %vm508, %v2326, 0
      %v2348 = vsel %vm508, %v2327, 0
      %v2351 = vsel %vm508, %v2328, 0
      %v2354 = vsel %vm533, %v2304, 0
      %2356 = vmatprep.subr.bf16.mxu0 0
      %2357 = vmatpush1.bf16.msra.mxu0 %v2354
      %2358 = vmatprep.subr.bf16.mxu0 0
      %2359 = vmatpush1.bf16.msra.mxu0 0
      %2360 = vmatprep.subr.bf16.mxu0 0
      %2361 = vmatpush1.bf16.msra.mxu0 0
      %2362 = vmatprep.subr.bf16.mxu0 0
      %2363 = vmatpush1.bf16.msra.mxu0 0
      %2364 = vmatprep.subr.bf16.mxu0 0
      %2365 = vmatpush1.bf16.msra.mxu0 0
      %2366 = vmatprep.subr.bf16.mxu0 0
      %2367 = vmatpush1.bf16.msra.mxu0 0
      %2368 = vmatprep.subr.bf16.mxu0 0
      %2369 = vmatpush1.bf16.msra.mxu0 0
      %2370 = vmatprep.subr.bf16.mxu0 0
      %2371 = vmatpush1.bf16.msra.mxu0 0
      %2372 = vmatprep.subr.bf16.mxu0 0
      %2373 = vmatpush1.bf16.msra.mxu0 0
      %2374 = vmatprep.subr.bf16.mxu0 0
      %2375 = vmatpush1.bf16.msra.mxu0 0
      %2376 = vmatprep.subr.bf16.mxu0 0
      %2377 = vmatpush1.bf16.msra.mxu0 0
      %2378 = vmatprep.subr.bf16.mxu0 0
      %2379 = vmatpush1.bf16.msra.mxu0 0
      %2380 = vmatprep.subr.bf16.mxu0 0
      %2381 = vmatpush1.bf16.msra.mxu0 0
      %2382 = vmatprep.subr.bf16.mxu0 0
      %2383 = vmatpush1.bf16.msra.mxu0 0
      %2384 = vmatprep.subr.bf16.mxu0 0
      %2385 = vmatpush1.bf16.msra.mxu0 0
      %2386 = vmatprep.subr.bf16.mxu0 0
      %2387 = vmatpush1.bf16.msra.mxu0 0
      %2388 = vmatprep.mubr.bf16.mxu0 0
      %2389 = vmatmul.mubr.bf16.gmra.mrb[0].mxu0 %v2330
      %v2390 = vpop.f32.mrb[0].mxu0
      %v2391 = vadd.f32 0.0, %v2390
      %v2392 = vpop.f32.mrb[0].mxu0
      %v2393 = vpop.f32.mrb[0].mxu0
      %v2394 = vadd.f32 0.0, %v2393
      %v2395 = vpop.f32.mrb[0].mxu0
      %2396 = vmatprep.mubr.bf16.mxu0 0
      %2397 = vmatmul.mubr.bf16.gmra.mrb[0].mxu0 %v2333
      %v2398 = vpop.f32.mrb[0].mxu0
      %v2399 = vadd.f32 0.0, %v2398
      %v2400 = vpop.f32.mrb[0].mxu0
      %v2401 = vpop.f32.mrb[0].mxu0
      %v2402 = vadd.f32 0.0, %v2401
      %v2403 = vpop.f32.mrb[0].mxu0
      %2404 = vmatprep.mubr.bf16.mxu0 0
      %2405 = vmatmul.mubr.bf16.gmra.mrb[0].mxu0 %v2336
      %v2406 = vpop.f32.mrb[0].mxu0
      %v2407 = vadd.f32 0.0, %v2406
      %v2408 = vpop.f32.mrb[0].mxu0
      %v2409 = vpop.f32.mrb[0].mxu0
      %v2410 = vadd.f32 0.0, %v2409
      %v2411 = vpop.f32.mrb[0].mxu0
      %2412 = vmatprep.mubr.bf16.mxu0 0
      %2413 = vmatmul.mubr.bf16.gmra.mrb[0].mxu0 %v2339
      %v2414 = vpop.f32.mrb[0].mxu0
      %v2415 = vadd.f32 0.0, %v2414
      %v2416 = vpop.f32.mrb[0].mxu0
      %v2417 = vpop.f32.mrb[0].mxu0
      %v2418 = vadd.f32 0.0, %v2417
      %v2419 = vpop.f32.mrb[0].mxu0
      %2420 = vmatprep.mubr.bf16.mxu0 0
      %2421 = vmatmul.mubr.bf16.gmra.mrb[0].mxu0 %v2342
      %v2422 = vpop.f32.mrb[0].mxu0
      %v2423 = vadd.f32 0.0, %v2422
      %v2424 = vpop.f32.mrb[0].mxu0
      %v2425 = vpop.f32.mrb[0].mxu0
      %v2426 = vadd.f32 0.0, %v2425
      %v2427 = vpop.f32.mrb[0].mxu0
      %2428 = vmatprep.mubr.bf16.mxu0 0
      %2429 = vmatmul.mubr.bf16.gmra.mrb[0].mxu0 %v2345
      %v2430 = vpop.f32.mrb[0].mxu0
      %v2431 = vadd.f32 0.0, %v2430
      %v2432 = vpop.f32.mrb[0].mxu0
      %v2433 = vpop.f32.mrb[0].mxu0
      %v2434 = vadd.f32 0.0, %v2433
      %v2435 = vpop.f32.mrb[0].mxu0
      %2436 = vmatprep.mubr.bf16.mxu0 0
      %2437 = vmatmul.mubr.bf16.gmra.mrb[0].mxu0 %v2348
      %v2438 = vpop.f32.mrb[0].mxu0
      %v2439 = vadd.f32 0.0, %v2438
      %v2440 = vpop.f32.mrb[0].mxu0
      %v2441 = vpop.f32.mrb[0].mxu0
      %v2442 = vadd.f32 0.0, %v2441
      %v2443 = vpop.f32.mrb[0].mxu0
      %2444 = vmatprep.mubr.bf16.mxu0 0
      %2445 = vmatmul.mubr.bf16.gmra.mrb[0].mxu0 %v2351
      %v2446 = vpop.f32.mrb[0].mxu0
      %v2447 = vadd.f32 0.0, %v2446
      %v2448 = vpop.f32.mrb[0].mxu0
      %v2449 = vpop.f32.mrb[0].mxu0
      %v2450 = vadd.f32 0.0, %v2449
      %v2451 = vpop.f32.mrb[0].mxu0
      %2452 = vdwg.mxu0
      %v2453 = vadd.f32 %v2071, %v2391
      %v2454 = vadd.f32 %v2072, %v2394
      %v2455 = vadd.f32 %v2073, %v2399
      %v2456 = vadd.f32 %v2074, %v2402
      %v2457 = vadd.f32 %v2075, %v2407
      %v2458 = vadd.f32 %v2076, %v2410
      %v2459 = vadd.f32 %v2077, %v2415
      %v2460 = vadd.f32 %v2078, %v2418
      %v2461 = vadd.f32 %v2079, %v2423
      %v2462 = vadd.f32 %v2080, %v2426
      %v2463 = vadd.f32 %v2081, %v2431
      %v2464 = vadd.f32 %v2082, %v2434
      %v2465 = vadd.f32 %v2083, %v2439
      %v2466 = vadd.f32 %v2084, %v2442
      %v2467 = vadd.f32 %v2085, %v2447
      %v2468 = vadd.f32 %v2086, %v2450
      %v2469 = vld [vmem:[%s1888] sm:$0xe]
      %v2470 = vld [vmem:[%s1888 + $0xc] sm:$0xe]
      %v2471 = vld [vmem:[%s1888 + $0x18] sm:$0xe]
      %v2472 = vld [vmem:[%s1888 + $0x24] sm:$0xe]
      %v2473 = vld [vmem:[%s1888 + $0x30] sm:$0xe]
      %v2474 = vld [vmem:[%s1888 + $0x3c] sm:$0xe]
      %v2475 = vld [vmem:[%s1888 + $0x48] sm:$0xe]
      %v2476 = vld [vmem:[%s1888 + $0x54] sm:$0xe]
      %v2501 = vrot.slane %v2469, 5
      %v2502 = vrot.slane %v2501, 4
      %v2503 = vrot.slane %v2088, 5
      %v2504 = vsel %vm824, %v2502, %v2503
      %v2505 = vrot.slane %v2503, 4
      %v2506 = vrot.slane %v2089, 5
      %v2507 = vsel %vm824, %v2505, %v2506
      %v2508 = vrot.slane %v2470, 5
      %v2509 = vrot.slane %v2508, 4
      %v2510 = vrot.slane %v2091, 5
      %v2511 = vsel %vm824, %v2509, %v2510
      %v2512 = vrot.slane %v2510, 4
      %v2513 = vrot.slane %v2092, 5
      %v2514 = vsel %vm824, %v2512, %v2513
      %v2515 = vrot.slane %v2471, 5
      %v2516 = vrot.slane %v2515, 4
      %v2517 = vrot.slane %v2094, 5
      %v2518 = vsel %vm824, %v2516, %v2517
      %v2519 = vrot.slane %v2517, 4
      %v2520 = vrot.slane %v2095, 5
      %v2521 = vsel %vm824, %v2519, %v2520
      %v2522 = vrot.slane %v2472, 5
      %v2523 = vrot.slane %v2522, 4
      %v2524 = vrot.slane %v2097, 5
      %v2525 = vsel %vm824, %v2523, %v2524
      %v2526 = vrot.slane %v2524, 4
      %v2527 = vrot.slane %v2098, 5
      %v2528 = vsel %vm824, %v2526, %v2527
      %v2529 = vrot.slane %v2473, 5
      %v2530 = vrot.slane %v2529, 4
      %v2531 = vrot.slane %v2100, 5
      %v2532 = vsel %vm824, %v2530, %v2531
      %v2533 = vrot.slane %v2531, 4
      %v2534 = vrot.slane %v2101, 5
      %v2535 = vsel %vm824, %v2533, %v2534
      %v2536 = vrot.slane %v2474, 5
      %v2537 = vrot.slane %v2536, 4
      %v2538 = vrot.slane %v2103, 5
      %v2539 = vsel %vm824, %v2537, %v2538
      %v2540 = vrot.slane %v2538, 4
      %v2541 = vrot.slane %v2104, 5
      %v2542 = vsel %vm824, %v2540, %v2541
      %v2543 = vrot.slane %v2475, 5
      %v2544 = vrot.slane %v2543, 4
      %v2545 = vrot.slane %v2106, 5
      %v2546 = vsel %vm824, %v2544, %v2545
      %v2547 = vrot.slane %v2545, 4
      %v2548 = vrot.slane %v2107, 5
      %v2549 = vsel %vm824, %v2547, %v2548
      %v2550 = vrot.slane %v2476, 5
      %v2551 = vrot.slane %v2550, 4
      %v2552 = vrot.slane %v2109, 5
      %v2553 = vsel %vm824, %v2551, %v2552
      %v2554 = vrot.slane %v2552, 4
      %v2555 = vrot.slane %v2110, 5
      %v2556 = vsel %vm824, %v2554, %v2555
      %s2557 = scalar_lea.vmem %s1, 16
      %v2558 = vld [vmem:[%s2557] sm:$0x3]
      %v2559 = vunpack.c.l.b16 %v2504
      %v2560 = vunpack.c.l.b16 %v2507
      %v2561 = vunpack.c.l.b16 %v2511
      %v2562 = vunpack.c.l.b16 %v2514
      %v2563 = vunpack.c.l.b16 %v2518
      %v2564 = vunpack.c.l.b16 %v2521
      %v2565 = vunpack.c.l.b16 %v2525
      %v2566 = vunpack.c.l.b16 %v2528
      %v2567 = vunpack.c.l.b16 %v2532
      %v2568 = vunpack.c.l.b16 %v2535
      %v2569 = vunpack.c.l.b16 %v2539
      %v2570 = vunpack.c.l.b16 %v2542
      %v2571 = vunpack.c.l.b16 %v2546
      %v2572 = vunpack.c.l.b16 %v2549
      %v2573 = vunpack.c.l.b16 %v2553
      %v2574 = vunpack.c.l.b16 %v2556
      %v2575 = vpack.c.b16 %v2560, %v2559
      %v2576 = vpack.c.b16 %v2562, %v2561
      %v2577 = vpack.c.b16 %v2564, %v2563
      %v2578 = vpack.c.b16 %v2566, %v2565
      %v2579 = vpack.c.b16 %v2568, %v2567
      %v2580 = vpack.c.b16 %v2570, %v2569
      %v2581 = vpack.c.b16 %v2572, %v2571
      %v2582 = vpack.c.b16 %v2574, %v2573
      %v2584 = vsel %vm508, %v2575, 0
      %v2587 = vsel %vm508, %v2576, 0
      %v2590 = vsel %vm508, %v2577, 0
      %v2593 = vsel %vm508, %v2578, 0
      %v2596 = vsel %vm508, %v2579, 0
      %v2599 = vsel %vm508, %v2580, 0
      %v2602 = vsel %vm508, %v2581, 0
      %v2605 = vsel %vm508, %v2582, 0
      %v2608 = vsel %vm533, %v2558, 0
      %2610 = vmatprep.subr.bf16.mxu0 0
      %2611 = vmatpush1.bf16.msra.mxu0 %v2608
      %2612 = vmatprep.subr.bf16.mxu0 0
      %2613 = vmatpush1.bf16.msra.mxu0 0
      %2614 = vmatprep.subr.bf16.mxu0 0
      %2615 = vmatpush1.bf16.msra.mxu0 0
      %2616 = vmatprep.subr.bf16.mxu0 0
      %2617 = vmatpush1.bf16.msra.mxu0 0
      %2618 = vmatprep.subr.bf16.mxu0 0
      %2619 = vmatpush1.bf16.msra.mxu0 0
      %2620 = vmatprep.subr.bf16.mxu0 0
      %2621 = vmatpush1.bf16.msra.mxu0 0
      %2622 = vmatprep.subr.bf16.mxu0 0
      %2623 = vmatpush1.bf16.msra.mxu0 0
      %2624 = vmatprep.subr.bf16.mxu0 0
      %2625 = vmatpush1.bf16.msra.mxu0 0
      %2626 = vmatprep.subr.bf16.mxu0 0
      %2627 = vmatpush1.bf16.msra.mxu0 0
      %2628 = vmatprep.subr.bf16.mxu0 0
      %2629 = vmatpush1.bf16.msra.mxu0 0
      %2630 = vmatprep.subr.bf16.mxu0 0
      %2631 = vmatpush1.bf16.msra.mxu0 0
      %2632 = vmatprep.subr.bf16.mxu0 0
      %2633 = vmatpush1.bf16.msra.mxu0 0
      %2634 = vmatprep.subr.bf16.mxu0 0
      %2635 = vmatpush1.bf16.msra.mxu0 0
      %2636 = vmatprep.subr.bf16.mxu0 0
      %2637 = vmatpush1.bf16.msra.mxu0 0
      %2638 = vmatprep.subr.bf16.mxu0 0
      %2639 = vmatpush1.bf16.msra.mxu0 0
      %2640 = vmatprep.subr.bf16.mxu0 0
      %2641 = vmatpush1.bf16.msra.mxu0 0
      %2642 = vmatprep.mubr.bf16.mxu0 0
      %2643 = vmatmul.mubr.bf16.gmra.mrb[0].mxu0 %v2584
      %v2644 = vpop.f32.mrb[0].mxu0
      %v2645 = vadd.f32 0.0, %v2644
      %v2646 = vpop.f32.mrb[0].mxu0
      %v2647 = vpop.f32.mrb[0].mxu0
      %v2648 = vadd.f32 0.0, %v2647
      %v2649 = vpop.f32.mrb[0].mxu0
      %2650 = vmatprep.mubr.bf16.mxu0 0
      %2651 = vmatmul.mubr.bf16.gmra.mrb[0].mxu0 %v2587
      %v2652 = vpop.f32.mrb[0].mxu0
      %v2653 = vadd.f32 0.0, %v2652
      %v2654 = vpop.f32.mrb[0].mxu0
      %v2655 = vpop.f32.mrb[0].mxu0
      %v2656 = vadd.f32 0.0, %v2655
      %v2657 = vpop.f32.mrb[0].mxu0
      %2658 = vmatprep.mubr.bf16.mxu0 0
      %2659 = vmatmul.mubr.bf16.gmra.mrb[0].mxu0 %v2590
      %v2660 = vpop.f32.mrb[0].mxu0
      %v2661 = vadd.f32 0.0, %v2660
      %v2662 = vpop.f32.mrb[0].mxu0
      %v2663 = vpop.f32.mrb[0].mxu0
      %v2664 = vadd.f32 0.0, %v2663
      %v2665 = vpop.f32.mrb[0].mxu0
      %2666 = vmatprep.mubr.bf16.mxu0 0
      %2667 = vmatmul.mubr.bf16.gmra.mrb[0].mxu0 %v2593
      %v2668 = vpop.f32.mrb[0].mxu0
      %v2669 = vadd.f32 0.0, %v2668
      %v2670 = vpop.f32.mrb[0].mxu0
      %v2671 = vpop.f32.mrb[0].mxu0
      %v2672 = vadd.f32 0.0, %v2671
      %v2673 = vpop.f32.mrb[0].mxu0
      %2674 = vmatprep.mubr.bf16.mxu0 0
      %2675 = vmatmul.mubr.bf16.gmra.mrb[0].mxu0 %v2596
      %v2676 = vpop.f32.mrb[0].mxu0
      %v2677 = vadd.f32 0.0, %v2676
      %v2678 = vpop.f32.mrb[0].mxu0
      %v2679 = vpop.f32.mrb[0].mxu0
      %v2680 = vadd.f32 0.0, %v2679
      %v2681 = vpop.f32.mrb[0].mxu0
      %2682 = vmatprep.mubr.bf16.mxu0 0
      %2683 = vmatmul.mubr.bf16.gmra.mrb[0].mxu0 %v2599
      %v2684 = vpop.f32.mrb[0].mxu0
      %v2685 = vadd.f32 0.0, %v2684
      %v2686 = vpop.f32.mrb[0].mxu0
      %v2687 = vpop.f32.mrb[0].mxu0
      %v2688 = vadd.f32 0.0, %v2687
      %v2689 = vpop.f32.mrb[0].mxu0
      %2690 = vmatprep.mubr.bf16.mxu0 0
      %2691 = vmatmul.mubr.bf16.gmra.mrb[0].mxu0 %v2602
      %v2692 = vpop.f32.mrb[0].mxu0
      %v2693 = vadd.f32 0.0, %v2692
      %v2694 = vpop.f32.mrb[0].mxu0
      %v2695 = vpop.f32.mrb[0].mxu0
      %v2696 = vadd.f32 0.0, %v2695
      %v2697 = vpop.f32.mrb[0].mxu0
      %2698 = vmatprep.mubr.bf16.mxu0 0
      %2699 = vmatmul.mubr.bf16.gmra.mrb[0].mxu0 %v2605
      %v2700 = vpop.f32.mrb[0].mxu0
      %v2701 = vadd.f32 0.0, %v2700
      %v2702 = vpop.f32.mrb[0].mxu0
      %v2703 = vpop.f32.mrb[0].mxu0
      %v2704 = vadd.f32 0.0, %v2703
      %v2705 = vpop.f32.mrb[0].mxu0
      %2706 = vdwg.mxu0
      %v2707 = vadd.f32 %v2453, %v2645
      %v2708 = vadd.f32 %v2454, %v2648
      %v2709 = vadd.f32 %v2455, %v2653
      %v2710 = vadd.f32 %v2456, %v2656
      %v2711 = vadd.f32 %v2457, %v2661
      %v2712 = vadd.f32 %v2458, %v2664
      %v2713 = vadd.f32 %v2459, %v2669
      %v2714 = vadd.f32 %v2460, %v2672
      %v2715 = vadd.f32 %v2461, %v2677
      %v2716 = vadd.f32 %v2462, %v2680
      %v2717 = vadd.f32 %v2463, %v2685
      %v2718 = vadd.f32 %v2464, %v2688
      %v2719 = vadd.f32 %v2465, %v2693
      %v2720 = vadd.f32 %v2466, %v2696
      %v2721 = vadd.f32 %v2467, %v2701
      %v2722 = vadd.f32 %v2468, %v2704
      %v2723 = vpack.c.bf16 %v2708, %v2707
      %v2724 = vpack.c.bf16 %v2710, %v2709
      %v2725 = vpack.c.bf16 %v2712, %v2711
      %v2726 = vpack.c.bf16 %v2714, %v2713
      %v2727 = vpack.c.bf16 %v2716, %v2715
      %v2728 = vpack.c.bf16 %v2718, %v2717
      %v2729 = vpack.c.bf16 %v2720, %v2719
      %v2730 = vpack.c.bf16 %v2722, %v2721
      %v2739 = vunpack.c.l.b16 %v2723
      %v2740 = vunpack.c.h.b16 %v2723
      %v2741 = vunpack.c.l.b16 %v2724
      %v2742 = vunpack.c.h.b16 %v2724
      %v2743 = vunpack.c.l.b16 %v2725
      %v2744 = vunpack.c.h.b16 %v2725
      %v2745 = vunpack.c.l.b16 %v2726
      %v2746 = vunpack.c.h.b16 %v2726
      %v2747 = vunpack.c.l.b16 %v2727
      %v2748 = vunpack.c.h.b16 %v2727
      %v2749 = vunpack.c.l.b16 %v2728
      %v2750 = vunpack.c.h.b16 %v2728
      %v2751 = vunpack.c.l.b16 %v2729
      %v2752 = vunpack.c.h.b16 %v2729
      %v2753 = vunpack.c.l.b16 %v2730
      %v2754 = vunpack.c.h.b16 %v2730
      %v2755 = vpack.c.b16 %v2739, %v2739
      %v2756 = vpack.c.b16 %v2740, %v2740
      %v2757 = vpack.c.b16 %v2741, %v2741
      %v2758 = vpack.c.b16 %v2742, %v2742
      %v2759 = vpack.c.b16 %v2743, %v2743
      %v2760 = vpack.c.b16 %v2744, %v2744
      %v2761 = vpack.c.b16 %v2745, %v2745
      %v2762 = vpack.c.b16 %v2746, %v2746
      %v2763 = vpack.c.b16 %v2747, %v2747
      %v2764 = vpack.c.b16 %v2748, %v2748
      %v2765 = vpack.c.b16 %v2749, %v2749
      %v2766 = vpack.c.b16 %v2750, %v2750
      %v2767 = vpack.c.b16 %v2751, %v2751
      %v2768 = vpack.c.b16 %v2752, %v2752
      %v2769 = vpack.c.b16 %v2753, %v2753
      %v2770 = vpack.c.b16 %v2754, %v2754
      %2787 = vst [vmem:[%s242] sm:$0xf] %v2755
      %2788 = vst [vmem:[%s242 + $0x4] sm:$0xf] %v2756
      %2789 = vst [vmem:[%s242 + $0x8] sm:$0xf] %v2757
      %2790 = vst [vmem:[%s242 + $0xc] sm:$0xf] %v2758
      %2791 = vst [vmem:[%s242 + $0x10] sm:$0xf] %v2759
      %2792 = vst [vmem:[%s242 + $0x14] sm:$0xf] %v2760
      %2793 = vst [vmem:[%s242 + $0x18] sm:$0xf] %v2761
      %2794 = vst [vmem:[%s242 + $0x1c] sm:$0xf] %v2762
      %2795 = vst [vmem:[%s242 + $0x20] sm:$0xf] %v2763
      %2796 = vst [vmem:[%s242 + $0x24] sm:$0xf] %v2764
      %2797 = vst [vmem:[%s242 + $0x28] sm:$0xf] %v2765
      %2798 = vst [vmem:[%s242 + $0x2c] sm:$0xf] %v2766
      %2799 = vst [vmem:[%s242 + $0x30] sm:$0xf] %v2767
      %2800 = vst [vmem:[%s242 + $0x34] sm:$0xf] %v2768
      %2801 = vst [vmem:[%s242 + $0x38] sm:$0xf] %v2769
      %2802 = vst [vmem:[%s242 + $0x3c] sm:$0xf] %v2770
      %s2803 = ssub.s32 16, %s258
      %p2804 = scmp.lt.s32.totalorder %s2803, 8
      %s2805 = scalar_select %p2804, %s2803, 8
      %s2806 = smul.u32 %s2805, 16
      %s2807 = scvt.s32.f32 %s2806
      %v2808 = vlaneseq
      %v2809 = vshrl.u32 %v2808, 7
      %v2810 = vadd.s32 %v2809, 8
      %v2811 = vadd.s32 %v2809, 16
      %v2812 = vadd.s32 %v2809, 24
      %v2813 = vadd.s32 %v2809, 32
      %v2814 = vadd.s32 %v2809, 40
      %v2815 = vadd.s32 %v2809, 48
      %v2816 = vadd.s32 %v2809, 56
      %v2817 = vadd.s32 %v2809, 64
      %v2818 = vadd.s32 %v2809, 72
      %v2819 = vadd.s32 %v2809, 80
      %v2820 = vadd.s32 %v2809, 88
      %v2821 = vadd.s32 %v2809, 96
      %v2822 = vadd.s32 %v2809, 104
      %v2823 = vadd.s32 %v2809, 112
      %v2824 = vadd.s32 %v2809, 120
      %v2825 = vstv %s2806
      %vm2826 = vcmp.lt.s32.totalorder %v2809, %v2825
      %vm2827 = vcmp.lt.s32.totalorder %v2810, %v2825
      %vm2828 = vcmp.lt.s32.totalorder %v2811, %v2825
      %vm2829 = vcmp.lt.s32.totalorder %v2812, %v2825
      %vm2830 = vcmp.lt.s32.totalorder %v2813, %v2825
      %vm2831 = vcmp.lt.s32.totalorder %v2814, %v2825
      %vm2832 = vcmp.lt.s32.totalorder %v2815, %v2825
      %vm2833 = vcmp.lt.s32.totalorder %v2816, %v2825
      %vm2834 = vcmp.lt.s32.totalorder %v2817, %v2825
      %vm2835 = vcmp.lt.s32.totalorder %v2818, %v2825
      %vm2836 = vcmp.lt.s32.totalorder %v2819, %v2825
      %vm2837 = vcmp.lt.s32.totalorder %v2820, %v2825
      %vm2838 = vcmp.lt.s32.totalorder %v2821, %v2825
      %vm2839 = vcmp.lt.s32.totalorder %v2822, %v2825
      %vm2840 = vcmp.lt.s32.totalorder %v2823, %v2825
      %vm2841 = vcmp.lt.s32.totalorder %v2824, %v2825
      %v2842 = vsel %vm2826, 1, 0
      %v2843 = vsel %vm2827, 1, 0
      %v2844 = vsel %vm2828, 1, 0
      %v2845 = vsel %vm2829, 1, 0
      %v2846 = vsel %vm2830, 1, 0
      %v2847 = vsel %vm2831, 1, 0
      %v2848 = vsel %vm2832, 1, 0
      %v2849 = vsel %vm2833, 1, 0
      %v2850 = vsel %vm2834, 1, 0
      %v2851 = vsel %vm2835, 1, 0
      %v2852 = vsel %vm2836, 1, 0
      %v2853 = vsel %vm2837, 1, 0
      %v2854 = vsel %vm2838, 1, 0
      %v2855 = vsel %vm2839, 1, 0
      %v2856 = vsel %vm2840, 1, 0
      %v2857 = vsel %vm2841, 1, 0
      %vm2858 = vcmp.eq.s32.totalorder %v2842, 1
      %vm2859 = vcmp.eq.s32.totalorder %v2843, 1
      %vm2860 = vcmp.eq.s32.totalorder %v2844, 1
      %vm2861 = vcmp.eq.s32.totalorder %v2845, 1
      %vm2862 = vcmp.eq.s32.totalorder %v2846, 1
      %vm2863 = vcmp.eq.s32.totalorder %v2847, 1
      %vm2864 = vcmp.eq.s32.totalorder %v2848, 1
      %vm2865 = vcmp.eq.s32.totalorder %v2849, 1
      %vm2866 = vcmp.eq.s32.totalorder %v2850, 1
      %vm2867 = vcmp.eq.s32.totalorder %v2851, 1
      %vm2868 = vcmp.eq.s32.totalorder %v2852, 1
      %vm2869 = vcmp.eq.s32.totalorder %v2853, 1
      %vm2870 = vcmp.eq.s32.totalorder %v2854, 1
      %vm2871 = vcmp.eq.s32.totalorder %v2855, 1
      %vm2872 = vcmp.eq.s32.totalorder %v2856, 1
      %vm2873 = vcmp.eq.s32.totalorder %v2857, 1
      %v2874 = vsel %vm2858, %v2707, 0.0
      %v2875 = vsel %vm2859, %v2708, 0.0
      %v2876 = vsel %vm2860, %v2709, 0.0
      %v2877 = vsel %vm2861, %v2710, 0.0
      %v2878 = vsel %vm2862, %v2711, 0.0
      %v2879 = vsel %vm2863, %v2712, 0.0
      %v2880 = vsel %vm2864, %v2713, 0.0
      %v2881 = vsel %vm2865, %v2714, 0.0
      %v2882 = vsel %vm2866, %v2715, 0.0
      %v2883 = vsel %vm2867, %v2716, 0.0
      %v2884 = vsel %vm2868, %v2717, 0.0
      %v2885 = vsel %vm2869, %v2718, 0.0
      %v2886 = vsel %vm2870, %v2719, 0.0
      %v2887 = vsel %vm2871, %v2720, 0.0
      %v2888 = vsel %vm2872, %v2721, 0.0
      %v2889 = vsel %vm2873, %v2722, 0.0
      %v2890 = vadd.f32 %v2874, %v2875
      %v2891 = vadd.f32 %v2890, %v2876
      %v2892 = vadd.f32 %v2891, %v2877
      %v2893 = vadd.f32 %v2892, %v2878
      %v2894 = vadd.f32 %v2893, %v2879
      %v2895 = vadd.f32 %v2894, %v2880
      %v2896 = vadd.f32 %v2895, %v2881
      %v2897 = vadd.f32 %v2896, %v2882
      %v2898 = vadd.f32 %v2897, %v2883
      %v2899 = vadd.f32 %v2898, %v2884
      %v2900 = vadd.f32 %v2899, %v2885
      %v2901 = vadd.f32 %v2900, %v2886
      %v2902 = vadd.f32 %v2901, %v2887
      %v2903 = vadd.f32 %v2902, %v2888
      %v2904 = vadd.f32 %v2903, %v2889
      %v2905 = vrot.slane %v2904, 4
      %v2906 = vadd.f32 %v2904, %v2905
      %v2907 = vrot.slane %v2906, 2
      %v2908 = vadd.f32 %v2906, %v2907
      %v2909 = vrot.slane %v2908, 1
      %v2910 = vadd.f32 %v2908, %v2909
      %v2911 = vstv %s2807
      %v2912 = vrcp.pop %v2911
      %v2913 = vmul.f32 %v2910, %v2912
      %v2914 = vsub.f32 %v2707, %v2913
      %v2915 = vsub.f32 %v2708, %v2913
      %v2916 = vsub.f32 %v2709, %v2913
      %v2917 = vsub.f32 %v2710, %v2913
      %v2918 = vsub.f32 %v2711, %v2913
      %v2919 = vsub.f32 %v2712, %v2913
      %v2920 = vsub.f32 %v2713, %v2913
      %v2921 = vsub.f32 %v2714, %v2913
      %v2922 = vsub.f32 %v2715, %v2913
      %v2923 = vsub.f32 %v2716, %v2913
      %v2924 = vsub.f32 %v2717, %v2913
      %v2925 = vsub.f32 %v2718, %v2913
      %v2926 = vsub.f32 %v2719, %v2913
      %v2927 = vsub.f32 %v2720, %v2913
      %v2928 = vsub.f32 %v2721, %v2913
      %v2929 = vsub.f32 %v2722, %v2913
      %v2930 = vsel %vm2858, %v2914, 0.0
      %v2931 = vsel %vm2859, %v2915, 0.0
      %v2932 = vsel %vm2860, %v2916, 0.0
      %v2933 = vsel %vm2861, %v2917, 0.0
      %v2934 = vsel %vm2862, %v2918, 0.0
      %v2935 = vsel %vm2863, %v2919, 0.0
      %v2936 = vsel %vm2864, %v2920, 0.0
      %v2937 = vsel %vm2865, %v2921, 0.0
      %v2938 = vsel %vm2866, %v2922, 0.0
      %v2939 = vsel %vm2867, %v2923, 0.0
      %v2940 = vsel %vm2868, %v2924, 0.0
      %v2941 = vsel %vm2869, %v2925, 0.0
      %v2942 = vsel %vm2870, %v2926, 0.0
      %v2943 = vsel %vm2871, %v2927, 0.0
      %v2944 = vsel %vm2872, %v2928, 0.0
      %v2945 = vsel %vm2873, %v2929, 0.0
      %2946 = vst [vmem:[%s249] sm:$0x1] %v2913
      %v2947 = vmul.f32 %v2930, %v2930
      %v2948 = vmul.f32 %v2931, %v2931
      %v2949 = vmul.f32 %v2932, %v2932
      %v2950 = vmul.f32 %v2933, %v2933
      %v2951 = vmul.f32 %v2934, %v2934
      %v2952 = vmul.f32 %v2935, %v2935
      %v2953 = vmul.f32 %v2936, %v2936
      %v2954 = vmul.f32 %v2937, %v2937
      %v2955 = vmul.f32 %v2938, %v2938
      %v2956 = vmul.f32 %v2939, %v2939
      %v2957 = vmul.f32 %v2940, %v2940
      %v2958 = vmul.f32 %v2941, %v2941
      %v2959 = vmul.f32 %v2942, %v2942
      %v2960 = vmul.f32 %v2943, %v2943
      %v2961 = vmul.f32 %v2944, %v2944
      %v2962 = vmul.f32 %v2945, %v2945
      %v2963 = vadd.f32 %v2947, %v2948
      %v2964 = vadd.f32 %v2963, %v2949
      %v2965 = vadd.f32 %v2964, %v2950
      %v2966 = vadd.f32 %v2965, %v2951
      %v2967 = vadd.f32 %v2966, %v2952
      %v2968 = vadd.f32 %v2967, %v2953
      %v2969 = vadd.f32 %v2968, %v2954
      %v2970 = vadd.f32 %v2969, %v2955
      %v2971 = vadd.f32 %v2970, %v2956
      %v2972 = vadd.f32 %v2971, %v2957
      %v2973 = vadd.f32 %v2972, %v2958
      %v2974 = vadd.f32 %v2973, %v2959
      %v2975 = vadd.f32 %v2974, %v2960
      %v2976 = vadd.f32 %v2975, %v2961
      %v2977 = vadd.f32 %v2976, %v2962
      %v2978 = vrot.slane %v2977, 4
      %v2979 = vadd.f32 %v2977, %v2978
      %v2980 = vrot.slane %v2979, 2
      %v2981 = vadd.f32 %v2979, %v2980
      %v2982 = vrot.slane %v2981, 1
      %v2983 = vadd.f32 %v2981, %v2982
      %2984 = vst [vmem:[%s256] sm:$0x1] %v2983
      %p2985 = scmp.lt.s32.totalorder %s20, 1
      %s2986 = scalar_select %p2985, %s20, 1
      %p2987 = scmp.lt.s32.totalorder %s21, 1
      %s2988 = scalar_select %p2987, %s21, 1
      %s2989 = smul.addr %s2988, 16
      %s2990 = smul.addr %s2986, 32
      %s2991 = sadd.s32 %s2989, %s2990
      %s2992 = smul.addr %s2991, 4
      %s2993 = scalar_lea.vmem %s2, %s2992
      %p2994 = scmp.lt.s32.totalorder %s20, 1
      %s2995 = scalar_select %p2994, %s20, 1
      %p2996 = scmp.lt.s32.totalorder %s21, 1
      %s2997 = scalar_select %p2996, %s21, 1
      %s2998 = smul.addr %s2995, 2
      %s2999 = sadd.s32 %s2997, %s2998
      %s3000 = scalar_lea.vmem %s3, %s2999
      %p3001 = scmp.lt.s32.totalorder %s20, 1
      %s3002 = scalar_select %p3001, %s20, 1
      %p3003 = scmp.lt.s32.totalorder %s21, 1
      %s3004 = scalar_select %p3003, %s21, 1
      %s3005 = smul.addr %s3002, 2
      %s3006 = sadd.s32 %s3004, %s3005
      %s3007 = scalar_lea.vmem %s4, %s3006
      // Predicated region
      $region29: #{basic_conv2d.2} parent=27 // pred_check
        %p3008 = pneg %p95
      $region30: #{basic_conv2d.2} parent=27 // pred_check_branch
        %3010 = sbr.rel (%p3008) target = $region32
      $region31: #{basic_conv2d.2} parent=27 // pred_region
        _
      $region32: #{basic_conv2d.2} parent=27 // pred_fallthru
        _
      // Predicated region
      $region33: #{basic_conv2d.2} parent=27 // pred_check
        %p3011 = pneg %p123
      $region34: #{basic_conv2d.2} parent=27 // pred_check_branch
        %3013 = sbr.rel (%p3011) target = $region36
      $region35: #{basic_conv2d.2} parent=27 // pred_region
        _
      $region36: #{basic_conv2d.2} parent=27 // pred_fallthru
        _
      // Predicated region
      $region37: #{basic_conv2d.2} parent=27 // pred_check
        %p3014 = pneg %p151
      $region38: #{basic_conv2d.2} parent=27 // pred_check_branch
        %3016 = sbr.rel (%p3014) target = $region40
      $region39: #{basic_conv2d.2} parent=27 // pred_region
        _
      $region40: #{basic_conv2d.2} parent=27 // pred_fallthru
        _
    $region28: #{basic_conv2d.2} parent=5 // pred_fallthru
      _
    %p3017 = scmp.le.s32.totalorder 2, %s11
    // Predicated region
    $region41: #{basic_conv2d.2} parent=5 // pred_check
      %p3018 = pneg %p3017
    $region42: #{basic_conv2d.2} parent=5 // pred_check_branch
      %3020 = sbr.rel (%p3018) target = $region44
    $region43: #{basic_conv2d.2} parent=5 // pred_region
      %s3021 = ssub.s32 %s11, 2
      // Predicated region
      $region45: #{basic_conv2d.2} parent=43 // pred_check
        %p3022 = pneg %p101
      $region46: #{basic_conv2d.2} parent=43 // pred_check_branch
        %3024 = sbr.rel (%p3022) target = $region48
      $region47: #{basic_conv2d.2} parent=43 // pred_region
        %p3025 = scmp.lt.s32.totalorder %s22, 1
        %s3026 = scalar_select %p3025, %s22, 1
        %p3027 = scmp.lt.s32.totalorder %s23, 1
        %s3028 = scalar_select %p3027, %s23, 1
        %s3029 = smul.addr %s3028, 16
        %s3030 = smul.addr %s3026, 32
        %s3031 = sadd.s32 %s3029, %s3030
        %s3032 = smul.addr %s3031, 4
        %s3033 = scalar_lea.vmem %s2, %s3032
      $region48: #{basic_conv2d.2} parent=43 // pred_fallthru
        _
      // Predicated region
      $region49: #{basic_conv2d.2} parent=43 // pred_check
        %p3034 = pneg %p129
      $region50: #{basic_conv2d.2} parent=43 // pred_check_branch
        %3036 = sbr.rel (%p3034) target = $region52
      $region51: #{basic_conv2d.2} parent=43 // pred_region
        %p3037 = scmp.lt.s32.totalorder %s22, 1
        %s3038 = scalar_select %p3037, %s22, 1
        %p3039 = scmp.lt.s32.totalorder %s23, 1
        %s3040 = scalar_select %p3039, %s23, 1
        %s3041 = smul.addr %s3038, 2
        %s3042 = sadd.s32 %s3040, %s3041
        %s3043 = scalar_lea.vmem %s3, %s3042
      $region52: #{basic_conv2d.2} parent=43 // pred_fallthru
        _
      // Predicated region
      $region53: #{basic_conv2d.2} parent=43 // pred_check
        %p3044 = pneg %p157
      $region54: #{basic_conv2d.2} parent=43 // pred_check_branch
        %3046 = sbr.rel (%p3044) target = $region56
      $region55: #{basic_conv2d.2} parent=43 // pred_region
        %p3047 = scmp.lt.s32.totalorder %s22, 1
        %s3048 = scalar_select %p3047, %s22, 1
        %p3049 = scmp.lt.s32.totalorder %s23, 1
        %s3050 = scalar_select %p3049, %s23, 1
        %s3051 = smul.addr %s3048, 2
        %s3052 = sadd.s32 %s3050, %s3051
        %s3053 = scalar_lea.vmem %s4, %s3052
      $region56: #{basic_conv2d.2} parent=43 // pred_fallthru
        _
    $region44: #{basic_conv2d.2} parent=5 // pred_fallthru
      _
  $region6: #{basic_conv2d.2} parent=0 // loop_footer
    %s15 = sadd.s32 1, %s11
  $region7: #{basic_conv2d.2} parent=0 // loop_footer_branch
    %10 = sbr.rel target = $region3
  $region8: #{basic_conv2d.2} parent=0 // loop_exit
    _

</llo_original>
